<compile_context>
chip_gen: v6e
topology: v6e:2x2x1
jax: 0.10.0
libtpu: 0.0.40
codegen_flags: <defaults>
</compile_context>

<pallas_src>
import jax
import jax.numpy as jnp
from jax.experimental import pallas as pl
from jax.experimental.pallas import tpu as pltpu

BN_EPS = 1e-5


def hybrid_head_kernel(x_ref, w1_ref, b1_ref, w2_ref, b2_ref, out_ref,
                       pool_ref):
    # x_ref : (TB, C, HW_T) f32  channels-second feature tile (NCHW reshape)
    # w1_ref: (C, HID)      bf16 (BN + 1/HW folded in)
    # b1_ref: (1, HID)      f32  (BN + bias folded in)
    # w2_ref: (HID, NCP)    bf16 (NC padded to lane-dense NCP)
    # b2_ref: (1, NCP)      f32
    # out_ref: (TB, NCP)    f32
    # pool_ref: (TB, C)     f32  scratch (spatial-sum accumulator)
    hw_step = pl.program_id(1)

    @pl.when(hw_step == 0)
    def _():
        pool_ref[...] = jnp.zeros_like(pool_ref)

    # Spatial sum-pool: f32 lane-axis (XLU) reduce of the current HW chunk.
    # The 1/(H*W) scale and eval-mode BatchNorm are folded into w1'/b1'.
    pool_ref[...] += jnp.sum(x_ref[...], axis=-1)

    @pl.when(hw_step == pl.num_programs(1) - 1)
    def _():
        pooled = pool_ref[...]                                    # (TB, C) f32
        # feature_adapter Linear + folded BN (bf16 MXU operands, f32 accum).
        z = jnp.dot(pooled.astype(jnp.bfloat16), w1_ref[...],
                    preferred_element_type=jnp.float32) + b1_ref[...]
        # ReLU (Dropout layers are identity at inference).
        z = jnp.maximum(z, 0.0)
        # classifier Linear.
        out_ref[...] = (jnp.dot(z.astype(jnp.bfloat16), w2_ref[...],
                                preferred_element_type=jnp.float32)
                        + b2_ref[...]).astype(out_ref.dtype)


def _round_up(a, m):
    return ((a + m - 1) // m) * m


def _fold_params(params, hw):
    """Fold eval-mode BN, the Linear bias and the avg-pool scale into Linear1."""
    inv_std = jax.lax.rsqrt(params["var"] + BN_EPS)        # (1, HID)
    scale = params["gamma"] * inv_std                      # (1, HID)
    w1f = (params["w1"] * scale) / float(hw)               # (C, HID)
    b1f = (params["b1"] - params["mean"]) * scale + params["beta"]  # (1, HID)
    return w1f, b1f


def _pick_hw_tile(hw, max_tile=256):
    """Largest multiple-of-128 divisor of hw that is <= max_tile (lane-dense,
    divides exactly so no garbage lanes enter the pool). Falls back to the
    full extent when no such divisor exists."""
    if hw <= max_tile:
        return hw
    best = None
    t = 128
    while t <= max_tile:
        if hw % t == 0:
            best = t
        t += 128
    return best if best is not None else hw


def _pick_batch_tile(batch, channels, hw_tile, x_block_bytes=2 << 20):
    """Batch tile bounded by a ~2 MiB f32 x-block (fits v5e's 16 MiB scoped
    VMEM double-buffered); prefers >=2 batch grid steps for v7x megacore."""
    row_bytes = channels * hw_tile * 4
    cap = max(1, x_block_bytes // row_bytes)
    if batch <= cap:
        if batch >= 16:
            return _round_up(pl.cdiv(batch, 2), 8)   # 2 steps -> both v7x TCs
        return batch                                  # single exact block
    return max(8, min(128, (cap // 8) * 8))


def hybrid_model_forward(layer4_feat, params, *, batch_tile=None, hw_tile=None):
    """layer4_feat: (B, C, H, W) float32 NCHW layer4 feature map (C == 256)."""
    B, C, H, W = layer4_feat.shape
    HW = H * W
    HID = params["w1"].shape[1]
    NC = params["w2"].shape[1]

    # Reshape only (free): no transpose, no cast, no batch pad of the feature
    # map -- the kernel reads the f32 map once, straight from HBM.
    x = layer4_feat.reshape(B, C, HW)

    # Fold BN / bias / mean-pool scale into Linear1; bf16 MXU weights.
    w1f, b1f = _fold_params(params, HW)
    w1b = w1f.astype(jnp.bfloat16)

    # Pad classifier output dim to a lane-dense multiple of 128 (tiny arrays).
    NCP = _round_up(NC, 128)
    w2p = jnp.zeros((HID, NCP), jnp.float32).at[:, :NC].set(params["w2"])
    b2p = jnp.zeros((1, NCP), jnp.float32).at[:, :NC].set(params["b2"])
    w2b = w2p.astype(jnp.bfloat16)

    HW_T = hw_tile if hw_tile is not None else _pick_hw_tile(HW)
    assert HW % HW_T == 0, "spatial tile must divide H*W exactly"
    TB = batch_tile if batch_tile is not None else _pick_batch_tile(B, C, HW_T)

    grid_b = pl.cdiv(B, TB)
    grid_hw = HW // HW_T
    BP = grid_b * TB            # padded rows exist only in the tiny output

    grid_spec = pltpu.PrefetchScalarGridSpec(
        num_scalar_prefetch=0,
        grid=(grid_b, grid_hw),
        in_specs=[
            pl.BlockSpec((TB, C, HW_T), lambda b, h: (b, 0, h)),   # x tile
            pl.BlockSpec((C, HID), lambda b, h: (0, 0)),           # w1' folded
            pl.BlockSpec((1, HID), lambda b, h: (0, 0)),           # b1'
            pl.BlockSpec((HID, NCP), lambda b, h: (0, 0)),         # w2 (padded)
            pl.BlockSpec((1, NCP), lambda b, h: (0, 0)),           # b2 (padded)
        ],
        out_specs=pl.BlockSpec((TB, NCP), lambda b, h: (b, 0)),
        scratch_shapes=[pltpu.VMEM((TB, C), jnp.float32)],         # pool acc
    )

    # Rough double-buffered VMEM footprint; only raise the scoped limit when
    # the smallest default (v5e ~16 MiB) would not fit (normally it does).
    x_block = TB * C * HW_T * 4
    w_resident = (C * HID + HID * NCP) * 2 + (HID + NCP) * 4
    vmem_need = 2 * x_block + 2 * w_resident + 2 * TB * NCP * 4 + TB * C * 4
    cparams = {"dimension_semantics": ("parallel", "arbitrary")}
    if vmem_need > (14 << 20):
        cparams["vmem_limit_bytes"] = int(min(2 * vmem_need, 56 << 20))

    out = pl.pallas_call(
        hybrid_head_kernel,
        out_shape=jax.ShapeDtypeStruct((BP, NCP), jnp.float32),
        grid_spec=grid_spec,
        compiler_params=pltpu.CompilerParams(**cparams),
    )(x, w1b, b1f, w2b, b2p)

    # Ragged last batch tile / padded classifier lanes are sliced off here.
    return out[:B, :NC]


def init_params(key, in_channels=256, hidden=1280, num_classes=32):
    """Deterministic init matching HybridModel._initialize_weights:
       Linear weights ~ N(0, 0.01), biases 0; BN gamma=1, beta=0,
       running_mean=0, running_var=1."""
    k1, k2 = jax.random.split(key)
    w1 = 0.01 * jax.random.normal(k1, (in_channels, hidden), jnp.float32)
    w2 = 0.01 * jax.random.normal(k2, (hidden, num_classes), jnp.float32)
    return {
        "w1": w1,
        "b1": jnp.zeros((1, hidden), jnp.float32),
        "gamma": jnp.ones((1, hidden), jnp.float32),
        "beta": jnp.zeros((1, hidden), jnp.float32),
        "mean": jnp.zeros((1, hidden), jnp.float32),
        "var": jnp.ones((1, hidden), jnp.float32),
        "w2": w2,
        "b2": jnp.zeros((1, num_classes), jnp.float32),
    }


def reference_forward_f32(layer4_feat, params):
    """Pure-JAX f32 reference matching the original PyTorch eval forward."""
    pooled = jnp.mean(layer4_feat, axis=(2, 3))                   # (B, C)
    z = pooled @ params["w1"] + params["b1"]
    z = (z - params["mean"]) * jax.lax.rsqrt(params["var"] + BN_EPS)
    z = z * params["gamma"] + params["beta"]
    z = jnp.maximum(z, 0.0)
    return z @ params["w2"] + params["b2"]


def reference_forward_bf16(layer4_feat, params):
    """Pure-JAX reference with the same folding / bf16 MXU casts as the kernel
    (f32 pooling, bf16 matmul operands, f32 accumulation)."""
    B, C, H, W = layer4_feat.shape
    HW = H * W
    w1f, b1f = _fold_params(params, HW)
    pooled = jnp.sum(layer4_feat.reshape(B, C, HW), axis=-1)      # f32 pool
    z = jnp.dot(pooled.astype(jnp.bfloat16), w1f.astype(jnp.bfloat16),
                preferred_element_type=jnp.float32) + b1f
    z = jnp.maximum(z, 0.0)
    return jnp.dot(z.astype(jnp.bfloat16),
                   params["w2"].astype(jnp.bfloat16),
                   preferred_element_type=jnp.float32) + params["b2"]


if __name__ == "__main__":
    B, C, H, W = 2, 256, 16, 16        # layer4 feature map (small spatial)
    NUM_CLASSES = 32                   # small classifier head

    key = jax.random.PRNGKey(0)
    kx, kp = jax.random.split(key)
    layer4 = jax.random.normal(kx, (B, C, H, W), jnp.float32)
    params = init_params(kp, in_channels=C, hidden=1280,
                         num_classes=NUM_CLASSES)

    out = hybrid_model_forward(layer4, params)
    out = jax.block_until_ready(out)
    assert out.shape == (B, NUM_CLASSES)

    # Tight check against a pure-JAX reference using identical folding + bf16
    # MXU operands (isolates kernel correctness from bf16 rounding).
    ref_bf16 = reference_forward_bf16(layer4, params)
    assert jnp.allclose(out, ref_bf16, atol=5e-5, rtol=1e-3), \
        "mismatch vs bf16-consistent reference"

    # Semantic sanity check vs the full-f32 PyTorch-equivalent path (bf16 MXU
    # weights introduce ~bf16-epsilon relative error).
    ref_f32 = reference_forward_f32(layer4, params)
    err = float(jnp.max(jnp.abs(out - ref_f32)))
    scale = float(jnp.max(jnp.abs(ref_f32))) + 1e-12
    assert err <= 0.05 * scale + 1e-5, "mismatch vs f32 reference"

    # Second config: forces the multi-step spatial reduction axis and a ragged
    # last batch tile (B=10, TB=8, HW tiled 2x128) to exercise the accumulator
    # init/finalize and partial-block paths on hardware.
    B2 = 10
    layer4b = jax.random.normal(jax.random.PRNGKey(1), (B2, C, H, W),
                                jnp.float32)
    out2 = jax.block_until_ready(
        hybrid_model_forward(layer4b, params, batch_tile=8, hw_tile=128))
    assert out2.shape == (B2, NUM_CLASSES)
    ref2 = reference_forward_bf16(layer4b, params)
    assert jnp.allclose(out2, ref2, atol=5e-5, rtol=1e-3), \
        "mismatch on tiled/ragged configuration"

    print("KERNEL_OK")
</pallas_src>

<mosaic_0001>
module attributes {stable_mosaic.version = 11 : i64} {
  func.func @hybrid_head_kernel(%arg0: i32, %arg1: i32, %arg2: memref<2x256x256xf32, #tpu.memory_space<vmem>>, %arg3: memref<256x1280xbf16, #tpu.memory_space<vmem>>, %arg4: memref<1x1280xf32, #tpu.memory_space<vmem>>, %arg5: memref<1280x128xbf16, #tpu.memory_space<vmem>>, %arg6: memref<1x128xf32, #tpu.memory_space<vmem>>, %arg7: memref<2x128xf32, #tpu.memory_space<vmem>>, %arg8: memref<2x256xf32, #tpu.memory_space<vmem>>) attributes {dimension_semantics = [#tpu.dimension_semantics<parallel>, #tpu.dimension_semantics<arbitrary>], iteration_bounds = array<i64: 1, 1>, scalar_prefetch = 0 : i64, scratch_operands = 1 : i64, tpu.core_type = #tpu.core_type<tc>, window_params = [{transform_indices = @transform_0, window_bounds = array<i64: 2, 256, 256>}, {pipeline_mode = #tpu.pipeline_mode<synchronous>, transform_indices = @transform_1, window_bounds = array<i64: 256, 1280>}, {pipeline_mode = #tpu.pipeline_mode<synchronous>, transform_indices = @transform_2, window_bounds = array<i64: 1, 1280>}, {pipeline_mode = #tpu.pipeline_mode<synchronous>, transform_indices = @transform_3, window_bounds = array<i64: 1280, 128>}, {pipeline_mode = #tpu.pipeline_mode<synchronous>, transform_indices = @transform_4, window_bounds = array<i64: 1, 128>}, {transform_indices = @transform_5, window_bounds = array<i64: 2, 128>}]} {
    %c0_i32 = arith.constant 0 : i32
    %0 = arith.cmpi eq, %arg1, %c0_i32 : i32
    %1 = arith.extui %0 : i1 to i32
    %c0_i32_0 = arith.constant 0 : i32
    %2 = arith.cmpi ne, %1, %c0_i32_0 : i32
    scf.if %2 {
      %cst_9 = arith.constant 0.000000e+00 : f32
      %11 = vector.broadcast %cst_9 : f32 to vector<2x256xf32>
      %c0_10 = arith.constant 0 : index
      %c0_11 = arith.constant 0 : index
      %12 = vector.load %arg8[%c0_10, %c0_11] : memref<2x256xf32, #tpu.memory_space<vmem>>, vector<2x256xf32>
      tpu.vector_store %arg8[%c0_10, %c0_11], %11 {strides = array<i32>} : memref<2x256xf32, #tpu.memory_space<vmem>>, vector<2x256xf32>,
    } else {
    }
    %c0 = arith.constant 0 : index
    %c0_1 = arith.constant 0 : index
    %3 = vector.load %arg8[%c0, %c0_1] : memref<2x256xf32, #tpu.memory_space<vmem>>, vector<2x256xf32>
    %c0_2 = arith.constant 0 : index
    %c0_3 = arith.constant 0 : index
    %c0_4 = arith.constant 0 : index
    %4 = vector.load %arg2[%c0_2, %c0_3, %c0_4] : memref<2x256x256xf32, #tpu.memory_space<vmem>>, vector<2x256x256xf32>
    %cst = arith.constant dense<0.000000e+00> : vector<2x256xf32>
    %5 = vector.multi_reduction <add>, %4, %cst [2] : vector<2x256x256xf32> to vector<2x256xf32>
    %6 = arith.addf %3, %5 : vector<2x256xf32>
    %c0_5 = arith.constant 0 : index
    %c0_6 = arith.constant 0 : index
    %7 = vector.load %arg8[%c0_5, %c0_6] : memref<2x256xf32, #tpu.memory_space<vmem>>, vector<2x256xf32>
    tpu.vector_store %arg8[%c0_5, %c0_6], %6 {strides = array<i32>} : memref<2x256xf32, #tpu.memory_space<vmem>>, vector<2x256xf32>,
    %c0_i32_7 = arith.constant 0 : i32
    %8 = arith.cmpi eq, %arg1, %c0_i32_7 : i32
    %9 = arith.extui %8 : i1 to i32
    %c0_i32_8 = arith.constant 0 : i32
    %10 = arith.cmpi ne, %9, %c0_i32_8 : i32
    scf.if %10 {
      %c0_9 = arith.constant 0 : index
      %c0_10 = arith.constant 0 : index
      %11 = vector.load %arg8[%c0_9, %c0_10] : memref<2x256xf32, #tpu.memory_space<vmem>>, vector<2x256xf32>
      %12 = arith.truncf %11 : vector<2x256xf32> to vector<2x256xbf16>
      %c0_11 = arith.constant 0 : index
      %c0_12 = arith.constant 0 : index
      %13 = vector.load %arg3[%c0_11, %c0_12] : memref<256x1280xbf16, #tpu.memory_space<vmem>>, vector<256x1280xbf16>
      %cst_13 = arith.constant dense<0.000000e+00> : vector<2x1280xf32>
      %14 = tpu.matmul %12, %13, %cst_13 {dimension_numbers = #tpu.dot_dimension_numbers<[1], [0], [0], [1], [0, 0, 1, 1], [], []>} : vector<2x256xbf16>, vector<256x1280xbf16>, vector<2x1280xf32> -> vector<2x1280xf32>
      %c0_14 = arith.constant 0 : index
      %c0_15 = arith.constant 0 : index
      %15 = vector.load %arg4[%c0_14, %c0_15] : memref<1x1280xf32, #tpu.memory_space<vmem>>, vector<1x1280xf32>
      %16 = vector.broadcast %15 : vector<1x1280xf32> to vector<2x1280xf32>
      %17 = arith.addf %14, %16 : vector<2x1280xf32>
      %cst_16 = arith.constant 0.000000e+00 : f32
      %18 = vector.broadcast %cst_16 : f32 to vector<2x1280xf32>
      %19 = arith.maximumf %17, %18 : vector<2x1280xf32>
      %20 = arith.truncf %19 : vector<2x1280xf32> to vector<2x1280xbf16>
      %c0_17 = arith.constant 0 : index
      %c0_18 = arith.constant 0 : index
      %21 = vector.load %arg5[%c0_17, %c0_18] : memref<1280x128xbf16, #tpu.memory_space<vmem>>, vector<1280x128xbf16>
      %cst_19 = arith.constant dense<0.000000e+00> : vector<2x128xf32>
      %22 = tpu.matmul %20, %21, %cst_19 {dimension_numbers = #tpu.dot_dimension_numbers<[1], [0], [0], [1], [0, 0, 1, 1], [], []>} : vector<2x1280xbf16>, vector<1280x128xbf16>, vector<2x128xf32> -> vector<2x128xf32>
      %c0_20 = arith.constant 0 : index
      %c0_21 = arith.constant 0 : index
      %23 = vector.load %arg6[%c0_20, %c0_21] : memref<1x128xf32, #tpu.memory_space<vmem>>, vector<1x128xf32>
      %24 = vector.broadcast %23 : vector<1x128xf32> to vector<2x128xf32>
      %25 = arith.addf %22, %24 : vector<2x128xf32>
      %c0_22 = arith.constant 0 : index
      %c0_23 = arith.constant 0 : index
      %26 = vector.load %arg7[%c0_22, %c0_23] : memref<2x128xf32, #tpu.memory_space<vmem>>, vector<2x128xf32>
      tpu.vector_store %arg7[%c0_22, %c0_23], %25 {strides = array<i32>} : memref<2x128xf32, #tpu.memory_space<vmem>>, vector<2x128xf32>,
    } else {
    }
    return
  }
  func.func @transform_0(%arg0: i32, %arg1: i32) -> (i32, i32, i32) {
    %c0_i32 = arith.constant 0 : i32
    %c0_i32_0 = arith.constant 0 : i32
    return %arg0, %c0_i32, %arg1 : i32, i32, i32
  }
  func.func @transform_1(%arg0: i32, %arg1: i32) -> (i32, i32) {
    %c0_i32 = arith.constant 0 : i32
    %c0_i32_0 = arith.constant 0 : i32
    %c0_i32_1 = arith.constant 0 : i32
    return %c0_i32, %c0_i32_0 : i32, i32
  }
  func.func @transform_2(%arg0: i32, %arg1: i32) -> (i32, i32) {
    %c0_i32 = arith.constant 0 : i32
    %c0_i32_0 = arith.constant 0 : i32
    %c0_i32_1 = arith.constant 0 : i32
    return %c0_i32, %c0_i32_0 : i32, i32
  }
  func.func @transform_3(%arg0: i32, %arg1: i32) -> (i32, i32) {
    %c0_i32 = arith.constant 0 : i32
    %c0_i32_0 = arith.constant 0 : i32
    %c0_i32_1 = arith.constant 0 : i32
    return %c0_i32, %c0_i32_0 : i32, i32
  }
  func.func @transform_4(%arg0: i32, %arg1: i32) -> (i32, i32) {
    %c0_i32 = arith.constant 0 : i32
    %c0_i32_0 = arith.constant 0 : i32
    %c0_i32_1 = arith.constant 0 : i32
    return %c0_i32, %c0_i32_0 : i32, i32
  }
  func.func @transform_5(%arg0: i32, %arg1: i32) -> (i32, i32) {
    %c0_i32 = arith.constant 0 : i32
    %c0_i32_0 = arith.constant 0 : i32
    return %arg0, %c0_i32 : i32, i32
  }
}

</mosaic_0001>

<llo_original>
// kernel: tpu_custom_call.1
$region0: #{tpu_custom_call.1}
  #allocation0 [shape = 'u32[]', space=smem, size = 0x4, offset = 0x4, fixed_abs, tag = 'smem constant byte address 0x4 - core index']
  #allocation1 [shape = 'u32[144,128]{1,0:T(1,128)}', space=vmem, size = 0x12000, scoped, tag = 'internal scratch']
  #allocation2 [shape = 'f32[2,256]{1,0:T(2,128)}', space=vmem, size = 0x800, scoped, tag = 'scratch operand']
  %s0 = inlined_call_operand.hbm [shape: f32[2,256,256], index: 0, kind: input, shape index: {}]
  %s1 = inlined_call_operand.hbm [shape: bf16[256,1280], index: 1, kind: input, shape index: {}]
  %s2 = inlined_call_operand.hbm [shape: f32[1,1280], index: 2, kind: input, shape index: {}]
  %s3 = inlined_call_operand.hbm [shape: bf16[1280,128], index: 3, kind: input, shape index: {}]
  %s4 = inlined_call_operand.vmem [shape: f32[1,128], index: 4, kind: input, shape index: {}]
  %s5 = inlined_call_operand.hbm [shape: f32[2,128], index: 5, kind: output, shape index: {}]
  %s6 = sld [smem:[#allocation0]]
  $region54: #{tpu_custom_call.1} parent=0
    _
  %s8 = ssub.s32 1, %s6
  %s9 = scalar_select 0, %s8, %s6
  $region1: #{tpu_custom_call.1} parent=0
    #allocation3 [shape = 'u8[524288]{0}', space=vmem, size = 0x80000, scoped, tag = 'input window, operand 0, single buffered']
    #allocation4 [shape = 's32[1]{0}', space=sflag, size = 0x4, scoped, tag = 'scoped memory for tpu_custom_call.1']
    #allocation5 [shape = 's32[1]{0}', space=sflag, size = 0x4, scoped, tag = 'scoped memory for tpu_custom_call.1']
    #allocation6 [shape = 'u8[655360]{0}', space=vmem, size = 0xa0000, scoped, tag = 'input window, operand 1, single buffered']
    #allocation7 [shape = 's32[1]{0}', space=sflag, size = 0x4, scoped, tag = 'scoped memory for tpu_custom_call.1']
    #allocation8 [shape = 'u8[5120]{0}', space=vmem, size = 0x1400, scoped, tag = 'input window, operand 2, single buffered']
    #allocation9 [shape = 'u8[327680]{0}', space=vmem, size = 0x50000, scoped, tag = 'input window, operand 3, single buffered']
    #allocation10 [shape = 's32[1]{0}', space=sflag, size = 0x4, scoped, tag = 'scoped memory for tpu_custom_call.1']
    #allocation11 [shape = 'u8[1024]{0}', space=vmem, size = 0x400, scoped, tag = 'output window, operand 0, single buffered']
    %10 = vsyncpa [#allocation4], 0
    %11 = vsyncpa [#allocation7], 0
    %12 = vsyncpa [#allocation10], 0
    %13 = vsyncpa [#allocation5], 0
    // Predicated region
    $region2: #{tpu_custom_call.1} parent=1 // pred_check
      _
    $region3: #{tpu_custom_call.1} parent=1 // pred_check_branch
      %15 = sbr.rel (0) target = $region5
    $region4: #{tpu_custom_call.1} parent=1 // pred_region
      %s17 = ssub.s32 16384, 16384
      %18 = vsyncadd [#allocation4], %s17
      %s19 = sshll.u32 [#allocation3], 4
      %s20 = int_to_ptr.vmem [resolvable:$true] %s19
      %25 = dma.hbm_to_vmem [thread:$0]  %s0, 16384, %s20, [#allocation4], 256, 256, 16
    $region5: #{tpu_custom_call.1} parent=1 // pred_fallthru
      _
    // Predicated region
    $region6: #{tpu_custom_call.1} parent=1 // pred_check
      _
    $region7: #{tpu_custom_call.1} parent=1 // pred_check_branch
      %27 = sbr.rel (0) target = $region9
    $region8: #{tpu_custom_call.1} parent=1 // pred_region
      %s29 = ssub.s32 20480, 20480
      %30 = vsyncadd [#allocation7], %s29
      %s31 = sshll.u32 [#allocation6], 4
      %s32 = int_to_ptr.vmem [resolvable:$true] %s31
      %37 = dma.hbm_to_vmem [thread:$0]  %s1, 20480, %s32, [#allocation7], 640, 640, 40
    $region9: #{tpu_custom_call.1} parent=1 // pred_fallthru
      _
    // Predicated region
    $region10: #{tpu_custom_call.1} parent=1 // pred_check
      _
    $region11: #{tpu_custom_call.1} parent=1 // pred_check_branch
      %39 = sbr.rel (0) target = $region13
    $region12: #{tpu_custom_call.1} parent=1 // pred_region
      %s41 = ssub.s32 160, 160
      %42 = vsyncadd [#allocation7], %s41
      %s44 = sshll.u32 [#allocation8], 4
      %s45 = int_to_ptr.vmem [resolvable:$true] %s44
      %47 = dma.hbm_to_vmem [thread:$0]  %s2, 160, %s45, [#allocation7]
    $region13: #{tpu_custom_call.1} parent=1 // pred_fallthru
      _
    // Predicated region
    $region14: #{tpu_custom_call.1} parent=1 // pred_check
      _
    $region15: #{tpu_custom_call.1} parent=1 // pred_check_branch
      %49 = sbr.rel (0) target = $region17
    $region16: #{tpu_custom_call.1} parent=1 // pred_region
      %s51 = ssub.s32 10240, 10240
      %52 = vsyncadd [#allocation10], %s51
      %s53 = sshll.u32 [#allocation9], 4
      %s54 = int_to_ptr.vmem [resolvable:$true] %s53
      %59 = dma.hbm_to_vmem [thread:$0]  %s3, 10240, %s54, [#allocation10], 64, 64, 4
    $region17: #{tpu_custom_call.1} parent=1 // pred_fallthru
      _
    // Predicated region
    $region18: #{tpu_custom_call.1} parent=1 // pred_check
      _
    $region19: #{tpu_custom_call.1} parent=1 // pred_check_branch
      %61 = sbr.rel (0) target = $region21
    $region20: #{tpu_custom_call.1} parent=1 // pred_region
      _
    $region21: #{tpu_custom_call.1} parent=1 // pred_fallthru
      _
    // Predicated region
    $region22: #{tpu_custom_call.1} parent=1 // pred_check
      _
    $region23: #{tpu_custom_call.1} parent=1 // pred_check_branch
      %63 = sbr.rel (0) target = $region25
    $region24: #{tpu_custom_call.1} parent=1 // pred_region
      %64 = dma.done [#allocation4], 16384
    $region25: #{tpu_custom_call.1} parent=1 // pred_fallthru
      _
    // Predicated region
    $region26: #{tpu_custom_call.1} parent=1 // pred_check
      _
    $region27: #{tpu_custom_call.1} parent=1 // pred_check_branch
      %66 = sbr.rel (0) target = $region29
    $region28: #{tpu_custom_call.1} parent=1 // pred_region
      %67 = dma.done [#allocation7], 20480
    $region29: #{tpu_custom_call.1} parent=1 // pred_fallthru
      _
    // Predicated region
    $region30: #{tpu_custom_call.1} parent=1 // pred_check
      _
    $region31: #{tpu_custom_call.1} parent=1 // pred_check_branch
      %69 = sbr.rel (0) target = $region33
    $region32: #{tpu_custom_call.1} parent=1 // pred_region
      %70 = dma.done [#allocation7], 160
    $region33: #{tpu_custom_call.1} parent=1 // pred_fallthru
      _
    // Predicated region
    $region34: #{tpu_custom_call.1} parent=1 // pred_check
      _
    $region35: #{tpu_custom_call.1} parent=1 // pred_check_branch
      %72 = sbr.rel (0) target = $region37
    $region36: #{tpu_custom_call.1} parent=1 // pred_region
      %73 = dma.done [#allocation10], 10240
    $region37: #{tpu_custom_call.1} parent=1 // pred_fallthru
      _
    %p75 = scmp.eq.s32.totalorder 0, 0
    // Predicated region
    $region38: #{tpu_custom_call.1} parent=1 // pred_check
      %p76 = pneg %p75
    $region39: #{tpu_custom_call.1} parent=1 // pred_check_branch
      %78 = sbr.rel (%p76) target = $region41
    $region40: #{tpu_custom_call.1} parent=1 // pred_region
      %79 = vst [vmem:[#allocation2] sm:$0xf] 0.0
    $region41: #{tpu_custom_call.1} parent=1 // pred_fallthru
      _
    %v80 = vld [vmem:[#allocation2] sm:$0xf]
    %v81 = vld [vmem:[#allocation3] sm:$0xff]
    %v82 = vld [vmem:[#allocation3 + $0x8] sm:$0xff]
    %v83 = vld [vmem:[#allocation3 + $0x10] sm:$0xff]
    %v84 = vld [vmem:[#allocation3 + $0x18] sm:$0xff]
    %v85 = vld [vmem:[#allocation3 + $0x20] sm:$0xff]
    %v86 = vld [vmem:[#allocation3 + $0x28] sm:$0xff]
    %v87 = vld [vmem:[#allocation3 + $0x30] sm:$0xff]
    %v88 = vld [vmem:[#allocation3 + $0x38] sm:$0xff]
    %v89 = vld [vmem:[#allocation3 + $0x40] sm:$0xff]
    %v90 = vld [vmem:[#allocation3 + $0x48] sm:$0xff]
    %v91 = vld [vmem:[#allocation3 + $0x50] sm:$0xff]
    %v92 = vld [vmem:[#allocation3 + $0x58] sm:$0xff]
    %v93 = vld [vmem:[#allocation3 + $0x60] sm:$0xff]
    %v94 = vld [vmem:[#allocation3 + $0x68] sm:$0xff]
    %v95 = vld [vmem:[#allocation3 + $0x70] sm:$0xff]
    %v96 = vld [vmem:[#allocation3 + $0x78] sm:$0xff]
    %v97 = vld [vmem:[#allocation3 + $0x80] sm:$0xff]
    %v98 = vld [vmem:[#allocation3 + $0x88] sm:$0xff]
    %v99 = vld [vmem:[#allocation3 + $0x90] sm:$0xff]
    %v100 = vld [vmem:[#allocation3 + $0x98] sm:$0xff]
    %v101 = vld [vmem:[#allocation3 + $0xa0] sm:$0xff]
    %v102 = vld [vmem:[#allocation3 + $0xa8] sm:$0xff]
    %v103 = vld [vmem:[#allocation3 + $0xb0] sm:$0xff]
    %v104 = vld [vmem:[#allocation3 + $0xb8] sm:$0xff]
    %v105 = vld [vmem:[#allocation3 + $0xc0] sm:$0xff]
    %v106 = vld [vmem:[#allocation3 + $0xc8] sm:$0xff]
    %v107 = vld [vmem:[#allocation3 + $0xd0] sm:$0xff]
    %v108 = vld [vmem:[#allocation3 + $0xd8] sm:$0xff]
    %v109 = vld [vmem:[#allocation3 + $0xe0] sm:$0xff]
    %v110 = vld [vmem:[#allocation3 + $0xe8] sm:$0xff]
    %v111 = vld [vmem:[#allocation3 + $0xf0] sm:$0xff]
    %v112 = vld [vmem:[#allocation3 + $0xf8] sm:$0xff]
    %v113 = vld [vmem:[#allocation3 + $0x100] sm:$0xff]
    %v114 = vld [vmem:[#allocation3 + $0x108] sm:$0xff]
    %v115 = vld [vmem:[#allocation3 + $0x110] sm:$0xff]
    %v116 = vld [vmem:[#allocation3 + $0x118] sm:$0xff]
    %v117 = vld [vmem:[#allocation3 + $0x120] sm:$0xff]
    %v118 = vld [vmem:[#allocation3 + $0x128] sm:$0xff]
    %v119 = vld [vmem:[#allocation3 + $0x130] sm:$0xff]
    %v120 = vld [vmem:[#allocation3 + $0x138] sm:$0xff]
    %v121 = vld [vmem:[#allocation3 + $0x140] sm:$0xff]
    %v122 = vld [vmem:[#allocation3 + $0x148] sm:$0xff]
    %v123 = vld [vmem:[#allocation3 + $0x150] sm:$0xff]
    %v124 = vld [vmem:[#allocation3 + $0x158] sm:$0xff]
    %v125 = vld [vmem:[#allocation3 + $0x160] sm:$0xff]
    %v126 = vld [vmem:[#allocation3 + $0x168] sm:$0xff]
    %v127 = vld [vmem:[#allocation3 + $0x170] sm:$0xff]
    %v128 = vld [vmem:[#allocation3 + $0x178] sm:$0xff]
    %v129 = vld [vmem:[#allocation3 + $0x180] sm:$0xff]
    %v130 = vld [vmem:[#allocation3 + $0x188] sm:$0xff]
    %v131 = vld [vmem:[#allocation3 + $0x190] sm:$0xff]
    %v132 = vld [vmem:[#allocation3 + $0x198] sm:$0xff]
    %v133 = vld [vmem:[#allocation3 + $0x1a0] sm:$0xff]
    %v134 = vld [vmem:[#allocation3 + $0x1a8] sm:$0xff]
    %v135 = vld [vmem:[#allocation3 + $0x1b0] sm:$0xff]
    %v136 = vld [vmem:[#allocation3 + $0x1b8] sm:$0xff]
    %v137 = vld [vmem:[#allocation3 + $0x1c0] sm:$0xff]
    %v138 = vld [vmem:[#allocation3 + $0x1c8] sm:$0xff]
    %v139 = vld [vmem:[#allocation3 + $0x1d0] sm:$0xff]
    %v140 = vld [vmem:[#allocation3 + $0x1d8] sm:$0xff]
    %v141 = vld [vmem:[#allocation3 + $0x1e0] sm:$0xff]
    %v142 = vld [vmem:[#allocation3 + $0x1e8] sm:$0xff]
    %v143 = vld [vmem:[#allocation3 + $0x1f0] sm:$0xff]
    %v144 = vld [vmem:[#allocation3 + $0x1f8] sm:$0xff]
    %v145 = vld [vmem:[#allocation3 + $0x200] sm:$0xff]
    %v146 = vld [vmem:[#allocation3 + $0x208] sm:$0xff]
    %v147 = vld [vmem:[#allocation3 + $0x210] sm:$0xff]
    %v148 = vld [vmem:[#allocation3 + $0x218] sm:$0xff]
    %v149 = vld [vmem:[#allocation3 + $0x220] sm:$0xff]
    %v150 = vld [vmem:[#allocation3 + $0x228] sm:$0xff]
    %v151 = vld [vmem:[#allocation3 + $0x230] sm:$0xff]
    %v152 = vld [vmem:[#allocation3 + $0x238] sm:$0xff]
    %v153 = vld [vmem:[#allocation3 + $0x240] sm:$0xff]
    %v154 = vld [vmem:[#allocation3 + $0x248] sm:$0xff]
    %v155 = vld [vmem:[#allocation3 + $0x250] sm:$0xff]
    %v156 = vld [vmem:[#allocation3 + $0x258] sm:$0xff]
    %v157 = vld [vmem:[#allocation3 + $0x260] sm:$0xff]
    %v158 = vld [vmem:[#allocation3 + $0x268] sm:$0xff]
    %v159 = vld [vmem:[#allocation3 + $0x270] sm:$0xff]
    %v160 = vld [vmem:[#allocation3 + $0x278] sm:$0xff]
    %v161 = vld [vmem:[#allocation3 + $0x280] sm:$0xff]
    %v162 = vld [vmem:[#allocation3 + $0x288] sm:$0xff]
    %v163 = vld [vmem:[#allocation3 + $0x290] sm:$0xff]
    %v164 = vld [vmem:[#allocation3 + $0x298] sm:$0xff]
    %v165 = vld [vmem:[#allocation3 + $0x2a0] sm:$0xff]
    %v166 = vld [vmem:[#allocation3 + $0x2a8] sm:$0xff]
    %v167 = vld [vmem:[#allocation3 + $0x2b0] sm:$0xff]
    %v168 = vld [vmem:[#allocation3 + $0x2b8] sm:$0xff]
    %v169 = vld [vmem:[#allocation3 + $0x2c0] sm:$0xff]
    %v170 = vld [vmem:[#allocation3 + $0x2c8] sm:$0xff]
    %v171 = vld [vmem:[#allocation3 + $0x2d0] sm:$0xff]
    %v172 = vld [vmem:[#allocation3 + $0x2d8] sm:$0xff]
    %v173 = vld [vmem:[#allocation3 + $0x2e0] sm:$0xff]
    %v174 = vld [vmem:[#allocation3 + $0x2e8] sm:$0xff]
    %v175 = vld [vmem:[#allocation3 + $0x2f0] sm:$0xff]
    %v176 = vld [vmem:[#allocation3 + $0x2f8] sm:$0xff]
    %v177 = vld [vmem:[#allocation3 + $0x300] sm:$0xff]
    %v178 = vld [vmem:[#allocation3 + $0x308] sm:$0xff]
    %v179 = vld [vmem:[#allocation3 + $0x310] sm:$0xff]
    %v180 = vld [vmem:[#allocation3 + $0x318] sm:$0xff]
    %v181 = vld [vmem:[#allocation3 + $0x320] sm:$0xff]
    %v182 = vld [vmem:[#allocation3 + $0x328] sm:$0xff]
    %v183 = vld [vmem:[#allocation3 + $0x330] sm:$0xff]
    %v184 = vld [vmem:[#allocation3 + $0x338] sm:$0xff]
    %v185 = vld [vmem:[#allocation3 + $0x340] sm:$0xff]
    %v186 = vld [vmem:[#allocation3 + $0x348] sm:$0xff]
    %v187 = vld [vmem:[#allocation3 + $0x350] sm:$0xff]
    %v188 = vld [vmem:[#allocation3 + $0x358] sm:$0xff]
    %v189 = vld [vmem:[#allocation3 + $0x360] sm:$0xff]
    %v190 = vld [vmem:[#allocation3 + $0x368] sm:$0xff]
    %v191 = vld [vmem:[#allocation3 + $0x370] sm:$0xff]
    %v192 = vld [vmem:[#allocation3 + $0x378] sm:$0xff]
    %v193 = vld [vmem:[#allocation3 + $0x380] sm:$0xff]
    %v194 = vld [vmem:[#allocation3 + $0x388] sm:$0xff]
    %v195 = vld [vmem:[#allocation3 + $0x390] sm:$0xff]
    %v196 = vld [vmem:[#allocation3 + $0x398] sm:$0xff]
    %v197 = vld [vmem:[#allocation3 + $0x3a0] sm:$0xff]
    %v198 = vld [vmem:[#allocation3 + $0x3a8] sm:$0xff]
    %v199 = vld [vmem:[#allocation3 + $0x3b0] sm:$0xff]
    %v200 = vld [vmem:[#allocation3 + $0x3b8] sm:$0xff]
    %v201 = vld [vmem:[#allocation3 + $0x3c0] sm:$0xff]
    %v202 = vld [vmem:[#allocation3 + $0x3c8] sm:$0xff]
    %v203 = vld [vmem:[#allocation3 + $0x3d0] sm:$0xff]
    %v204 = vld [vmem:[#allocation3 + $0x3d8] sm:$0xff]
    %v205 = vld [vmem:[#allocation3 + $0x3e0] sm:$0xff]
    %v206 = vld [vmem:[#allocation3 + $0x3e8] sm:$0xff]
    %v207 = vld [vmem:[#allocation3 + $0x3f0] sm:$0xff]
    %v208 = vld [vmem:[#allocation3 + $0x3f8] sm:$0xff]
    %v209 = vadd.f32 %v81, %v82
    %210 = vadd.xlane.f32.xlu0 %v209
    %v211 = vpop.xlane.xlu0 %210
    %v212 = vadd.f32 %v83, %v84
    %213 = vadd.xlane.f32.xlu0 %v212
    %v214 = vpop.xlane.xlu0 %213
    %v215 = vadd.f32 %v85, %v86
    %216 = vadd.xlane.f32.xlu0 %v215
    %v217 = vpop.xlane.xlu0 %216
    %v218 = vadd.f32 %v87, %v88
    %219 = vadd.xlane.f32.xlu0 %v218
    %v220 = vpop.xlane.xlu0 %219
    %v221 = vadd.f32 %v89, %v90
    %222 = vadd.xlane.f32.xlu0 %v221
    %v223 = vpop.xlane.xlu0 %222
    %v224 = vadd.f32 %v91, %v92
    %225 = vadd.xlane.f32.xlu0 %v224
    %v226 = vpop.xlane.xlu0 %225
    %v227 = vadd.f32 %v93, %v94
    %228 = vadd.xlane.f32.xlu0 %v227
    %v229 = vpop.xlane.xlu0 %228
    %v230 = vadd.f32 %v95, %v96
    %231 = vadd.xlane.f32.xlu0 %v230
    %v232 = vpop.xlane.xlu0 %231
    %v233 = vadd.f32 %v97, %v98
    %234 = vadd.xlane.f32.xlu0 %v233
    %v235 = vpop.xlane.xlu0 %234
    %v236 = vadd.f32 %v99, %v100
    %237 = vadd.xlane.f32.xlu0 %v236
    %v238 = vpop.xlane.xlu0 %237
    %v239 = vadd.f32 %v101, %v102
    %240 = vadd.xlane.f32.xlu0 %v239
    %v241 = vpop.xlane.xlu0 %240
    %v242 = vadd.f32 %v103, %v104
    %243 = vadd.xlane.f32.xlu0 %v242
    %v244 = vpop.xlane.xlu0 %243
    %v245 = vadd.f32 %v105, %v106
    %246 = vadd.xlane.f32.xlu0 %v245
    %v247 = vpop.xlane.xlu0 %246
    %v248 = vadd.f32 %v107, %v108
    %249 = vadd.xlane.f32.xlu0 %v248
    %v250 = vpop.xlane.xlu0 %249
    %v251 = vadd.f32 %v109, %v110
    %252 = vadd.xlane.f32.xlu0 %v251
    %v253 = vpop.xlane.xlu0 %252
    %v254 = vadd.f32 %v111, %v112
    %255 = vadd.xlane.f32.xlu0 %v254
    %v256 = vpop.xlane.xlu0 %255
    %v257 = vadd.f32 %v113, %v114
    %258 = vadd.xlane.f32.xlu0 %v257
    %v259 = vpop.xlane.xlu0 %258
    %v260 = vadd.f32 %v115, %v116
    %261 = vadd.xlane.f32.xlu0 %v260
    %v262 = vpop.xlane.xlu0 %261
    %v263 = vadd.f32 %v117, %v118
    %264 = vadd.xlane.f32.xlu0 %v263
    %v265 = vpop.xlane.xlu0 %264
    %v266 = vadd.f32 %v119, %v120
    %267 = vadd.xlane.f32.xlu0 %v266
    %v268 = vpop.xlane.xlu0 %267
    %v269 = vadd.f32 %v121, %v122
    %270 = vadd.xlane.f32.xlu0 %v269
    %v271 = vpop.xlane.xlu0 %270
    %v272 = vadd.f32 %v123, %v124
    %273 = vadd.xlane.f32.xlu0 %v272
    %v274 = vpop.xlane.xlu0 %273
    %v275 = vadd.f32 %v125, %v126
    %276 = vadd.xlane.f32.xlu0 %v275
    %v277 = vpop.xlane.xlu0 %276
    %v278 = vadd.f32 %v127, %v128
    %279 = vadd.xlane.f32.xlu0 %v278
    %v280 = vpop.xlane.xlu0 %279
    %v281 = vadd.f32 %v129, %v130
    %282 = vadd.xlane.f32.xlu0 %v281
    %v283 = vpop.xlane.xlu0 %282
    %v284 = vadd.f32 %v131, %v132
    %285 = vadd.xlane.f32.xlu0 %v284
    %v286 = vpop.xlane.xlu0 %285
    %v287 = vadd.f32 %v133, %v134
    %288 = vadd.xlane.f32.xlu0 %v287
    %v289 = vpop.xlane.xlu0 %288
    %v290 = vadd.f32 %v135, %v136
    %291 = vadd.xlane.f32.xlu0 %v290
    %v292 = vpop.xlane.xlu0 %291
    %v293 = vadd.f32 %v137, %v138
    %294 = vadd.xlane.f32.xlu0 %v293
    %v295 = vpop.xlane.xlu0 %294
    %v296 = vadd.f32 %v139, %v140
    %297 = vadd.xlane.f32.xlu0 %v296
    %v298 = vpop.xlane.xlu0 %297
    %v299 = vadd.f32 %v141, %v142
    %300 = vadd.xlane.f32.xlu0 %v299
    %v301 = vpop.xlane.xlu0 %300
    %v302 = vadd.f32 %v143, %v144
    %303 = vadd.xlane.f32.xlu0 %v302
    %v304 = vpop.xlane.xlu0 %303
    %v305 = vadd.f32 %v145, %v146
    %306 = vadd.xlane.f32.xlu0 %v305
    %v307 = vpop.xlane.xlu0 %306
    %v308 = vadd.f32 %v147, %v148
    %309 = vadd.xlane.f32.xlu0 %v308
    %v310 = vpop.xlane.xlu0 %309
    %v311 = vadd.f32 %v149, %v150
    %312 = vadd.xlane.f32.xlu0 %v311
    %v313 = vpop.xlane.xlu0 %312
    %v314 = vadd.f32 %v151, %v152
    %315 = vadd.xlane.f32.xlu0 %v314
    %v316 = vpop.xlane.xlu0 %315
    %v317 = vadd.f32 %v153, %v154
    %318 = vadd.xlane.f32.xlu0 %v317
    %v319 = vpop.xlane.xlu0 %318
    %v320 = vadd.f32 %v155, %v156
    %321 = vadd.xlane.f32.xlu0 %v320
    %v322 = vpop.xlane.xlu0 %321
    %v323 = vadd.f32 %v157, %v158
    %324 = vadd.xlane.f32.xlu0 %v323
    %v325 = vpop.xlane.xlu0 %324
    %v326 = vadd.f32 %v159, %v160
    %327 = vadd.xlane.f32.xlu0 %v326
    %v328 = vpop.xlane.xlu0 %327
    %v329 = vadd.f32 %v161, %v162
    %330 = vadd.xlane.f32.xlu0 %v329
    %v331 = vpop.xlane.xlu0 %330
    %v332 = vadd.f32 %v163, %v164
    %333 = vadd.xlane.f32.xlu0 %v332
    %v334 = vpop.xlane.xlu0 %333
    %v335 = vadd.f32 %v165, %v166
    %336 = vadd.xlane.f32.xlu0 %v335
    %v337 = vpop.xlane.xlu0 %336
    %v338 = vadd.f32 %v167, %v168
    %339 = vadd.xlane.f32.xlu0 %v338
    %v340 = vpop.xlane.xlu0 %339
    %v341 = vadd.f32 %v169, %v170
    %342 = vadd.xlane.f32.xlu0 %v341
    %v343 = vpop.xlane.xlu0 %342
    %v344 = vadd.f32 %v171, %v172
    %345 = vadd.xlane.f32.xlu0 %v344
    %v346 = vpop.xlane.xlu0 %345
    %v347 = vadd.f32 %v173, %v174
    %348 = vadd.xlane.f32.xlu0 %v347
    %v349 = vpop.xlane.xlu0 %348
    %v350 = vadd.f32 %v175, %v176
    %351 = vadd.xlane.f32.xlu0 %v350
    %v352 = vpop.xlane.xlu0 %351
    %v353 = vadd.f32 %v177, %v178
    %354 = vadd.xlane.f32.xlu0 %v353
    %v355 = vpop.xlane.xlu0 %354
    %v356 = vadd.f32 %v179, %v180
    %357 = vadd.xlane.f32.xlu0 %v356
    %v358 = vpop.xlane.xlu0 %357
    %v359 = vadd.f32 %v181, %v182
    %360 = vadd.xlane.f32.xlu0 %v359
    %v361 = vpop.xlane.xlu0 %360
    %v362 = vadd.f32 %v183, %v184
    %363 = vadd.xlane.f32.xlu0 %v362
    %v364 = vpop.xlane.xlu0 %363
    %v365 = vadd.f32 %v185, %v186
    %366 = vadd.xlane.f32.xlu0 %v365
    %v367 = vpop.xlane.xlu0 %366
    %v368 = vadd.f32 %v187, %v188
    %369 = vadd.xlane.f32.xlu0 %v368
    %v370 = vpop.xlane.xlu0 %369
    %v371 = vadd.f32 %v189, %v190
    %372 = vadd.xlane.f32.xlu0 %v371
    %v373 = vpop.xlane.xlu0 %372
    %v374 = vadd.f32 %v191, %v192
    %375 = vadd.xlane.f32.xlu0 %v374
    %v376 = vpop.xlane.xlu0 %375
    %v377 = vadd.f32 %v193, %v194
    %378 = vadd.xlane.f32.xlu0 %v377
    %v379 = vpop.xlane.xlu0 %378
    %v380 = vadd.f32 %v195, %v196
    %381 = vadd.xlane.f32.xlu0 %v380
    %v382 = vpop.xlane.xlu0 %381
    %v383 = vadd.f32 %v197, %v198
    %384 = vadd.xlane.f32.xlu0 %v383
    %v385 = vpop.xlane.xlu0 %384
    %v386 = vadd.f32 %v199, %v200
    %387 = vadd.xlane.f32.xlu0 %v386
    %v388 = vpop.xlane.xlu0 %387
    %v389 = vadd.f32 %v201, %v202
    %390 = vadd.xlane.f32.xlu0 %v389
    %v391 = vpop.xlane.xlu0 %390
    %v392 = vadd.f32 %v203, %v204
    %393 = vadd.xlane.f32.xlu0 %v392
    %v394 = vpop.xlane.xlu0 %393
    %v395 = vadd.f32 %v205, %v206
    %396 = vadd.xlane.f32.xlu0 %v395
    %v397 = vpop.xlane.xlu0 %396
    %v398 = vadd.f32 %v207, %v208
    %399 = vadd.xlane.f32.xlu0 %v398
    %v400 = vpop.xlane.xlu0 %399
    %v466 = vunpack.c.l.s4 269488144
    %v467 = vunpack.c.0.s8 %v466
    %v468 = vlaneseq
    %v469 = vshrl.u32 %v468, 7
    %v470 = vsub.s32 %v467, %v469
    %v471 = vrot.slane %v211, %v470
    %v473 = vunpack.c.l.s4 842150450
    %v474 = vunpack.c.0.s8 %v473
    %v475 = vlaneseq
    %v476 = vshrl.u32 %v475, 7
    %v477 = vsub.s32 %v474, %v476
    %v478 = vrot.slane %v211, %v477
    %v480 = vunpack.c.l.s4 1414812756
    %v481 = vunpack.c.0.s8 %v480
    %v482 = vlaneseq
    %v483 = vshrl.u32 %v482, 7
    %v484 = vsub.s32 %v481, %v483
    %v485 = vrot.slane %v211, %v484
    %v487 = vunpack.c.l.s4 1987475062
    %v488 = vunpack.c.0.s8 %v487
    %v489 = vlaneseq
    %v490 = vshrl.u32 %v489, 7
    %v491 = vsub.s32 %v488, %v490
    %v492 = vrot.slane %v211, %v491
    %v494 = vunpack.c.l.s4 269488144
    %v495 = vunpack.c.0.s8 %v494
    %v496 = vlaneseq
    %v497 = vshrl.u32 %v496, 7
    %v498 = vsub.s32 %v495, %v497
    %v499 = vrot.slane %v214, %v498
    %v501 = vunpack.c.l.s4 842150450
    %v502 = vunpack.c.0.s8 %v501
    %v503 = vlaneseq
    %v504 = vshrl.u32 %v503, 7
    %v505 = vsub.s32 %v502, %v504
    %v506 = vrot.slane %v214, %v505
    %v508 = vunpack.c.l.s4 1414812756
    %v509 = vunpack.c.0.s8 %v508
    %v510 = vlaneseq
    %v511 = vshrl.u32 %v510, 7
    %v512 = vsub.s32 %v509, %v511
    %v513 = vrot.slane %v214, %v512
    %v515 = vunpack.c.l.s4 1987475062
    %v516 = vunpack.c.0.s8 %v515
    %v517 = vlaneseq
    %v518 = vshrl.u32 %v517, 7
    %v519 = vsub.s32 %v516, %v518
    %v520 = vrot.slane %v214, %v519
    %v522 = vunpack.c.l.s4 269488144
    %v523 = vunpack.c.0.s8 %v522
    %v524 = vlaneseq
    %v525 = vshrl.u32 %v524, 7
    %v526 = vsub.s32 %v523, %v525
    %v527 = vrot.slane %v217, %v526
    %v529 = vunpack.c.l.s4 842150450
    %v530 = vunpack.c.0.s8 %v529
    %v531 = vlaneseq
    %v532 = vshrl.u32 %v531, 7
    %v533 = vsub.s32 %v530, %v532
    %v534 = vrot.slane %v217, %v533
    %v536 = vunpack.c.l.s4 1414812756
    %v537 = vunpack.c.0.s8 %v536
    %v538 = vlaneseq
    %v539 = vshrl.u32 %v538, 7
    %v540 = vsub.s32 %v537, %v539
    %v541 = vrot.slane %v217, %v540
    %v543 = vunpack.c.l.s4 1987475062
    %v544 = vunpack.c.0.s8 %v543
    %v545 = vlaneseq
    %v546 = vshrl.u32 %v545, 7
    %v547 = vsub.s32 %v544, %v546
    %v548 = vrot.slane %v217, %v547
    %v550 = vunpack.c.l.s4 269488144
    %v551 = vunpack.c.0.s8 %v550
    %v552 = vlaneseq
    %v553 = vshrl.u32 %v552, 7
    %v554 = vsub.s32 %v551, %v553
    %v555 = vrot.slane %v220, %v554
    %v557 = vunpack.c.l.s4 842150450
    %v558 = vunpack.c.0.s8 %v557
    %v559 = vlaneseq
    %v560 = vshrl.u32 %v559, 7
    %v561 = vsub.s32 %v558, %v560
    %v562 = vrot.slane %v220, %v561
    %v564 = vunpack.c.l.s4 1414812756
    %v565 = vunpack.c.0.s8 %v564
    %v566 = vlaneseq
    %v567 = vshrl.u32 %v566, 7
    %v568 = vsub.s32 %v565, %v567
    %v569 = vrot.slane %v220, %v568
    %v571 = vunpack.c.l.s4 1987475062
    %v572 = vunpack.c.0.s8 %v571
    %v573 = vlaneseq
    %v574 = vshrl.u32 %v573, 7
    %v575 = vsub.s32 %v572, %v574
    %v576 = vrot.slane %v220, %v575
    %v578 = vunpack.c.l.s4 269488144
    %v579 = vunpack.c.0.s8 %v578
    %v580 = vlaneseq
    %v581 = vshrl.u32 %v580, 7
    %v582 = vsub.s32 %v579, %v581
    %v583 = vrot.slane %v223, %v582
    %v585 = vunpack.c.l.s4 842150450
    %v586 = vunpack.c.0.s8 %v585
    %v587 = vlaneseq
    %v588 = vshrl.u32 %v587, 7
    %v589 = vsub.s32 %v586, %v588
    %v590 = vrot.slane %v223, %v589
    %v592 = vunpack.c.l.s4 1414812756
    %v593 = vunpack.c.0.s8 %v592
    %v594 = vlaneseq
    %v595 = vshrl.u32 %v594, 7
    %v596 = vsub.s32 %v593, %v595
    %v597 = vrot.slane %v223, %v596
    %v599 = vunpack.c.l.s4 1987475062
    %v600 = vunpack.c.0.s8 %v599
    %v601 = vlaneseq
    %v602 = vshrl.u32 %v601, 7
    %v603 = vsub.s32 %v600, %v602
    %v604 = vrot.slane %v223, %v603
    %v606 = vunpack.c.l.s4 269488144
    %v607 = vunpack.c.0.s8 %v606
    %v608 = vlaneseq
    %v609 = vshrl.u32 %v608, 7
    %v610 = vsub.s32 %v607, %v609
    %v611 = vrot.slane %v226, %v610
    %v613 = vunpack.c.l.s4 842150450
    %v614 = vunpack.c.0.s8 %v613
    %v615 = vlaneseq
    %v616 = vshrl.u32 %v615, 7
    %v617 = vsub.s32 %v614, %v616
    %v618 = vrot.slane %v226, %v617
    %v620 = vunpack.c.l.s4 1414812756
    %v621 = vunpack.c.0.s8 %v620
    %v622 = vlaneseq
    %v623 = vshrl.u32 %v622, 7
    %v624 = vsub.s32 %v621, %v623
    %v625 = vrot.slane %v226, %v624
    %v627 = vunpack.c.l.s4 1987475062
    %v628 = vunpack.c.0.s8 %v627
    %v629 = vlaneseq
    %v630 = vshrl.u32 %v629, 7
    %v631 = vsub.s32 %v628, %v630
    %v632 = vrot.slane %v226, %v631
    %v634 = vunpack.c.l.s4 269488144
    %v635 = vunpack.c.0.s8 %v634
    %v636 = vlaneseq
    %v637 = vshrl.u32 %v636, 7
    %v638 = vsub.s32 %v635, %v637
    %v639 = vrot.slane %v229, %v638
    %v641 = vunpack.c.l.s4 842150450
    %v642 = vunpack.c.0.s8 %v641
    %v643 = vlaneseq
    %v644 = vshrl.u32 %v643, 7
    %v645 = vsub.s32 %v642, %v644
    %v646 = vrot.slane %v229, %v645
    %v648 = vunpack.c.l.s4 1414812756
    %v649 = vunpack.c.0.s8 %v648
    %v650 = vlaneseq
    %v651 = vshrl.u32 %v650, 7
    %v652 = vsub.s32 %v649, %v651
    %v653 = vrot.slane %v229, %v652
    %v655 = vunpack.c.l.s4 1987475062
    %v656 = vunpack.c.0.s8 %v655
    %v657 = vlaneseq
    %v658 = vshrl.u32 %v657, 7
    %v659 = vsub.s32 %v656, %v658
    %v660 = vrot.slane %v229, %v659
    %v662 = vunpack.c.l.s4 269488144
    %v663 = vunpack.c.0.s8 %v662
    %v664 = vlaneseq
    %v665 = vshrl.u32 %v664, 7
    %v666 = vsub.s32 %v663, %v665
    %v667 = vrot.slane %v232, %v666
    %v669 = vunpack.c.l.s4 842150450
    %v670 = vunpack.c.0.s8 %v669
    %v671 = vlaneseq
    %v672 = vshrl.u32 %v671, 7
    %v673 = vsub.s32 %v670, %v672
    %v674 = vrot.slane %v232, %v673
    %v676 = vunpack.c.l.s4 1414812756
    %v677 = vunpack.c.0.s8 %v676
    %v678 = vlaneseq
    %v679 = vshrl.u32 %v678, 7
    %v680 = vsub.s32 %v677, %v679
    %v681 = vrot.slane %v232, %v680
    %v683 = vunpack.c.l.s4 1987475062
    %v684 = vunpack.c.0.s8 %v683
    %v685 = vlaneseq
    %v686 = vshrl.u32 %v685, 7
    %v687 = vsub.s32 %v684, %v686
    %v688 = vrot.slane %v232, %v687
    %v690 = vunpack.c.l.s4 269488144
    %v691 = vunpack.c.0.s8 %v690
    %v692 = vlaneseq
    %v693 = vshrl.u32 %v692, 7
    %v694 = vsub.s32 %v691, %v693
    %v695 = vrot.slane %v235, %v694
    %v697 = vunpack.c.l.s4 842150450
    %v698 = vunpack.c.0.s8 %v697
    %v699 = vlaneseq
    %v700 = vshrl.u32 %v699, 7
    %v701 = vsub.s32 %v698, %v700
    %v702 = vrot.slane %v235, %v701
    %v704 = vunpack.c.l.s4 1414812756
    %v705 = vunpack.c.0.s8 %v704
    %v706 = vlaneseq
    %v707 = vshrl.u32 %v706, 7
    %v708 = vsub.s32 %v705, %v707
    %v709 = vrot.slane %v235, %v708
    %v711 = vunpack.c.l.s4 1987475062
    %v712 = vunpack.c.0.s8 %v711
    %v713 = vlaneseq
    %v714 = vshrl.u32 %v713, 7
    %v715 = vsub.s32 %v712, %v714
    %v716 = vrot.slane %v235, %v715
    %v718 = vunpack.c.l.s4 269488144
    %v719 = vunpack.c.0.s8 %v718
    %v720 = vlaneseq
    %v721 = vshrl.u32 %v720, 7
    %v722 = vsub.s32 %v719, %v721
    %v723 = vrot.slane %v238, %v722
    %v725 = vunpack.c.l.s4 842150450
    %v726 = vunpack.c.0.s8 %v725
    %v727 = vlaneseq
    %v728 = vshrl.u32 %v727, 7
    %v729 = vsub.s32 %v726, %v728
    %v730 = vrot.slane %v238, %v729
    %v732 = vunpack.c.l.s4 1414812756
    %v733 = vunpack.c.0.s8 %v732
    %v734 = vlaneseq
    %v735 = vshrl.u32 %v734, 7
    %v736 = vsub.s32 %v733, %v735
    %v737 = vrot.slane %v238, %v736
    %v739 = vunpack.c.l.s4 1987475062
    %v740 = vunpack.c.0.s8 %v739
    %v741 = vlaneseq
    %v742 = vshrl.u32 %v741, 7
    %v743 = vsub.s32 %v740, %v742
    %v744 = vrot.slane %v238, %v743
    %v746 = vunpack.c.l.s4 269488144
    %v747 = vunpack.c.0.s8 %v746
    %v748 = vlaneseq
    %v749 = vshrl.u32 %v748, 7
    %v750 = vsub.s32 %v747, %v749
    %v751 = vrot.slane %v241, %v750
    %v753 = vunpack.c.l.s4 842150450
    %v754 = vunpack.c.0.s8 %v753
    %v755 = vlaneseq
    %v756 = vshrl.u32 %v755, 7
    %v757 = vsub.s32 %v754, %v756
    %v758 = vrot.slane %v241, %v757
    %v760 = vunpack.c.l.s4 1414812756
    %v761 = vunpack.c.0.s8 %v760
    %v762 = vlaneseq
    %v763 = vshrl.u32 %v762, 7
    %v764 = vsub.s32 %v761, %v763
    %v765 = vrot.slane %v241, %v764
    %v767 = vunpack.c.l.s4 1987475062
    %v768 = vunpack.c.0.s8 %v767
    %v769 = vlaneseq
    %v770 = vshrl.u32 %v769, 7
    %v771 = vsub.s32 %v768, %v770
    %v772 = vrot.slane %v241, %v771
    %v774 = vunpack.c.l.s4 269488144
    %v775 = vunpack.c.0.s8 %v774
    %v776 = vlaneseq
    %v777 = vshrl.u32 %v776, 7
    %v778 = vsub.s32 %v775, %v777
    %v779 = vrot.slane %v244, %v778
    %v781 = vunpack.c.l.s4 842150450
    %v782 = vunpack.c.0.s8 %v781
    %v783 = vlaneseq
    %v784 = vshrl.u32 %v783, 7
    %v785 = vsub.s32 %v782, %v784
    %v786 = vrot.slane %v244, %v785
    %v788 = vunpack.c.l.s4 1414812756
    %v789 = vunpack.c.0.s8 %v788
    %v790 = vlaneseq
    %v791 = vshrl.u32 %v790, 7
    %v792 = vsub.s32 %v789, %v791
    %v793 = vrot.slane %v244, %v792
    %v795 = vunpack.c.l.s4 1987475062
    %v796 = vunpack.c.0.s8 %v795
    %v797 = vlaneseq
    %v798 = vshrl.u32 %v797, 7
    %v799 = vsub.s32 %v796, %v798
    %v800 = vrot.slane %v244, %v799
    %v802 = vunpack.c.l.s4 269488144
    %v803 = vunpack.c.0.s8 %v802
    %v804 = vlaneseq
    %v805 = vshrl.u32 %v804, 7
    %v806 = vsub.s32 %v803, %v805
    %v807 = vrot.slane %v247, %v806
    %v809 = vunpack.c.l.s4 842150450
    %v810 = vunpack.c.0.s8 %v809
    %v811 = vlaneseq
    %v812 = vshrl.u32 %v811, 7
    %v813 = vsub.s32 %v810, %v812
    %v814 = vrot.slane %v247, %v813
    %v816 = vunpack.c.l.s4 1414812756
    %v817 = vunpack.c.0.s8 %v816
    %v818 = vlaneseq
    %v819 = vshrl.u32 %v818, 7
    %v820 = vsub.s32 %v817, %v819
    %v821 = vrot.slane %v247, %v820
    %v823 = vunpack.c.l.s4 1987475062
    %v824 = vunpack.c.0.s8 %v823
    %v825 = vlaneseq
    %v826 = vshrl.u32 %v825, 7
    %v827 = vsub.s32 %v824, %v826
    %v828 = vrot.slane %v247, %v827
    %v830 = vunpack.c.l.s4 269488144
    %v831 = vunpack.c.0.s8 %v830
    %v832 = vlaneseq
    %v833 = vshrl.u32 %v832, 7
    %v834 = vsub.s32 %v831, %v833
    %v835 = vrot.slane %v250, %v834
    %v837 = vunpack.c.l.s4 842150450
    %v838 = vunpack.c.0.s8 %v837
    %v839 = vlaneseq
    %v840 = vshrl.u32 %v839, 7
    %v841 = vsub.s32 %v838, %v840
    %v842 = vrot.slane %v250, %v841
    %v844 = vunpack.c.l.s4 1414812756
    %v845 = vunpack.c.0.s8 %v844
    %v846 = vlaneseq
    %v847 = vshrl.u32 %v846, 7
    %v848 = vsub.s32 %v845, %v847
    %v849 = vrot.slane %v250, %v848
    %v851 = vunpack.c.l.s4 1987475062
    %v852 = vunpack.c.0.s8 %v851
    %v853 = vlaneseq
    %v854 = vshrl.u32 %v853, 7
    %v855 = vsub.s32 %v852, %v854
    %v856 = vrot.slane %v250, %v855
    %v858 = vunpack.c.l.s4 269488144
    %v859 = vunpack.c.0.s8 %v858
    %v860 = vlaneseq
    %v861 = vshrl.u32 %v860, 7
    %v862 = vsub.s32 %v859, %v861
    %v863 = vrot.slane %v253, %v862
    %v865 = vunpack.c.l.s4 842150450
    %v866 = vunpack.c.0.s8 %v865
    %v867 = vlaneseq
    %v868 = vshrl.u32 %v867, 7
    %v869 = vsub.s32 %v866, %v868
    %v870 = vrot.slane %v253, %v869
    %v872 = vunpack.c.l.s4 1414812756
    %v873 = vunpack.c.0.s8 %v872
    %v874 = vlaneseq
    %v875 = vshrl.u32 %v874, 7
    %v876 = vsub.s32 %v873, %v875
    %v877 = vrot.slane %v253, %v876
    %v879 = vunpack.c.l.s4 1987475062
    %v880 = vunpack.c.0.s8 %v879
    %v881 = vlaneseq
    %v882 = vshrl.u32 %v881, 7
    %v883 = vsub.s32 %v880, %v882
    %v884 = vrot.slane %v253, %v883
    %v886 = vunpack.c.l.s4 269488144
    %v887 = vunpack.c.0.s8 %v886
    %v888 = vlaneseq
    %v889 = vshrl.u32 %v888, 7
    %v890 = vsub.s32 %v887, %v889
    %v891 = vrot.slane %v256, %v890
    %v893 = vunpack.c.l.s4 842150450
    %v894 = vunpack.c.0.s8 %v893
    %v895 = vlaneseq
    %v896 = vshrl.u32 %v895, 7
    %v897 = vsub.s32 %v894, %v896
    %v898 = vrot.slane %v256, %v897
    %v900 = vunpack.c.l.s4 1414812756
    %v901 = vunpack.c.0.s8 %v900
    %v902 = vlaneseq
    %v903 = vshrl.u32 %v902, 7
    %v904 = vsub.s32 %v901, %v903
    %v905 = vrot.slane %v256, %v904
    %v907 = vunpack.c.l.s4 1987475062
    %v908 = vunpack.c.0.s8 %v907
    %v909 = vlaneseq
    %v910 = vshrl.u32 %v909, 7
    %v911 = vsub.s32 %v908, %v910
    %v912 = vrot.slane %v256, %v911
    %v914 = vunpack.c.l.s4 269488144
    %v915 = vunpack.c.0.s8 %v914
    %v916 = vlaneseq
    %v917 = vshrl.u32 %v916, 7
    %v918 = vsub.s32 %v915, %v917
    %v919 = vrot.slane %v259, %v918
    %v921 = vunpack.c.l.s4 842150450
    %v922 = vunpack.c.0.s8 %v921
    %v923 = vlaneseq
    %v924 = vshrl.u32 %v923, 7
    %v925 = vsub.s32 %v922, %v924
    %v926 = vrot.slane %v259, %v925
    %v928 = vunpack.c.l.s4 1414812756
    %v929 = vunpack.c.0.s8 %v928
    %v930 = vlaneseq
    %v931 = vshrl.u32 %v930, 7
    %v932 = vsub.s32 %v929, %v931
    %v933 = vrot.slane %v259, %v932
    %v935 = vunpack.c.l.s4 1987475062
    %v936 = vunpack.c.0.s8 %v935
    %v937 = vlaneseq
    %v938 = vshrl.u32 %v937, 7
    %v939 = vsub.s32 %v936, %v938
    %v940 = vrot.slane %v259, %v939
    %v942 = vunpack.c.l.s4 269488144
    %v943 = vunpack.c.0.s8 %v942
    %v944 = vlaneseq
    %v945 = vshrl.u32 %v944, 7
    %v946 = vsub.s32 %v943, %v945
    %v947 = vrot.slane %v262, %v946
    %v949 = vunpack.c.l.s4 842150450
    %v950 = vunpack.c.0.s8 %v949
    %v951 = vlaneseq
    %v952 = vshrl.u32 %v951, 7
    %v953 = vsub.s32 %v950, %v952
    %v954 = vrot.slane %v262, %v953
    %v956 = vunpack.c.l.s4 1414812756
    %v957 = vunpack.c.0.s8 %v956
    %v958 = vlaneseq
    %v959 = vshrl.u32 %v958, 7
    %v960 = vsub.s32 %v957, %v959
    %v961 = vrot.slane %v262, %v960
    %v963 = vunpack.c.l.s4 1987475062
    %v964 = vunpack.c.0.s8 %v963
    %v965 = vlaneseq
    %v966 = vshrl.u32 %v965, 7
    %v967 = vsub.s32 %v964, %v966
    %v968 = vrot.slane %v262, %v967
    %v970 = vunpack.c.l.s4 269488144
    %v971 = vunpack.c.0.s8 %v970
    %v972 = vlaneseq
    %v973 = vshrl.u32 %v972, 7
    %v974 = vsub.s32 %v971, %v973
    %v975 = vrot.slane %v265, %v974
    %v977 = vunpack.c.l.s4 842150450
    %v978 = vunpack.c.0.s8 %v977
    %v979 = vlaneseq
    %v980 = vshrl.u32 %v979, 7
    %v981 = vsub.s32 %v978, %v980
    %v982 = vrot.slane %v265, %v981
    %v984 = vunpack.c.l.s4 1414812756
    %v985 = vunpack.c.0.s8 %v984
    %v986 = vlaneseq
    %v987 = vshrl.u32 %v986, 7
    %v988 = vsub.s32 %v985, %v987
    %v989 = vrot.slane %v265, %v988
    %v991 = vunpack.c.l.s4 1987475062
    %v992 = vunpack.c.0.s8 %v991
    %v993 = vlaneseq
    %v994 = vshrl.u32 %v993, 7
    %v995 = vsub.s32 %v992, %v994
    %v996 = vrot.slane %v265, %v995
    %v998 = vunpack.c.l.s4 269488144
    %v999 = vunpack.c.0.s8 %v998
    %v1000 = vlaneseq
    %v1001 = vshrl.u32 %v1000, 7
    %v1002 = vsub.s32 %v999, %v1001
    %v1003 = vrot.slane %v268, %v1002
    %v1005 = vunpack.c.l.s4 842150450
    %v1006 = vunpack.c.0.s8 %v1005
    %v1007 = vlaneseq
    %v1008 = vshrl.u32 %v1007, 7
    %v1009 = vsub.s32 %v1006, %v1008
    %v1010 = vrot.slane %v268, %v1009
    %v1012 = vunpack.c.l.s4 1414812756
    %v1013 = vunpack.c.0.s8 %v1012
    %v1014 = vlaneseq
    %v1015 = vshrl.u32 %v1014, 7
    %v1016 = vsub.s32 %v1013, %v1015
    %v1017 = vrot.slane %v268, %v1016
    %v1019 = vunpack.c.l.s4 1987475062
    %v1020 = vunpack.c.0.s8 %v1019
    %v1021 = vlaneseq
    %v1022 = vshrl.u32 %v1021, 7
    %v1023 = vsub.s32 %v1020, %v1022
    %v1024 = vrot.slane %v268, %v1023
    %v1026 = vunpack.c.l.s4 269488144
    %v1027 = vunpack.c.0.s8 %v1026
    %v1028 = vlaneseq
    %v1029 = vshrl.u32 %v1028, 7
    %v1030 = vsub.s32 %v1027, %v1029
    %v1031 = vrot.slane %v271, %v1030
    %v1033 = vunpack.c.l.s4 842150450
    %v1034 = vunpack.c.0.s8 %v1033
    %v1035 = vlaneseq
    %v1036 = vshrl.u32 %v1035, 7
    %v1037 = vsub.s32 %v1034, %v1036
    %v1038 = vrot.slane %v271, %v1037
    %v1040 = vunpack.c.l.s4 1414812756
    %v1041 = vunpack.c.0.s8 %v1040
    %v1042 = vlaneseq
    %v1043 = vshrl.u32 %v1042, 7
    %v1044 = vsub.s32 %v1041, %v1043
    %v1045 = vrot.slane %v271, %v1044
    %v1047 = vunpack.c.l.s4 1987475062
    %v1048 = vunpack.c.0.s8 %v1047
    %v1049 = vlaneseq
    %v1050 = vshrl.u32 %v1049, 7
    %v1051 = vsub.s32 %v1048, %v1050
    %v1052 = vrot.slane %v271, %v1051
    %v1054 = vunpack.c.l.s4 269488144
    %v1055 = vunpack.c.0.s8 %v1054
    %v1056 = vlaneseq
    %v1057 = vshrl.u32 %v1056, 7
    %v1058 = vsub.s32 %v1055, %v1057
    %v1059 = vrot.slane %v274, %v1058
    %v1061 = vunpack.c.l.s4 842150450
    %v1062 = vunpack.c.0.s8 %v1061
    %v1063 = vlaneseq
    %v1064 = vshrl.u32 %v1063, 7
    %v1065 = vsub.s32 %v1062, %v1064
    %v1066 = vrot.slane %v274, %v1065
    %v1068 = vunpack.c.l.s4 1414812756
    %v1069 = vunpack.c.0.s8 %v1068
    %v1070 = vlaneseq
    %v1071 = vshrl.u32 %v1070, 7
    %v1072 = vsub.s32 %v1069, %v1071
    %v1073 = vrot.slane %v274, %v1072
    %v1075 = vunpack.c.l.s4 1987475062
    %v1076 = vunpack.c.0.s8 %v1075
    %v1077 = vlaneseq
    %v1078 = vshrl.u32 %v1077, 7
    %v1079 = vsub.s32 %v1076, %v1078
    %v1080 = vrot.slane %v274, %v1079
    %v1082 = vunpack.c.l.s4 269488144
    %v1083 = vunpack.c.0.s8 %v1082
    %v1084 = vlaneseq
    %v1085 = vshrl.u32 %v1084, 7
    %v1086 = vsub.s32 %v1083, %v1085
    %v1087 = vrot.slane %v277, %v1086
    %v1089 = vunpack.c.l.s4 842150450
    %v1090 = vunpack.c.0.s8 %v1089
    %v1091 = vlaneseq
    %v1092 = vshrl.u32 %v1091, 7
    %v1093 = vsub.s32 %v1090, %v1092
    %v1094 = vrot.slane %v277, %v1093
    %v1096 = vunpack.c.l.s4 1414812756
    %v1097 = vunpack.c.0.s8 %v1096
    %v1098 = vlaneseq
    %v1099 = vshrl.u32 %v1098, 7
    %v1100 = vsub.s32 %v1097, %v1099
    %v1101 = vrot.slane %v277, %v1100
    %v1103 = vunpack.c.l.s4 1987475062
    %v1104 = vunpack.c.0.s8 %v1103
    %v1105 = vlaneseq
    %v1106 = vshrl.u32 %v1105, 7
    %v1107 = vsub.s32 %v1104, %v1106
    %v1108 = vrot.slane %v277, %v1107
    %v1110 = vunpack.c.l.s4 269488144
    %v1111 = vunpack.c.0.s8 %v1110
    %v1112 = vlaneseq
    %v1113 = vshrl.u32 %v1112, 7
    %v1114 = vsub.s32 %v1111, %v1113
    %v1115 = vrot.slane %v280, %v1114
    %v1117 = vunpack.c.l.s4 842150450
    %v1118 = vunpack.c.0.s8 %v1117
    %v1119 = vlaneseq
    %v1120 = vshrl.u32 %v1119, 7
    %v1121 = vsub.s32 %v1118, %v1120
    %v1122 = vrot.slane %v280, %v1121
    %v1124 = vunpack.c.l.s4 1414812756
    %v1125 = vunpack.c.0.s8 %v1124
    %v1126 = vlaneseq
    %v1127 = vshrl.u32 %v1126, 7
    %v1128 = vsub.s32 %v1125, %v1127
    %v1129 = vrot.slane %v280, %v1128
    %v1131 = vunpack.c.l.s4 1987475062
    %v1132 = vunpack.c.0.s8 %v1131
    %v1133 = vlaneseq
    %v1134 = vshrl.u32 %v1133, 7
    %v1135 = vsub.s32 %v1132, %v1134
    %v1136 = vrot.slane %v280, %v1135
    %v1138 = vunpack.c.l.s4 269488144
    %v1139 = vunpack.c.0.s8 %v1138
    %v1140 = vlaneseq
    %v1141 = vshrl.u32 %v1140, 7
    %v1142 = vsub.s32 %v1139, %v1141
    %v1143 = vrot.slane %v283, %v1142
    %v1145 = vunpack.c.l.s4 842150450
    %v1146 = vunpack.c.0.s8 %v1145
    %v1147 = vlaneseq
    %v1148 = vshrl.u32 %v1147, 7
    %v1149 = vsub.s32 %v1146, %v1148
    %v1150 = vrot.slane %v283, %v1149
    %v1152 = vunpack.c.l.s4 1414812756
    %v1153 = vunpack.c.0.s8 %v1152
    %v1154 = vlaneseq
    %v1155 = vshrl.u32 %v1154, 7
    %v1156 = vsub.s32 %v1153, %v1155
    %v1157 = vrot.slane %v283, %v1156
    %v1159 = vunpack.c.l.s4 1987475062
    %v1160 = vunpack.c.0.s8 %v1159
    %v1161 = vlaneseq
    %v1162 = vshrl.u32 %v1161, 7
    %v1163 = vsub.s32 %v1160, %v1162
    %v1164 = vrot.slane %v283, %v1163
    %v1166 = vunpack.c.l.s4 269488144
    %v1167 = vunpack.c.0.s8 %v1166
    %v1168 = vlaneseq
    %v1169 = vshrl.u32 %v1168, 7
    %v1170 = vsub.s32 %v1167, %v1169
    %v1171 = vrot.slane %v286, %v1170
    %v1173 = vunpack.c.l.s4 842150450
    %v1174 = vunpack.c.0.s8 %v1173
    %v1175 = vlaneseq
    %v1176 = vshrl.u32 %v1175, 7
    %v1177 = vsub.s32 %v1174, %v1176
    %v1178 = vrot.slane %v286, %v1177
    %v1180 = vunpack.c.l.s4 1414812756
    %v1181 = vunpack.c.0.s8 %v1180
    %v1182 = vlaneseq
    %v1183 = vshrl.u32 %v1182, 7
    %v1184 = vsub.s32 %v1181, %v1183
    %v1185 = vrot.slane %v286, %v1184
    %v1187 = vunpack.c.l.s4 1987475062
    %v1188 = vunpack.c.0.s8 %v1187
    %v1189 = vlaneseq
    %v1190 = vshrl.u32 %v1189, 7
    %v1191 = vsub.s32 %v1188, %v1190
    %v1192 = vrot.slane %v286, %v1191
    %v1194 = vunpack.c.l.s4 269488144
    %v1195 = vunpack.c.0.s8 %v1194
    %v1196 = vlaneseq
    %v1197 = vshrl.u32 %v1196, 7
    %v1198 = vsub.s32 %v1195, %v1197
    %v1199 = vrot.slane %v289, %v1198
    %v1201 = vunpack.c.l.s4 842150450
    %v1202 = vunpack.c.0.s8 %v1201
    %v1203 = vlaneseq
    %v1204 = vshrl.u32 %v1203, 7
    %v1205 = vsub.s32 %v1202, %v1204
    %v1206 = vrot.slane %v289, %v1205
    %v1208 = vunpack.c.l.s4 1414812756
    %v1209 = vunpack.c.0.s8 %v1208
    %v1210 = vlaneseq
    %v1211 = vshrl.u32 %v1210, 7
    %v1212 = vsub.s32 %v1209, %v1211
    %v1213 = vrot.slane %v289, %v1212
    %v1215 = vunpack.c.l.s4 1987475062
    %v1216 = vunpack.c.0.s8 %v1215
    %v1217 = vlaneseq
    %v1218 = vshrl.u32 %v1217, 7
    %v1219 = vsub.s32 %v1216, %v1218
    %v1220 = vrot.slane %v289, %v1219
    %v1222 = vunpack.c.l.s4 269488144
    %v1223 = vunpack.c.0.s8 %v1222
    %v1224 = vlaneseq
    %v1225 = vshrl.u32 %v1224, 7
    %v1226 = vsub.s32 %v1223, %v1225
    %v1227 = vrot.slane %v292, %v1226
    %v1229 = vunpack.c.l.s4 842150450
    %v1230 = vunpack.c.0.s8 %v1229
    %v1231 = vlaneseq
    %v1232 = vshrl.u32 %v1231, 7
    %v1233 = vsub.s32 %v1230, %v1232
    %v1234 = vrot.slane %v292, %v1233
    %v1236 = vunpack.c.l.s4 1414812756
    %v1237 = vunpack.c.0.s8 %v1236
    %v1238 = vlaneseq
    %v1239 = vshrl.u32 %v1238, 7
    %v1240 = vsub.s32 %v1237, %v1239
    %v1241 = vrot.slane %v292, %v1240
    %v1243 = vunpack.c.l.s4 1987475062
    %v1244 = vunpack.c.0.s8 %v1243
    %v1245 = vlaneseq
    %v1246 = vshrl.u32 %v1245, 7
    %v1247 = vsub.s32 %v1244, %v1246
    %v1248 = vrot.slane %v292, %v1247
    %v1250 = vunpack.c.l.s4 269488144
    %v1251 = vunpack.c.0.s8 %v1250
    %v1252 = vlaneseq
    %v1253 = vshrl.u32 %v1252, 7
    %v1254 = vsub.s32 %v1251, %v1253
    %v1255 = vrot.slane %v295, %v1254
    %v1257 = vunpack.c.l.s4 842150450
    %v1258 = vunpack.c.0.s8 %v1257
    %v1259 = vlaneseq
    %v1260 = vshrl.u32 %v1259, 7
    %v1261 = vsub.s32 %v1258, %v1260
    %v1262 = vrot.slane %v295, %v1261
    %v1264 = vunpack.c.l.s4 1414812756
    %v1265 = vunpack.c.0.s8 %v1264
    %v1266 = vlaneseq
    %v1267 = vshrl.u32 %v1266, 7
    %v1268 = vsub.s32 %v1265, %v1267
    %v1269 = vrot.slane %v295, %v1268
    %v1271 = vunpack.c.l.s4 1987475062
    %v1272 = vunpack.c.0.s8 %v1271
    %v1273 = vlaneseq
    %v1274 = vshrl.u32 %v1273, 7
    %v1275 = vsub.s32 %v1272, %v1274
    %v1276 = vrot.slane %v295, %v1275
    %v1278 = vunpack.c.l.s4 269488144
    %v1279 = vunpack.c.0.s8 %v1278
    %v1280 = vlaneseq
    %v1281 = vshrl.u32 %v1280, 7
    %v1282 = vsub.s32 %v1279, %v1281
    %v1283 = vrot.slane %v298, %v1282
    %v1285 = vunpack.c.l.s4 842150450
    %v1286 = vunpack.c.0.s8 %v1285
    %v1287 = vlaneseq
    %v1288 = vshrl.u32 %v1287, 7
    %v1289 = vsub.s32 %v1286, %v1288
    %v1290 = vrot.slane %v298, %v1289
    %v1292 = vunpack.c.l.s4 1414812756
    %v1293 = vunpack.c.0.s8 %v1292
    %v1294 = vlaneseq
    %v1295 = vshrl.u32 %v1294, 7
    %v1296 = vsub.s32 %v1293, %v1295
    %v1297 = vrot.slane %v298, %v1296
    %v1299 = vunpack.c.l.s4 1987475062
    %v1300 = vunpack.c.0.s8 %v1299
    %v1301 = vlaneseq
    %v1302 = vshrl.u32 %v1301, 7
    %v1303 = vsub.s32 %v1300, %v1302
    %v1304 = vrot.slane %v298, %v1303
    %v1306 = vunpack.c.l.s4 269488144
    %v1307 = vunpack.c.0.s8 %v1306
    %v1308 = vlaneseq
    %v1309 = vshrl.u32 %v1308, 7
    %v1310 = vsub.s32 %v1307, %v1309
    %v1311 = vrot.slane %v301, %v1310
    %v1313 = vunpack.c.l.s4 842150450
    %v1314 = vunpack.c.0.s8 %v1313
    %v1315 = vlaneseq
    %v1316 = vshrl.u32 %v1315, 7
    %v1317 = vsub.s32 %v1314, %v1316
    %v1318 = vrot.slane %v301, %v1317
    %v1320 = vunpack.c.l.s4 1414812756
    %v1321 = vunpack.c.0.s8 %v1320
    %v1322 = vlaneseq
    %v1323 = vshrl.u32 %v1322, 7
    %v1324 = vsub.s32 %v1321, %v1323
    %v1325 = vrot.slane %v301, %v1324
    %v1327 = vunpack.c.l.s4 1987475062
    %v1328 = vunpack.c.0.s8 %v1327
    %v1329 = vlaneseq
    %v1330 = vshrl.u32 %v1329, 7
    %v1331 = vsub.s32 %v1328, %v1330
    %v1332 = vrot.slane %v301, %v1331
    %v1334 = vunpack.c.l.s4 269488144
    %v1335 = vunpack.c.0.s8 %v1334
    %v1336 = vlaneseq
    %v1337 = vshrl.u32 %v1336, 7
    %v1338 = vsub.s32 %v1335, %v1337
    %v1339 = vrot.slane %v304, %v1338
    %v1341 = vunpack.c.l.s4 842150450
    %v1342 = vunpack.c.0.s8 %v1341
    %v1343 = vlaneseq
    %v1344 = vshrl.u32 %v1343, 7
    %v1345 = vsub.s32 %v1342, %v1344
    %v1346 = vrot.slane %v304, %v1345
    %v1348 = vunpack.c.l.s4 1414812756
    %v1349 = vunpack.c.0.s8 %v1348
    %v1350 = vlaneseq
    %v1351 = vshrl.u32 %v1350, 7
    %v1352 = vsub.s32 %v1349, %v1351
    %v1353 = vrot.slane %v304, %v1352
    %v1355 = vunpack.c.l.s4 1987475062
    %v1356 = vunpack.c.0.s8 %v1355
    %v1357 = vlaneseq
    %v1358 = vshrl.u32 %v1357, 7
    %v1359 = vsub.s32 %v1356, %v1358
    %v1360 = vrot.slane %v304, %v1359
    %v1362 = vunpack.c.l.s4 269488144
    %v1363 = vunpack.c.0.s8 %v1362
    %v1364 = vlaneseq
    %v1365 = vshrl.u32 %v1364, 7
    %v1366 = vsub.s32 %v1363, %v1365
    %v1367 = vrot.slane %v307, %v1366
    %v1369 = vunpack.c.l.s4 842150450
    %v1370 = vunpack.c.0.s8 %v1369
    %v1371 = vlaneseq
    %v1372 = vshrl.u32 %v1371, 7
    %v1373 = vsub.s32 %v1370, %v1372
    %v1374 = vrot.slane %v307, %v1373
    %v1376 = vunpack.c.l.s4 1414812756
    %v1377 = vunpack.c.0.s8 %v1376
    %v1378 = vlaneseq
    %v1379 = vshrl.u32 %v1378, 7
    %v1380 = vsub.s32 %v1377, %v1379
    %v1381 = vrot.slane %v307, %v1380
    %v1383 = vunpack.c.l.s4 1987475062
    %v1384 = vunpack.c.0.s8 %v1383
    %v1385 = vlaneseq
    %v1386 = vshrl.u32 %v1385, 7
    %v1387 = vsub.s32 %v1384, %v1386
    %v1388 = vrot.slane %v307, %v1387
    %v1390 = vunpack.c.l.s4 269488144
    %v1391 = vunpack.c.0.s8 %v1390
    %v1392 = vlaneseq
    %v1393 = vshrl.u32 %v1392, 7
    %v1394 = vsub.s32 %v1391, %v1393
    %v1395 = vrot.slane %v310, %v1394
    %v1397 = vunpack.c.l.s4 842150450
    %v1398 = vunpack.c.0.s8 %v1397
    %v1399 = vlaneseq
    %v1400 = vshrl.u32 %v1399, 7
    %v1401 = vsub.s32 %v1398, %v1400
    %v1402 = vrot.slane %v310, %v1401
    %v1404 = vunpack.c.l.s4 1414812756
    %v1405 = vunpack.c.0.s8 %v1404
    %v1406 = vlaneseq
    %v1407 = vshrl.u32 %v1406, 7
    %v1408 = vsub.s32 %v1405, %v1407
    %v1409 = vrot.slane %v310, %v1408
    %v1411 = vunpack.c.l.s4 1987475062
    %v1412 = vunpack.c.0.s8 %v1411
    %v1413 = vlaneseq
    %v1414 = vshrl.u32 %v1413, 7
    %v1415 = vsub.s32 %v1412, %v1414
    %v1416 = vrot.slane %v310, %v1415
    %v1418 = vunpack.c.l.s4 269488144
    %v1419 = vunpack.c.0.s8 %v1418
    %v1420 = vlaneseq
    %v1421 = vshrl.u32 %v1420, 7
    %v1422 = vsub.s32 %v1419, %v1421
    %v1423 = vrot.slane %v313, %v1422
    %v1425 = vunpack.c.l.s4 842150450
    %v1426 = vunpack.c.0.s8 %v1425
    %v1427 = vlaneseq
    %v1428 = vshrl.u32 %v1427, 7
    %v1429 = vsub.s32 %v1426, %v1428
    %v1430 = vrot.slane %v313, %v1429
    %v1432 = vunpack.c.l.s4 1414812756
    %v1433 = vunpack.c.0.s8 %v1432
    %v1434 = vlaneseq
    %v1435 = vshrl.u32 %v1434, 7
    %v1436 = vsub.s32 %v1433, %v1435
    %v1437 = vrot.slane %v313, %v1436
    %v1439 = vunpack.c.l.s4 1987475062
    %v1440 = vunpack.c.0.s8 %v1439
    %v1441 = vlaneseq
    %v1442 = vshrl.u32 %v1441, 7
    %v1443 = vsub.s32 %v1440, %v1442
    %v1444 = vrot.slane %v313, %v1443
    %v1446 = vunpack.c.l.s4 269488144
    %v1447 = vunpack.c.0.s8 %v1446
    %v1448 = vlaneseq
    %v1449 = vshrl.u32 %v1448, 7
    %v1450 = vsub.s32 %v1447, %v1449
    %v1451 = vrot.slane %v316, %v1450
    %v1453 = vunpack.c.l.s4 842150450
    %v1454 = vunpack.c.0.s8 %v1453
    %v1455 = vlaneseq
    %v1456 = vshrl.u32 %v1455, 7
    %v1457 = vsub.s32 %v1454, %v1456
    %v1458 = vrot.slane %v316, %v1457
    %v1460 = vunpack.c.l.s4 1414812756
    %v1461 = vunpack.c.0.s8 %v1460
    %v1462 = vlaneseq
    %v1463 = vshrl.u32 %v1462, 7
    %v1464 = vsub.s32 %v1461, %v1463
    %v1465 = vrot.slane %v316, %v1464
    %v1467 = vunpack.c.l.s4 1987475062
    %v1468 = vunpack.c.0.s8 %v1467
    %v1469 = vlaneseq
    %v1470 = vshrl.u32 %v1469, 7
    %v1471 = vsub.s32 %v1468, %v1470
    %v1472 = vrot.slane %v316, %v1471
    %v1474 = vunpack.c.l.s4 269488144
    %v1475 = vunpack.c.0.s8 %v1474
    %v1476 = vlaneseq
    %v1477 = vshrl.u32 %v1476, 7
    %v1478 = vsub.s32 %v1475, %v1477
    %v1479 = vrot.slane %v319, %v1478
    %v1481 = vunpack.c.l.s4 842150450
    %v1482 = vunpack.c.0.s8 %v1481
    %v1483 = vlaneseq
    %v1484 = vshrl.u32 %v1483, 7
    %v1485 = vsub.s32 %v1482, %v1484
    %v1486 = vrot.slane %v319, %v1485
    %v1488 = vunpack.c.l.s4 1414812756
    %v1489 = vunpack.c.0.s8 %v1488
    %v1490 = vlaneseq
    %v1491 = vshrl.u32 %v1490, 7
    %v1492 = vsub.s32 %v1489, %v1491
    %v1493 = vrot.slane %v319, %v1492
    %v1495 = vunpack.c.l.s4 1987475062
    %v1496 = vunpack.c.0.s8 %v1495
    %v1497 = vlaneseq
    %v1498 = vshrl.u32 %v1497, 7
    %v1499 = vsub.s32 %v1496, %v1498
    %v1500 = vrot.slane %v319, %v1499
    %v1502 = vunpack.c.l.s4 269488144
    %v1503 = vunpack.c.0.s8 %v1502
    %v1504 = vlaneseq
    %v1505 = vshrl.u32 %v1504, 7
    %v1506 = vsub.s32 %v1503, %v1505
    %v1507 = vrot.slane %v322, %v1506
    %v1509 = vunpack.c.l.s4 842150450
    %v1510 = vunpack.c.0.s8 %v1509
    %v1511 = vlaneseq
    %v1512 = vshrl.u32 %v1511, 7
    %v1513 = vsub.s32 %v1510, %v1512
    %v1514 = vrot.slane %v322, %v1513
    %v1516 = vunpack.c.l.s4 1414812756
    %v1517 = vunpack.c.0.s8 %v1516
    %v1518 = vlaneseq
    %v1519 = vshrl.u32 %v1518, 7
    %v1520 = vsub.s32 %v1517, %v1519
    %v1521 = vrot.slane %v322, %v1520
    %v1523 = vunpack.c.l.s4 1987475062
    %v1524 = vunpack.c.0.s8 %v1523
    %v1525 = vlaneseq
    %v1526 = vshrl.u32 %v1525, 7
    %v1527 = vsub.s32 %v1524, %v1526
    %v1528 = vrot.slane %v322, %v1527
    %v1530 = vunpack.c.l.s4 269488144
    %v1531 = vunpack.c.0.s8 %v1530
    %v1532 = vlaneseq
    %v1533 = vshrl.u32 %v1532, 7
    %v1534 = vsub.s32 %v1531, %v1533
    %v1535 = vrot.slane %v325, %v1534
    %v1537 = vunpack.c.l.s4 842150450
    %v1538 = vunpack.c.0.s8 %v1537
    %v1539 = vlaneseq
    %v1540 = vshrl.u32 %v1539, 7
    %v1541 = vsub.s32 %v1538, %v1540
    %v1542 = vrot.slane %v325, %v1541
    %v1544 = vunpack.c.l.s4 1414812756
    %v1545 = vunpack.c.0.s8 %v1544
    %v1546 = vlaneseq
    %v1547 = vshrl.u32 %v1546, 7
    %v1548 = vsub.s32 %v1545, %v1547
    %v1549 = vrot.slane %v325, %v1548
    %v1551 = vunpack.c.l.s4 1987475062
    %v1552 = vunpack.c.0.s8 %v1551
    %v1553 = vlaneseq
    %v1554 = vshrl.u32 %v1553, 7
    %v1555 = vsub.s32 %v1552, %v1554
    %v1556 = vrot.slane %v325, %v1555
    %v1558 = vunpack.c.l.s4 269488144
    %v1559 = vunpack.c.0.s8 %v1558
    %v1560 = vlaneseq
    %v1561 = vshrl.u32 %v1560, 7
    %v1562 = vsub.s32 %v1559, %v1561
    %v1563 = vrot.slane %v328, %v1562
    %v1565 = vunpack.c.l.s4 842150450
    %v1566 = vunpack.c.0.s8 %v1565
    %v1567 = vlaneseq
    %v1568 = vshrl.u32 %v1567, 7
    %v1569 = vsub.s32 %v1566, %v1568
    %v1570 = vrot.slane %v328, %v1569
    %v1572 = vunpack.c.l.s4 1414812756
    %v1573 = vunpack.c.0.s8 %v1572
    %v1574 = vlaneseq
    %v1575 = vshrl.u32 %v1574, 7
    %v1576 = vsub.s32 %v1573, %v1575
    %v1577 = vrot.slane %v328, %v1576
    %v1579 = vunpack.c.l.s4 1987475062
    %v1580 = vunpack.c.0.s8 %v1579
    %v1581 = vlaneseq
    %v1582 = vshrl.u32 %v1581, 7
    %v1583 = vsub.s32 %v1580, %v1582
    %v1584 = vrot.slane %v328, %v1583
    %v1586 = vunpack.c.l.s4 269488144
    %v1587 = vunpack.c.0.s8 %v1586
    %v1588 = vlaneseq
    %v1589 = vshrl.u32 %v1588, 7
    %v1590 = vsub.s32 %v1587, %v1589
    %v1591 = vrot.slane %v331, %v1590
    %v1593 = vunpack.c.l.s4 842150450
    %v1594 = vunpack.c.0.s8 %v1593
    %v1595 = vlaneseq
    %v1596 = vshrl.u32 %v1595, 7
    %v1597 = vsub.s32 %v1594, %v1596
    %v1598 = vrot.slane %v331, %v1597
    %v1600 = vunpack.c.l.s4 1414812756
    %v1601 = vunpack.c.0.s8 %v1600
    %v1602 = vlaneseq
    %v1603 = vshrl.u32 %v1602, 7
    %v1604 = vsub.s32 %v1601, %v1603
    %v1605 = vrot.slane %v331, %v1604
    %v1607 = vunpack.c.l.s4 1987475062
    %v1608 = vunpack.c.0.s8 %v1607
    %v1609 = vlaneseq
    %v1610 = vshrl.u32 %v1609, 7
    %v1611 = vsub.s32 %v1608, %v1610
    %v1612 = vrot.slane %v331, %v1611
    %v1614 = vunpack.c.l.s4 269488144
    %v1615 = vunpack.c.0.s8 %v1614
    %v1616 = vlaneseq
    %v1617 = vshrl.u32 %v1616, 7
    %v1618 = vsub.s32 %v1615, %v1617
    %v1619 = vrot.slane %v334, %v1618
    %v1621 = vunpack.c.l.s4 842150450
    %v1622 = vunpack.c.0.s8 %v1621
    %v1623 = vlaneseq
    %v1624 = vshrl.u32 %v1623, 7
    %v1625 = vsub.s32 %v1622, %v1624
    %v1626 = vrot.slane %v334, %v1625
    %v1628 = vunpack.c.l.s4 1414812756
    %v1629 = vunpack.c.0.s8 %v1628
    %v1630 = vlaneseq
    %v1631 = vshrl.u32 %v1630, 7
    %v1632 = vsub.s32 %v1629, %v1631
    %v1633 = vrot.slane %v334, %v1632
    %v1635 = vunpack.c.l.s4 1987475062
    %v1636 = vunpack.c.0.s8 %v1635
    %v1637 = vlaneseq
    %v1638 = vshrl.u32 %v1637, 7
    %v1639 = vsub.s32 %v1636, %v1638
    %v1640 = vrot.slane %v334, %v1639
    %v1642 = vunpack.c.l.s4 269488144
    %v1643 = vunpack.c.0.s8 %v1642
    %v1644 = vlaneseq
    %v1645 = vshrl.u32 %v1644, 7
    %v1646 = vsub.s32 %v1643, %v1645
    %v1647 = vrot.slane %v337, %v1646
    %v1649 = vunpack.c.l.s4 842150450
    %v1650 = vunpack.c.0.s8 %v1649
    %v1651 = vlaneseq
    %v1652 = vshrl.u32 %v1651, 7
    %v1653 = vsub.s32 %v1650, %v1652
    %v1654 = vrot.slane %v337, %v1653
    %v1656 = vunpack.c.l.s4 1414812756
    %v1657 = vunpack.c.0.s8 %v1656
    %v1658 = vlaneseq
    %v1659 = vshrl.u32 %v1658, 7
    %v1660 = vsub.s32 %v1657, %v1659
    %v1661 = vrot.slane %v337, %v1660
    %v1663 = vunpack.c.l.s4 1987475062
    %v1664 = vunpack.c.0.s8 %v1663
    %v1665 = vlaneseq
    %v1666 = vshrl.u32 %v1665, 7
    %v1667 = vsub.s32 %v1664, %v1666
    %v1668 = vrot.slane %v337, %v1667
    %v1670 = vunpack.c.l.s4 269488144
    %v1671 = vunpack.c.0.s8 %v1670
    %v1672 = vlaneseq
    %v1673 = vshrl.u32 %v1672, 7
    %v1674 = vsub.s32 %v1671, %v1673
    %v1675 = vrot.slane %v340, %v1674
    %v1677 = vunpack.c.l.s4 842150450
    %v1678 = vunpack.c.0.s8 %v1677
    %v1679 = vlaneseq
    %v1680 = vshrl.u32 %v1679, 7
    %v1681 = vsub.s32 %v1678, %v1680
    %v1682 = vrot.slane %v340, %v1681
    %v1684 = vunpack.c.l.s4 1414812756
    %v1685 = vunpack.c.0.s8 %v1684
    %v1686 = vlaneseq
    %v1687 = vshrl.u32 %v1686, 7
    %v1688 = vsub.s32 %v1685, %v1687
    %v1689 = vrot.slane %v340, %v1688
    %v1691 = vunpack.c.l.s4 1987475062
    %v1692 = vunpack.c.0.s8 %v1691
    %v1693 = vlaneseq
    %v1694 = vshrl.u32 %v1693, 7
    %v1695 = vsub.s32 %v1692, %v1694
    %v1696 = vrot.slane %v340, %v1695
    %v1698 = vunpack.c.l.s4 269488144
    %v1699 = vunpack.c.0.s8 %v1698
    %v1700 = vlaneseq
    %v1701 = vshrl.u32 %v1700, 7
    %v1702 = vsub.s32 %v1699, %v1701
    %v1703 = vrot.slane %v343, %v1702
    %v1705 = vunpack.c.l.s4 842150450
    %v1706 = vunpack.c.0.s8 %v1705
    %v1707 = vlaneseq
    %v1708 = vshrl.u32 %v1707, 7
    %v1709 = vsub.s32 %v1706, %v1708
    %v1710 = vrot.slane %v343, %v1709
    %v1712 = vunpack.c.l.s4 1414812756
    %v1713 = vunpack.c.0.s8 %v1712
    %v1714 = vlaneseq
    %v1715 = vshrl.u32 %v1714, 7
    %v1716 = vsub.s32 %v1713, %v1715
    %v1717 = vrot.slane %v343, %v1716
    %v1719 = vunpack.c.l.s4 1987475062
    %v1720 = vunpack.c.0.s8 %v1719
    %v1721 = vlaneseq
    %v1722 = vshrl.u32 %v1721, 7
    %v1723 = vsub.s32 %v1720, %v1722
    %v1724 = vrot.slane %v343, %v1723
    %v1726 = vunpack.c.l.s4 269488144
    %v1727 = vunpack.c.0.s8 %v1726
    %v1728 = vlaneseq
    %v1729 = vshrl.u32 %v1728, 7
    %v1730 = vsub.s32 %v1727, %v1729
    %v1731 = vrot.slane %v346, %v1730
    %v1733 = vunpack.c.l.s4 842150450
    %v1734 = vunpack.c.0.s8 %v1733
    %v1735 = vlaneseq
    %v1736 = vshrl.u32 %v1735, 7
    %v1737 = vsub.s32 %v1734, %v1736
    %v1738 = vrot.slane %v346, %v1737
    %v1740 = vunpack.c.l.s4 1414812756
    %v1741 = vunpack.c.0.s8 %v1740
    %v1742 = vlaneseq
    %v1743 = vshrl.u32 %v1742, 7
    %v1744 = vsub.s32 %v1741, %v1743
    %v1745 = vrot.slane %v346, %v1744
    %v1747 = vunpack.c.l.s4 1987475062
    %v1748 = vunpack.c.0.s8 %v1747
    %v1749 = vlaneseq
    %v1750 = vshrl.u32 %v1749, 7
    %v1751 = vsub.s32 %v1748, %v1750
    %v1752 = vrot.slane %v346, %v1751
    %v1754 = vunpack.c.l.s4 269488144
    %v1755 = vunpack.c.0.s8 %v1754
    %v1756 = vlaneseq
    %v1757 = vshrl.u32 %v1756, 7
    %v1758 = vsub.s32 %v1755, %v1757
    %v1759 = vrot.slane %v349, %v1758
    %v1761 = vunpack.c.l.s4 842150450
    %v1762 = vunpack.c.0.s8 %v1761
    %v1763 = vlaneseq
    %v1764 = vshrl.u32 %v1763, 7
    %v1765 = vsub.s32 %v1762, %v1764
    %v1766 = vrot.slane %v349, %v1765
    %v1768 = vunpack.c.l.s4 1414812756
    %v1769 = vunpack.c.0.s8 %v1768
    %v1770 = vlaneseq
    %v1771 = vshrl.u32 %v1770, 7
    %v1772 = vsub.s32 %v1769, %v1771
    %v1773 = vrot.slane %v349, %v1772
    %v1775 = vunpack.c.l.s4 1987475062
    %v1776 = vunpack.c.0.s8 %v1775
    %v1777 = vlaneseq
    %v1778 = vshrl.u32 %v1777, 7
    %v1779 = vsub.s32 %v1776, %v1778
    %v1780 = vrot.slane %v349, %v1779
    %v1782 = vunpack.c.l.s4 269488144
    %v1783 = vunpack.c.0.s8 %v1782
    %v1784 = vlaneseq
    %v1785 = vshrl.u32 %v1784, 7
    %v1786 = vsub.s32 %v1783, %v1785
    %v1787 = vrot.slane %v352, %v1786
    %v1789 = vunpack.c.l.s4 842150450
    %v1790 = vunpack.c.0.s8 %v1789
    %v1791 = vlaneseq
    %v1792 = vshrl.u32 %v1791, 7
    %v1793 = vsub.s32 %v1790, %v1792
    %v1794 = vrot.slane %v352, %v1793
    %v1796 = vunpack.c.l.s4 1414812756
    %v1797 = vunpack.c.0.s8 %v1796
    %v1798 = vlaneseq
    %v1799 = vshrl.u32 %v1798, 7
    %v1800 = vsub.s32 %v1797, %v1799
    %v1801 = vrot.slane %v352, %v1800
    %v1803 = vunpack.c.l.s4 1987475062
    %v1804 = vunpack.c.0.s8 %v1803
    %v1805 = vlaneseq
    %v1806 = vshrl.u32 %v1805, 7
    %v1807 = vsub.s32 %v1804, %v1806
    %v1808 = vrot.slane %v352, %v1807
    %v1810 = vunpack.c.l.s4 269488144
    %v1811 = vunpack.c.0.s8 %v1810
    %v1812 = vlaneseq
    %v1813 = vshrl.u32 %v1812, 7
    %v1814 = vsub.s32 %v1811, %v1813
    %v1815 = vrot.slane %v355, %v1814
    %v1817 = vunpack.c.l.s4 842150450
    %v1818 = vunpack.c.0.s8 %v1817
    %v1819 = vlaneseq
    %v1820 = vshrl.u32 %v1819, 7
    %v1821 = vsub.s32 %v1818, %v1820
    %v1822 = vrot.slane %v355, %v1821
    %v1824 = vunpack.c.l.s4 1414812756
    %v1825 = vunpack.c.0.s8 %v1824
    %v1826 = vlaneseq
    %v1827 = vshrl.u32 %v1826, 7
    %v1828 = vsub.s32 %v1825, %v1827
    %v1829 = vrot.slane %v355, %v1828
    %v1831 = vunpack.c.l.s4 1987475062
    %v1832 = vunpack.c.0.s8 %v1831
    %v1833 = vlaneseq
    %v1834 = vshrl.u32 %v1833, 7
    %v1835 = vsub.s32 %v1832, %v1834
    %v1836 = vrot.slane %v355, %v1835
    %v1838 = vunpack.c.l.s4 269488144
    %v1839 = vunpack.c.0.s8 %v1838
    %v1840 = vlaneseq
    %v1841 = vshrl.u32 %v1840, 7
    %v1842 = vsub.s32 %v1839, %v1841
    %v1843 = vrot.slane %v358, %v1842
    %v1845 = vunpack.c.l.s4 842150450
    %v1846 = vunpack.c.0.s8 %v1845
    %v1847 = vlaneseq
    %v1848 = vshrl.u32 %v1847, 7
    %v1849 = vsub.s32 %v1846, %v1848
    %v1850 = vrot.slane %v358, %v1849
    %v1852 = vunpack.c.l.s4 1414812756
    %v1853 = vunpack.c.0.s8 %v1852
    %v1854 = vlaneseq
    %v1855 = vshrl.u32 %v1854, 7
    %v1856 = vsub.s32 %v1853, %v1855
    %v1857 = vrot.slane %v358, %v1856
    %v1859 = vunpack.c.l.s4 1987475062
    %v1860 = vunpack.c.0.s8 %v1859
    %v1861 = vlaneseq
    %v1862 = vshrl.u32 %v1861, 7
    %v1863 = vsub.s32 %v1860, %v1862
    %v1864 = vrot.slane %v358, %v1863
    %v1866 = vunpack.c.l.s4 269488144
    %v1867 = vunpack.c.0.s8 %v1866
    %v1868 = vlaneseq
    %v1869 = vshrl.u32 %v1868, 7
    %v1870 = vsub.s32 %v1867, %v1869
    %v1871 = vrot.slane %v361, %v1870
    %v1873 = vunpack.c.l.s4 842150450
    %v1874 = vunpack.c.0.s8 %v1873
    %v1875 = vlaneseq
    %v1876 = vshrl.u32 %v1875, 7
    %v1877 = vsub.s32 %v1874, %v1876
    %v1878 = vrot.slane %v361, %v1877
    %v1880 = vunpack.c.l.s4 1414812756
    %v1881 = vunpack.c.0.s8 %v1880
    %v1882 = vlaneseq
    %v1883 = vshrl.u32 %v1882, 7
    %v1884 = vsub.s32 %v1881, %v1883
    %v1885 = vrot.slane %v361, %v1884
    %v1887 = vunpack.c.l.s4 1987475062
    %v1888 = vunpack.c.0.s8 %v1887
    %v1889 = vlaneseq
    %v1890 = vshrl.u32 %v1889, 7
    %v1891 = vsub.s32 %v1888, %v1890
    %v1892 = vrot.slane %v361, %v1891
    %v1894 = vunpack.c.l.s4 269488144
    %v1895 = vunpack.c.0.s8 %v1894
    %v1896 = vlaneseq
    %v1897 = vshrl.u32 %v1896, 7
    %v1898 = vsub.s32 %v1895, %v1897
    %v1899 = vrot.slane %v364, %v1898
    %v1901 = vunpack.c.l.s4 842150450
    %v1902 = vunpack.c.0.s8 %v1901
    %v1903 = vlaneseq
    %v1904 = vshrl.u32 %v1903, 7
    %v1905 = vsub.s32 %v1902, %v1904
    %v1906 = vrot.slane %v364, %v1905
    %v1908 = vunpack.c.l.s4 1414812756
    %v1909 = vunpack.c.0.s8 %v1908
    %v1910 = vlaneseq
    %v1911 = vshrl.u32 %v1910, 7
    %v1912 = vsub.s32 %v1909, %v1911
    %v1913 = vrot.slane %v364, %v1912
    %v1915 = vunpack.c.l.s4 1987475062
    %v1916 = vunpack.c.0.s8 %v1915
    %v1917 = vlaneseq
    %v1918 = vshrl.u32 %v1917, 7
    %v1919 = vsub.s32 %v1916, %v1918
    %v1920 = vrot.slane %v364, %v1919
    %v1922 = vunpack.c.l.s4 269488144
    %v1923 = vunpack.c.0.s8 %v1922
    %v1924 = vlaneseq
    %v1925 = vshrl.u32 %v1924, 7
    %v1926 = vsub.s32 %v1923, %v1925
    %v1927 = vrot.slane %v367, %v1926
    %v1929 = vunpack.c.l.s4 842150450
    %v1930 = vunpack.c.0.s8 %v1929
    %v1931 = vlaneseq
    %v1932 = vshrl.u32 %v1931, 7
    %v1933 = vsub.s32 %v1930, %v1932
    %v1934 = vrot.slane %v367, %v1933
    %v1936 = vunpack.c.l.s4 1414812756
    %v1937 = vunpack.c.0.s8 %v1936
    %v1938 = vlaneseq
    %v1939 = vshrl.u32 %v1938, 7
    %v1940 = vsub.s32 %v1937, %v1939
    %v1941 = vrot.slane %v367, %v1940
    %v1943 = vunpack.c.l.s4 1987475062
    %v1944 = vunpack.c.0.s8 %v1943
    %v1945 = vlaneseq
    %v1946 = vshrl.u32 %v1945, 7
    %v1947 = vsub.s32 %v1944, %v1946
    %v1948 = vrot.slane %v367, %v1947
    %v1950 = vunpack.c.l.s4 269488144
    %v1951 = vunpack.c.0.s8 %v1950
    %v1952 = vlaneseq
    %v1953 = vshrl.u32 %v1952, 7
    %v1954 = vsub.s32 %v1951, %v1953
    %v1955 = vrot.slane %v370, %v1954
    %v1957 = vunpack.c.l.s4 842150450
    %v1958 = vunpack.c.0.s8 %v1957
    %v1959 = vlaneseq
    %v1960 = vshrl.u32 %v1959, 7
    %v1961 = vsub.s32 %v1958, %v1960
    %v1962 = vrot.slane %v370, %v1961
    %v1964 = vunpack.c.l.s4 1414812756
    %v1965 = vunpack.c.0.s8 %v1964
    %v1966 = vlaneseq
    %v1967 = vshrl.u32 %v1966, 7
    %v1968 = vsub.s32 %v1965, %v1967
    %v1969 = vrot.slane %v370, %v1968
    %v1971 = vunpack.c.l.s4 1987475062
    %v1972 = vunpack.c.0.s8 %v1971
    %v1973 = vlaneseq
    %v1974 = vshrl.u32 %v1973, 7
    %v1975 = vsub.s32 %v1972, %v1974
    %v1976 = vrot.slane %v370, %v1975
    %v1978 = vunpack.c.l.s4 269488144
    %v1979 = vunpack.c.0.s8 %v1978
    %v1980 = vlaneseq
    %v1981 = vshrl.u32 %v1980, 7
    %v1982 = vsub.s32 %v1979, %v1981
    %v1983 = vrot.slane %v373, %v1982
    %v1985 = vunpack.c.l.s4 842150450
    %v1986 = vunpack.c.0.s8 %v1985
    %v1987 = vlaneseq
    %v1988 = vshrl.u32 %v1987, 7
    %v1989 = vsub.s32 %v1986, %v1988
    %v1990 = vrot.slane %v373, %v1989
    %v1992 = vunpack.c.l.s4 1414812756
    %v1993 = vunpack.c.0.s8 %v1992
    %v1994 = vlaneseq
    %v1995 = vshrl.u32 %v1994, 7
    %v1996 = vsub.s32 %v1993, %v1995
    %v1997 = vrot.slane %v373, %v1996
    %v1999 = vunpack.c.l.s4 1987475062
    %v2000 = vunpack.c.0.s8 %v1999
    %v2001 = vlaneseq
    %v2002 = vshrl.u32 %v2001, 7
    %v2003 = vsub.s32 %v2000, %v2002
    %v2004 = vrot.slane %v373, %v2003
    %v2006 = vunpack.c.l.s4 269488144
    %v2007 = vunpack.c.0.s8 %v2006
    %v2008 = vlaneseq
    %v2009 = vshrl.u32 %v2008, 7
    %v2010 = vsub.s32 %v2007, %v2009
    %v2011 = vrot.slane %v376, %v2010
    %v2013 = vunpack.c.l.s4 842150450
    %v2014 = vunpack.c.0.s8 %v2013
    %v2015 = vlaneseq
    %v2016 = vshrl.u32 %v2015, 7
    %v2017 = vsub.s32 %v2014, %v2016
    %v2018 = vrot.slane %v376, %v2017
    %v2020 = vunpack.c.l.s4 1414812756
    %v2021 = vunpack.c.0.s8 %v2020
    %v2022 = vlaneseq
    %v2023 = vshrl.u32 %v2022, 7
    %v2024 = vsub.s32 %v2021, %v2023
    %v2025 = vrot.slane %v376, %v2024
    %v2027 = vunpack.c.l.s4 1987475062
    %v2028 = vunpack.c.0.s8 %v2027
    %v2029 = vlaneseq
    %v2030 = vshrl.u32 %v2029, 7
    %v2031 = vsub.s32 %v2028, %v2030
    %v2032 = vrot.slane %v376, %v2031
    %v2034 = vunpack.c.l.s4 269488144
    %v2035 = vunpack.c.0.s8 %v2034
    %v2036 = vlaneseq
    %v2037 = vshrl.u32 %v2036, 7
    %v2038 = vsub.s32 %v2035, %v2037
    %v2039 = vrot.slane %v379, %v2038
    %v2041 = vunpack.c.l.s4 842150450
    %v2042 = vunpack.c.0.s8 %v2041
    %v2043 = vlaneseq
    %v2044 = vshrl.u32 %v2043, 7
    %v2045 = vsub.s32 %v2042, %v2044
    %v2046 = vrot.slane %v379, %v2045
    %v2048 = vunpack.c.l.s4 1414812756
    %v2049 = vunpack.c.0.s8 %v2048
    %v2050 = vlaneseq
    %v2051 = vshrl.u32 %v2050, 7
    %v2052 = vsub.s32 %v2049, %v2051
    %v2053 = vrot.slane %v379, %v2052
    %v2055 = vunpack.c.l.s4 1987475062
    %v2056 = vunpack.c.0.s8 %v2055
    %v2057 = vlaneseq
    %v2058 = vshrl.u32 %v2057, 7
    %v2059 = vsub.s32 %v2056, %v2058
    %v2060 = vrot.slane %v379, %v2059
    %v2062 = vunpack.c.l.s4 269488144
    %v2063 = vunpack.c.0.s8 %v2062
    %v2064 = vlaneseq
    %v2065 = vshrl.u32 %v2064, 7
    %v2066 = vsub.s32 %v2063, %v2065
    %v2067 = vrot.slane %v382, %v2066
    %v2069 = vunpack.c.l.s4 842150450
    %v2070 = vunpack.c.0.s8 %v2069
    %v2071 = vlaneseq
    %v2072 = vshrl.u32 %v2071, 7
    %v2073 = vsub.s32 %v2070, %v2072
    %v2074 = vrot.slane %v382, %v2073
    %v2076 = vunpack.c.l.s4 1414812756
    %v2077 = vunpack.c.0.s8 %v2076
    %v2078 = vlaneseq
    %v2079 = vshrl.u32 %v2078, 7
    %v2080 = vsub.s32 %v2077, %v2079
    %v2081 = vrot.slane %v382, %v2080
    %v2083 = vunpack.c.l.s4 1987475062
    %v2084 = vunpack.c.0.s8 %v2083
    %v2085 = vlaneseq
    %v2086 = vshrl.u32 %v2085, 7
    %v2087 = vsub.s32 %v2084, %v2086
    %v2088 = vrot.slane %v382, %v2087
    %v2090 = vunpack.c.l.s4 269488144
    %v2091 = vunpack.c.0.s8 %v2090
    %v2092 = vlaneseq
    %v2093 = vshrl.u32 %v2092, 7
    %v2094 = vsub.s32 %v2091, %v2093
    %v2095 = vrot.slane %v385, %v2094
    %v2097 = vunpack.c.l.s4 842150450
    %v2098 = vunpack.c.0.s8 %v2097
    %v2099 = vlaneseq
    %v2100 = vshrl.u32 %v2099, 7
    %v2101 = vsub.s32 %v2098, %v2100
    %v2102 = vrot.slane %v385, %v2101
    %v2104 = vunpack.c.l.s4 1414812756
    %v2105 = vunpack.c.0.s8 %v2104
    %v2106 = vlaneseq
    %v2107 = vshrl.u32 %v2106, 7
    %v2108 = vsub.s32 %v2105, %v2107
    %v2109 = vrot.slane %v385, %v2108
    %v2111 = vunpack.c.l.s4 1987475062
    %v2112 = vunpack.c.0.s8 %v2111
    %v2113 = vlaneseq
    %v2114 = vshrl.u32 %v2113, 7
    %v2115 = vsub.s32 %v2112, %v2114
    %v2116 = vrot.slane %v385, %v2115
    %v2118 = vunpack.c.l.s4 269488144
    %v2119 = vunpack.c.0.s8 %v2118
    %v2120 = vlaneseq
    %v2121 = vshrl.u32 %v2120, 7
    %v2122 = vsub.s32 %v2119, %v2121
    %v2123 = vrot.slane %v388, %v2122
    %v2125 = vunpack.c.l.s4 842150450
    %v2126 = vunpack.c.0.s8 %v2125
    %v2127 = vlaneseq
    %v2128 = vshrl.u32 %v2127, 7
    %v2129 = vsub.s32 %v2126, %v2128
    %v2130 = vrot.slane %v388, %v2129
    %v2132 = vunpack.c.l.s4 1414812756
    %v2133 = vunpack.c.0.s8 %v2132
    %v2134 = vlaneseq
    %v2135 = vshrl.u32 %v2134, 7
    %v2136 = vsub.s32 %v2133, %v2135
    %v2137 = vrot.slane %v388, %v2136
    %v2139 = vunpack.c.l.s4 1987475062
    %v2140 = vunpack.c.0.s8 %v2139
    %v2141 = vlaneseq
    %v2142 = vshrl.u32 %v2141, 7
    %v2143 = vsub.s32 %v2140, %v2142
    %v2144 = vrot.slane %v388, %v2143
    %v2146 = vunpack.c.l.s4 269488144
    %v2147 = vunpack.c.0.s8 %v2146
    %v2148 = vlaneseq
    %v2149 = vshrl.u32 %v2148, 7
    %v2150 = vsub.s32 %v2147, %v2149
    %v2151 = vrot.slane %v391, %v2150
    %v2153 = vunpack.c.l.s4 842150450
    %v2154 = vunpack.c.0.s8 %v2153
    %v2155 = vlaneseq
    %v2156 = vshrl.u32 %v2155, 7
    %v2157 = vsub.s32 %v2154, %v2156
    %v2158 = vrot.slane %v391, %v2157
    %v2160 = vunpack.c.l.s4 1414812756
    %v2161 = vunpack.c.0.s8 %v2160
    %v2162 = vlaneseq
    %v2163 = vshrl.u32 %v2162, 7
    %v2164 = vsub.s32 %v2161, %v2163
    %v2165 = vrot.slane %v391, %v2164
    %v2167 = vunpack.c.l.s4 1987475062
    %v2168 = vunpack.c.0.s8 %v2167
    %v2169 = vlaneseq
    %v2170 = vshrl.u32 %v2169, 7
    %v2171 = vsub.s32 %v2168, %v2170
    %v2172 = vrot.slane %v391, %v2171
    %v2174 = vunpack.c.l.s4 269488144
    %v2175 = vunpack.c.0.s8 %v2174
    %v2176 = vlaneseq
    %v2177 = vshrl.u32 %v2176, 7
    %v2178 = vsub.s32 %v2175, %v2177
    %v2179 = vrot.slane %v394, %v2178
    %v2181 = vunpack.c.l.s4 842150450
    %v2182 = vunpack.c.0.s8 %v2181
    %v2183 = vlaneseq
    %v2184 = vshrl.u32 %v2183, 7
    %v2185 = vsub.s32 %v2182, %v2184
    %v2186 = vrot.slane %v394, %v2185
    %v2188 = vunpack.c.l.s4 1414812756
    %v2189 = vunpack.c.0.s8 %v2188
    %v2190 = vlaneseq
    %v2191 = vshrl.u32 %v2190, 7
    %v2192 = vsub.s32 %v2189, %v2191
    %v2193 = vrot.slane %v394, %v2192
    %v2195 = vunpack.c.l.s4 1987475062
    %v2196 = vunpack.c.0.s8 %v2195
    %v2197 = vlaneseq
    %v2198 = vshrl.u32 %v2197, 7
    %v2199 = vsub.s32 %v2196, %v2198
    %v2200 = vrot.slane %v394, %v2199
    %v2202 = vunpack.c.l.s4 269488144
    %v2203 = vunpack.c.0.s8 %v2202
    %v2204 = vlaneseq
    %v2205 = vshrl.u32 %v2204, 7
    %v2206 = vsub.s32 %v2203, %v2205
    %v2207 = vrot.slane %v397, %v2206
    %v2209 = vunpack.c.l.s4 842150450
    %v2210 = vunpack.c.0.s8 %v2209
    %v2211 = vlaneseq
    %v2212 = vshrl.u32 %v2211, 7
    %v2213 = vsub.s32 %v2210, %v2212
    %v2214 = vrot.slane %v397, %v2213
    %v2216 = vunpack.c.l.s4 1414812756
    %v2217 = vunpack.c.0.s8 %v2216
    %v2218 = vlaneseq
    %v2219 = vshrl.u32 %v2218, 7
    %v2220 = vsub.s32 %v2217, %v2219
    %v2221 = vrot.slane %v397, %v2220
    %v2223 = vunpack.c.l.s4 1987475062
    %v2224 = vunpack.c.0.s8 %v2223
    %v2225 = vlaneseq
    %v2226 = vshrl.u32 %v2225, 7
    %v2227 = vsub.s32 %v2224, %v2226
    %v2228 = vrot.slane %v397, %v2227
    %v2230 = vunpack.c.l.s4 269488144
    %v2231 = vunpack.c.0.s8 %v2230
    %v2232 = vlaneseq
    %v2233 = vshrl.u32 %v2232, 7
    %v2234 = vsub.s32 %v2231, %v2233
    %v2235 = vrot.slane %v400, %v2234
    %v2237 = vunpack.c.l.s4 842150450
    %v2238 = vunpack.c.0.s8 %v2237
    %v2239 = vlaneseq
    %v2240 = vshrl.u32 %v2239, 7
    %v2241 = vsub.s32 %v2238, %v2240
    %v2242 = vrot.slane %v400, %v2241
    %v2244 = vunpack.c.l.s4 1414812756
    %v2245 = vunpack.c.0.s8 %v2244
    %v2246 = vlaneseq
    %v2247 = vshrl.u32 %v2246, 7
    %v2248 = vsub.s32 %v2245, %v2247
    %v2249 = vrot.slane %v400, %v2248
    %v2251 = vunpack.c.l.s4 1987475062
    %v2252 = vunpack.c.0.s8 %v2251
    %v2253 = vlaneseq
    %v2254 = vshrl.u32 %v2253, 7
    %v2255 = vsub.s32 %v2252, %v2254
    %v2256 = vrot.slane %v400, %v2255
    %v2257 = vcombine.low %v471, %v478
    %v2258 = vcombine.low %v485, %v492
    %v2260 = vunpack.c.l.s4 1983009808
    %v2261 = vunpack.c.0.s8 %v2260
    %v2262 = vlaneseq
    %v2263 = vshrl.u32 %v2262, 7
    %v2264 = vsub.s32 %v2261, %v2263
    %v2265 = vrot.slane %v2257, %v2264
    %v2267 = vunpack.c.l.s4 1983009808
    %v2268 = vunpack.c.0.s8 %v2267
    %v2269 = vlaneseq
    %v2270 = vshrl.u32 %v2269, 7
    %v2271 = vsub.s32 %v2268, %v2270
    %v2272 = vrot.slane %v2258, %v2271
    %v2273 = vcombine.low %v2265, %v2272
    %v2274 = vcombine.low %v499, %v506
    %v2275 = vcombine.low %v513, %v520
    %v2277 = vunpack.c.l.s4 1983009808
    %v2278 = vunpack.c.0.s8 %v2277
    %v2279 = vlaneseq
    %v2280 = vshrl.u32 %v2279, 7
    %v2281 = vsub.s32 %v2278, %v2280
    %v2282 = vrot.slane %v2274, %v2281
    %v2284 = vunpack.c.l.s4 1983009808
    %v2285 = vunpack.c.0.s8 %v2284
    %v2286 = vlaneseq
    %v2287 = vshrl.u32 %v2286, 7
    %v2288 = vsub.s32 %v2285, %v2287
    %v2289 = vrot.slane %v2275, %v2288
    %v2290 = vcombine.low %v2282, %v2289
    %v2291 = vcombine.low %v527, %v534
    %v2292 = vcombine.low %v541, %v548
    %v2294 = vunpack.c.l.s4 1983009808
    %v2295 = vunpack.c.0.s8 %v2294
    %v2296 = vlaneseq
    %v2297 = vshrl.u32 %v2296, 7
    %v2298 = vsub.s32 %v2295, %v2297
    %v2299 = vrot.slane %v2291, %v2298
    %v2301 = vunpack.c.l.s4 1983009808
    %v2302 = vunpack.c.0.s8 %v2301
    %v2303 = vlaneseq
    %v2304 = vshrl.u32 %v2303, 7
    %v2305 = vsub.s32 %v2302, %v2304
    %v2306 = vrot.slane %v2292, %v2305
    %v2307 = vcombine.low %v2299, %v2306
    %v2308 = vcombine.low %v555, %v562
    %v2309 = vcombine.low %v569, %v576
    %v2311 = vunpack.c.l.s4 1983009808
    %v2312 = vunpack.c.0.s8 %v2311
    %v2313 = vlaneseq
    %v2314 = vshrl.u32 %v2313, 7
    %v2315 = vsub.s32 %v2312, %v2314
    %v2316 = vrot.slane %v2308, %v2315
    %v2318 = vunpack.c.l.s4 1983009808
    %v2319 = vunpack.c.0.s8 %v2318
    %v2320 = vlaneseq
    %v2321 = vshrl.u32 %v2320, 7
    %v2322 = vsub.s32 %v2319, %v2321
    %v2323 = vrot.slane %v2309, %v2322
    %v2324 = vcombine.low %v2316, %v2323
    %v2325 = vcombine.low %v583, %v590
    %v2326 = vcombine.low %v597, %v604
    %v2328 = vunpack.c.l.s4 1983009808
    %v2329 = vunpack.c.0.s8 %v2328
    %v2330 = vlaneseq
    %v2331 = vshrl.u32 %v2330, 7
    %v2332 = vsub.s32 %v2329, %v2331
    %v2333 = vrot.slane %v2325, %v2332
    %v2335 = vunpack.c.l.s4 1983009808
    %v2336 = vunpack.c.0.s8 %v2335
    %v2337 = vlaneseq
    %v2338 = vshrl.u32 %v2337, 7
    %v2339 = vsub.s32 %v2336, %v2338
    %v2340 = vrot.slane %v2326, %v2339
    %v2341 = vcombine.low %v2333, %v2340
    %v2342 = vcombine.low %v611, %v618
    %v2343 = vcombine.low %v625, %v632
    %v2345 = vunpack.c.l.s4 1983009808
    %v2346 = vunpack.c.0.s8 %v2345
    %v2347 = vlaneseq
    %v2348 = vshrl.u32 %v2347, 7
    %v2349 = vsub.s32 %v2346, %v2348
    %v2350 = vrot.slane %v2342, %v2349
    %v2352 = vunpack.c.l.s4 1983009808
    %v2353 = vunpack.c.0.s8 %v2352
    %v2354 = vlaneseq
    %v2355 = vshrl.u32 %v2354, 7
    %v2356 = vsub.s32 %v2353, %v2355
    %v2357 = vrot.slane %v2343, %v2356
    %v2358 = vcombine.low %v2350, %v2357
    %v2359 = vcombine.low %v639, %v646
    %v2360 = vcombine.low %v653, %v660
    %v2362 = vunpack.c.l.s4 1983009808
    %v2363 = vunpack.c.0.s8 %v2362
    %v2364 = vlaneseq
    %v2365 = vshrl.u32 %v2364, 7
    %v2366 = vsub.s32 %v2363, %v2365
    %v2367 = vrot.slane %v2359, %v2366
    %v2369 = vunpack.c.l.s4 1983009808
    %v2370 = vunpack.c.0.s8 %v2369
    %v2371 = vlaneseq
    %v2372 = vshrl.u32 %v2371, 7
    %v2373 = vsub.s32 %v2370, %v2372
    %v2374 = vrot.slane %v2360, %v2373
    %v2375 = vcombine.low %v2367, %v2374
    %v2376 = vcombine.low %v667, %v674
    %v2377 = vcombine.low %v681, %v688
    %v2379 = vunpack.c.l.s4 1983009808
    %v2380 = vunpack.c.0.s8 %v2379
    %v2381 = vlaneseq
    %v2382 = vshrl.u32 %v2381, 7
    %v2383 = vsub.s32 %v2380, %v2382
    %v2384 = vrot.slane %v2376, %v2383
    %v2386 = vunpack.c.l.s4 1983009808
    %v2387 = vunpack.c.0.s8 %v2386
    %v2388 = vlaneseq
    %v2389 = vshrl.u32 %v2388, 7
    %v2390 = vsub.s32 %v2387, %v2389
    %v2391 = vrot.slane %v2377, %v2390
    %v2392 = vcombine.low %v2384, %v2391
    %v2393 = vcombine.low %v695, %v702
    %v2394 = vcombine.low %v709, %v716
    %v2396 = vunpack.c.l.s4 1983009808
    %v2397 = vunpack.c.0.s8 %v2396
    %v2398 = vlaneseq
    %v2399 = vshrl.u32 %v2398, 7
    %v2400 = vsub.s32 %v2397, %v2399
    %v2401 = vrot.slane %v2393, %v2400
    %v2403 = vunpack.c.l.s4 1983009808
    %v2404 = vunpack.c.0.s8 %v2403
    %v2405 = vlaneseq
    %v2406 = vshrl.u32 %v2405, 7
    %v2407 = vsub.s32 %v2404, %v2406
    %v2408 = vrot.slane %v2394, %v2407
    %v2409 = vcombine.low %v2401, %v2408
    %v2410 = vcombine.low %v723, %v730
    %v2411 = vcombine.low %v737, %v744
    %v2413 = vunpack.c.l.s4 1983009808
    %v2414 = vunpack.c.0.s8 %v2413
    %v2415 = vlaneseq
    %v2416 = vshrl.u32 %v2415, 7
    %v2417 = vsub.s32 %v2414, %v2416
    %v2418 = vrot.slane %v2410, %v2417
    %v2420 = vunpack.c.l.s4 1983009808
    %v2421 = vunpack.c.0.s8 %v2420
    %v2422 = vlaneseq
    %v2423 = vshrl.u32 %v2422, 7
    %v2424 = vsub.s32 %v2421, %v2423
    %v2425 = vrot.slane %v2411, %v2424
    %v2426 = vcombine.low %v2418, %v2425
    %v2427 = vcombine.low %v751, %v758
    %v2428 = vcombine.low %v765, %v772
    %v2430 = vunpack.c.l.s4 1983009808
    %v2431 = vunpack.c.0.s8 %v2430
    %v2432 = vlaneseq
    %v2433 = vshrl.u32 %v2432, 7
    %v2434 = vsub.s32 %v2431, %v2433
    %v2435 = vrot.slane %v2427, %v2434
    %v2437 = vunpack.c.l.s4 1983009808
    %v2438 = vunpack.c.0.s8 %v2437
    %v2439 = vlaneseq
    %v2440 = vshrl.u32 %v2439, 7
    %v2441 = vsub.s32 %v2438, %v2440
    %v2442 = vrot.slane %v2428, %v2441
    %v2443 = vcombine.low %v2435, %v2442
    %v2444 = vcombine.low %v779, %v786
    %v2445 = vcombine.low %v793, %v800
    %v2447 = vunpack.c.l.s4 1983009808
    %v2448 = vunpack.c.0.s8 %v2447
    %v2449 = vlaneseq
    %v2450 = vshrl.u32 %v2449, 7
    %v2451 = vsub.s32 %v2448, %v2450
    %v2452 = vrot.slane %v2444, %v2451
    %v2454 = vunpack.c.l.s4 1983009808
    %v2455 = vunpack.c.0.s8 %v2454
    %v2456 = vlaneseq
    %v2457 = vshrl.u32 %v2456, 7
    %v2458 = vsub.s32 %v2455, %v2457
    %v2459 = vrot.slane %v2445, %v2458
    %v2460 = vcombine.low %v2452, %v2459
    %v2461 = vcombine.low %v807, %v814
    %v2462 = vcombine.low %v821, %v828
    %v2464 = vunpack.c.l.s4 1983009808
    %v2465 = vunpack.c.0.s8 %v2464
    %v2466 = vlaneseq
    %v2467 = vshrl.u32 %v2466, 7
    %v2468 = vsub.s32 %v2465, %v2467
    %v2469 = vrot.slane %v2461, %v2468
    %v2471 = vunpack.c.l.s4 1983009808
    %v2472 = vunpack.c.0.s8 %v2471
    %v2473 = vlaneseq
    %v2474 = vshrl.u32 %v2473, 7
    %v2475 = vsub.s32 %v2472, %v2474
    %v2476 = vrot.slane %v2462, %v2475
    %v2477 = vcombine.low %v2469, %v2476
    %v2478 = vcombine.low %v835, %v842
    %v2479 = vcombine.low %v849, %v856
    %v2481 = vunpack.c.l.s4 1983009808
    %v2482 = vunpack.c.0.s8 %v2481
    %v2483 = vlaneseq
    %v2484 = vshrl.u32 %v2483, 7
    %v2485 = vsub.s32 %v2482, %v2484
    %v2486 = vrot.slane %v2478, %v2485
    %v2488 = vunpack.c.l.s4 1983009808
    %v2489 = vunpack.c.0.s8 %v2488
    %v2490 = vlaneseq
    %v2491 = vshrl.u32 %v2490, 7
    %v2492 = vsub.s32 %v2489, %v2491
    %v2493 = vrot.slane %v2479, %v2492
    %v2494 = vcombine.low %v2486, %v2493
    %v2495 = vcombine.low %v863, %v870
    %v2496 = vcombine.low %v877, %v884
    %v2498 = vunpack.c.l.s4 1983009808
    %v2499 = vunpack.c.0.s8 %v2498
    %v2500 = vlaneseq
    %v2501 = vshrl.u32 %v2500, 7
    %v2502 = vsub.s32 %v2499, %v2501
    %v2503 = vrot.slane %v2495, %v2502
    %v2505 = vunpack.c.l.s4 1983009808
    %v2506 = vunpack.c.0.s8 %v2505
    %v2507 = vlaneseq
    %v2508 = vshrl.u32 %v2507, 7
    %v2509 = vsub.s32 %v2506, %v2508
    %v2510 = vrot.slane %v2496, %v2509
    %v2511 = vcombine.low %v2503, %v2510
    %v2512 = vcombine.low %v891, %v898
    %v2513 = vcombine.low %v905, %v912
    %v2515 = vunpack.c.l.s4 1983009808
    %v2516 = vunpack.c.0.s8 %v2515
    %v2517 = vlaneseq
    %v2518 = vshrl.u32 %v2517, 7
    %v2519 = vsub.s32 %v2516, %v2518
    %v2520 = vrot.slane %v2512, %v2519
    %v2522 = vunpack.c.l.s4 1983009808
    %v2523 = vunpack.c.0.s8 %v2522
    %v2524 = vlaneseq
    %v2525 = vshrl.u32 %v2524, 7
    %v2526 = vsub.s32 %v2523, %v2525
    %v2527 = vrot.slane %v2513, %v2526
    %v2528 = vcombine.low %v2520, %v2527
    %v2529 = vcombine.low %v919, %v926
    %v2530 = vcombine.low %v933, %v940
    %v2532 = vunpack.c.l.s4 1983009808
    %v2533 = vunpack.c.0.s8 %v2532
    %v2534 = vlaneseq
    %v2535 = vshrl.u32 %v2534, 7
    %v2536 = vsub.s32 %v2533, %v2535
    %v2537 = vrot.slane %v2529, %v2536
    %v2539 = vunpack.c.l.s4 1983009808
    %v2540 = vunpack.c.0.s8 %v2539
    %v2541 = vlaneseq
    %v2542 = vshrl.u32 %v2541, 7
    %v2543 = vsub.s32 %v2540, %v2542
    %v2544 = vrot.slane %v2530, %v2543
    %v2545 = vcombine.low %v2537, %v2544
    %v2546 = vcombine.low %v947, %v954
    %v2547 = vcombine.low %v961, %v968
    %v2549 = vunpack.c.l.s4 1983009808
    %v2550 = vunpack.c.0.s8 %v2549
    %v2551 = vlaneseq
    %v2552 = vshrl.u32 %v2551, 7
    %v2553 = vsub.s32 %v2550, %v2552
    %v2554 = vrot.slane %v2546, %v2553
    %v2556 = vunpack.c.l.s4 1983009808
    %v2557 = vunpack.c.0.s8 %v2556
    %v2558 = vlaneseq
    %v2559 = vshrl.u32 %v2558, 7
    %v2560 = vsub.s32 %v2557, %v2559
    %v2561 = vrot.slane %v2547, %v2560
    %v2562 = vcombine.low %v2554, %v2561
    %v2563 = vcombine.low %v975, %v982
    %v2564 = vcombine.low %v989, %v996
    %v2566 = vunpack.c.l.s4 1983009808
    %v2567 = vunpack.c.0.s8 %v2566
    %v2568 = vlaneseq
    %v2569 = vshrl.u32 %v2568, 7
    %v2570 = vsub.s32 %v2567, %v2569
    %v2571 = vrot.slane %v2563, %v2570
    %v2573 = vunpack.c.l.s4 1983009808
    %v2574 = vunpack.c.0.s8 %v2573
    %v2575 = vlaneseq
    %v2576 = vshrl.u32 %v2575, 7
    %v2577 = vsub.s32 %v2574, %v2576
    %v2578 = vrot.slane %v2564, %v2577
    %v2579 = vcombine.low %v2571, %v2578
    %v2580 = vcombine.low %v1003, %v1010
    %v2581 = vcombine.low %v1017, %v1024
    %v2583 = vunpack.c.l.s4 1983009808
    %v2584 = vunpack.c.0.s8 %v2583
    %v2585 = vlaneseq
    %v2586 = vshrl.u32 %v2585, 7
    %v2587 = vsub.s32 %v2584, %v2586
    %v2588 = vrot.slane %v2580, %v2587
    %v2590 = vunpack.c.l.s4 1983009808
    %v2591 = vunpack.c.0.s8 %v2590
    %v2592 = vlaneseq
    %v2593 = vshrl.u32 %v2592, 7
    %v2594 = vsub.s32 %v2591, %v2593
    %v2595 = vrot.slane %v2581, %v2594
    %v2596 = vcombine.low %v2588, %v2595
    %v2597 = vcombine.low %v1031, %v1038
    %v2598 = vcombine.low %v1045, %v1052
    %v2600 = vunpack.c.l.s4 1983009808
    %v2601 = vunpack.c.0.s8 %v2600
    %v2602 = vlaneseq
    %v2603 = vshrl.u32 %v2602, 7
    %v2604 = vsub.s32 %v2601, %v2603
    %v2605 = vrot.slane %v2597, %v2604
    %v2607 = vunpack.c.l.s4 1983009808
    %v2608 = vunpack.c.0.s8 %v2607
    %v2609 = vlaneseq
    %v2610 = vshrl.u32 %v2609, 7
    %v2611 = vsub.s32 %v2608, %v2610
    %v2612 = vrot.slane %v2598, %v2611
    %v2613 = vcombine.low %v2605, %v2612
    %v2614 = vcombine.low %v1059, %v1066
    %v2615 = vcombine.low %v1073, %v1080
    %v2617 = vunpack.c.l.s4 1983009808
    %v2618 = vunpack.c.0.s8 %v2617
    %v2619 = vlaneseq
    %v2620 = vshrl.u32 %v2619, 7
    %v2621 = vsub.s32 %v2618, %v2620
    %v2622 = vrot.slane %v2614, %v2621
    %v2624 = vunpack.c.l.s4 1983009808
    %v2625 = vunpack.c.0.s8 %v2624
    %v2626 = vlaneseq
    %v2627 = vshrl.u32 %v2626, 7
    %v2628 = vsub.s32 %v2625, %v2627
    %v2629 = vrot.slane %v2615, %v2628
    %v2630 = vcombine.low %v2622, %v2629
    %v2631 = vcombine.low %v1087, %v1094
    %v2632 = vcombine.low %v1101, %v1108
    %v2634 = vunpack.c.l.s4 1983009808
    %v2635 = vunpack.c.0.s8 %v2634
    %v2636 = vlaneseq
    %v2637 = vshrl.u32 %v2636, 7
    %v2638 = vsub.s32 %v2635, %v2637
    %v2639 = vrot.slane %v2631, %v2638
    %v2641 = vunpack.c.l.s4 1983009808
    %v2642 = vunpack.c.0.s8 %v2641
    %v2643 = vlaneseq
    %v2644 = vshrl.u32 %v2643, 7
    %v2645 = vsub.s32 %v2642, %v2644
    %v2646 = vrot.slane %v2632, %v2645
    %v2647 = vcombine.low %v2639, %v2646
    %v2648 = vcombine.low %v1115, %v1122
    %v2649 = vcombine.low %v1129, %v1136
    %v2651 = vunpack.c.l.s4 1983009808
    %v2652 = vunpack.c.0.s8 %v2651
    %v2653 = vlaneseq
    %v2654 = vshrl.u32 %v2653, 7
    %v2655 = vsub.s32 %v2652, %v2654
    %v2656 = vrot.slane %v2648, %v2655
    %v2658 = vunpack.c.l.s4 1983009808
    %v2659 = vunpack.c.0.s8 %v2658
    %v2660 = vlaneseq
    %v2661 = vshrl.u32 %v2660, 7
    %v2662 = vsub.s32 %v2659, %v2661
    %v2663 = vrot.slane %v2649, %v2662
    %v2664 = vcombine.low %v2656, %v2663
    %v2665 = vcombine.low %v1143, %v1150
    %v2666 = vcombine.low %v1157, %v1164
    %v2668 = vunpack.c.l.s4 1983009808
    %v2669 = vunpack.c.0.s8 %v2668
    %v2670 = vlaneseq
    %v2671 = vshrl.u32 %v2670, 7
    %v2672 = vsub.s32 %v2669, %v2671
    %v2673 = vrot.slane %v2665, %v2672
    %v2675 = vunpack.c.l.s4 1983009808
    %v2676 = vunpack.c.0.s8 %v2675
    %v2677 = vlaneseq
    %v2678 = vshrl.u32 %v2677, 7
    %v2679 = vsub.s32 %v2676, %v2678
    %v2680 = vrot.slane %v2666, %v2679
    %v2681 = vcombine.low %v2673, %v2680
    %v2682 = vcombine.low %v1171, %v1178
    %v2683 = vcombine.low %v1185, %v1192
    %v2685 = vunpack.c.l.s4 1983009808
    %v2686 = vunpack.c.0.s8 %v2685
    %v2687 = vlaneseq
    %v2688 = vshrl.u32 %v2687, 7
    %v2689 = vsub.s32 %v2686, %v2688
    %v2690 = vrot.slane %v2682, %v2689
    %v2692 = vunpack.c.l.s4 1983009808
    %v2693 = vunpack.c.0.s8 %v2692
    %v2694 = vlaneseq
    %v2695 = vshrl.u32 %v2694, 7
    %v2696 = vsub.s32 %v2693, %v2695
    %v2697 = vrot.slane %v2683, %v2696
    %v2698 = vcombine.low %v2690, %v2697
    %v2699 = vcombine.low %v1199, %v1206
    %v2700 = vcombine.low %v1213, %v1220
    %v2702 = vunpack.c.l.s4 1983009808
    %v2703 = vunpack.c.0.s8 %v2702
    %v2704 = vlaneseq
    %v2705 = vshrl.u32 %v2704, 7
    %v2706 = vsub.s32 %v2703, %v2705
    %v2707 = vrot.slane %v2699, %v2706
    %v2709 = vunpack.c.l.s4 1983009808
    %v2710 = vunpack.c.0.s8 %v2709
    %v2711 = vlaneseq
    %v2712 = vshrl.u32 %v2711, 7
    %v2713 = vsub.s32 %v2710, %v2712
    %v2714 = vrot.slane %v2700, %v2713
    %v2715 = vcombine.low %v2707, %v2714
    %v2716 = vcombine.low %v1227, %v1234
    %v2717 = vcombine.low %v1241, %v1248
    %v2719 = vunpack.c.l.s4 1983009808
    %v2720 = vunpack.c.0.s8 %v2719
    %v2721 = vlaneseq
    %v2722 = vshrl.u32 %v2721, 7
    %v2723 = vsub.s32 %v2720, %v2722
    %v2724 = vrot.slane %v2716, %v2723
    %v2726 = vunpack.c.l.s4 1983009808
    %v2727 = vunpack.c.0.s8 %v2726
    %v2728 = vlaneseq
    %v2729 = vshrl.u32 %v2728, 7
    %v2730 = vsub.s32 %v2727, %v2729
    %v2731 = vrot.slane %v2717, %v2730
    %v2732 = vcombine.low %v2724, %v2731
    %v2733 = vcombine.low %v1255, %v1262
    %v2734 = vcombine.low %v1269, %v1276
    %v2736 = vunpack.c.l.s4 1983009808
    %v2737 = vunpack.c.0.s8 %v2736
    %v2738 = vlaneseq
    %v2739 = vshrl.u32 %v2738, 7
    %v2740 = vsub.s32 %v2737, %v2739
    %v2741 = vrot.slane %v2733, %v2740
    %v2743 = vunpack.c.l.s4 1983009808
    %v2744 = vunpack.c.0.s8 %v2743
    %v2745 = vlaneseq
    %v2746 = vshrl.u32 %v2745, 7
    %v2747 = vsub.s32 %v2744, %v2746
    %v2748 = vrot.slane %v2734, %v2747
    %v2749 = vcombine.low %v2741, %v2748
    %v2750 = vcombine.low %v1283, %v1290
    %v2751 = vcombine.low %v1297, %v1304
    %v2753 = vunpack.c.l.s4 1983009808
    %v2754 = vunpack.c.0.s8 %v2753
    %v2755 = vlaneseq
    %v2756 = vshrl.u32 %v2755, 7
    %v2757 = vsub.s32 %v2754, %v2756
    %v2758 = vrot.slane %v2750, %v2757
    %v2760 = vunpack.c.l.s4 1983009808
    %v2761 = vunpack.c.0.s8 %v2760
    %v2762 = vlaneseq
    %v2763 = vshrl.u32 %v2762, 7
    %v2764 = vsub.s32 %v2761, %v2763
    %v2765 = vrot.slane %v2751, %v2764
    %v2766 = vcombine.low %v2758, %v2765
    %v2767 = vcombine.low %v1311, %v1318
    %v2768 = vcombine.low %v1325, %v1332
    %v2770 = vunpack.c.l.s4 1983009808
    %v2771 = vunpack.c.0.s8 %v2770
    %v2772 = vlaneseq
    %v2773 = vshrl.u32 %v2772, 7
    %v2774 = vsub.s32 %v2771, %v2773
    %v2775 = vrot.slane %v2767, %v2774
    %v2777 = vunpack.c.l.s4 1983009808
    %v2778 = vunpack.c.0.s8 %v2777
    %v2779 = vlaneseq
    %v2780 = vshrl.u32 %v2779, 7
    %v2781 = vsub.s32 %v2778, %v2780
    %v2782 = vrot.slane %v2768, %v2781
    %v2783 = vcombine.low %v2775, %v2782
    %v2784 = vcombine.low %v1339, %v1346
    %v2785 = vcombine.low %v1353, %v1360
    %v2787 = vunpack.c.l.s4 1983009808
    %v2788 = vunpack.c.0.s8 %v2787
    %v2789 = vlaneseq
    %v2790 = vshrl.u32 %v2789, 7
    %v2791 = vsub.s32 %v2788, %v2790
    %v2792 = vrot.slane %v2784, %v2791
    %v2794 = vunpack.c.l.s4 1983009808
    %v2795 = vunpack.c.0.s8 %v2794
    %v2796 = vlaneseq
    %v2797 = vshrl.u32 %v2796, 7
    %v2798 = vsub.s32 %v2795, %v2797
    %v2799 = vrot.slane %v2785, %v2798
    %v2800 = vcombine.low %v2792, %v2799
    %v2801 = vcombine.low %v1367, %v1374
    %v2802 = vcombine.low %v1381, %v1388
    %v2804 = vunpack.c.l.s4 1983009808
    %v2805 = vunpack.c.0.s8 %v2804
    %v2806 = vlaneseq
    %v2807 = vshrl.u32 %v2806, 7
    %v2808 = vsub.s32 %v2805, %v2807
    %v2809 = vrot.slane %v2801, %v2808
    %v2811 = vunpack.c.l.s4 1983009808
    %v2812 = vunpack.c.0.s8 %v2811
    %v2813 = vlaneseq
    %v2814 = vshrl.u32 %v2813, 7
    %v2815 = vsub.s32 %v2812, %v2814
    %v2816 = vrot.slane %v2802, %v2815
    %v2817 = vcombine.low %v2809, %v2816
    %v2818 = vcombine.low %v1395, %v1402
    %v2819 = vcombine.low %v1409, %v1416
    %v2821 = vunpack.c.l.s4 1983009808
    %v2822 = vunpack.c.0.s8 %v2821
    %v2823 = vlaneseq
    %v2824 = vshrl.u32 %v2823, 7
    %v2825 = vsub.s32 %v2822, %v2824
    %v2826 = vrot.slane %v2818, %v2825
    %v2828 = vunpack.c.l.s4 1983009808
    %v2829 = vunpack.c.0.s8 %v2828
    %v2830 = vlaneseq
    %v2831 = vshrl.u32 %v2830, 7
    %v2832 = vsub.s32 %v2829, %v2831
    %v2833 = vrot.slane %v2819, %v2832
    %v2834 = vcombine.low %v2826, %v2833
    %v2835 = vcombine.low %v1423, %v1430
    %v2836 = vcombine.low %v1437, %v1444
    %v2838 = vunpack.c.l.s4 1983009808
    %v2839 = vunpack.c.0.s8 %v2838
    %v2840 = vlaneseq
    %v2841 = vshrl.u32 %v2840, 7
    %v2842 = vsub.s32 %v2839, %v2841
    %v2843 = vrot.slane %v2835, %v2842
    %v2845 = vunpack.c.l.s4 1983009808
    %v2846 = vunpack.c.0.s8 %v2845
    %v2847 = vlaneseq
    %v2848 = vshrl.u32 %v2847, 7
    %v2849 = vsub.s32 %v2846, %v2848
    %v2850 = vrot.slane %v2836, %v2849
    %v2851 = vcombine.low %v2843, %v2850
    %v2852 = vcombine.low %v1451, %v1458
    %v2853 = vcombine.low %v1465, %v1472
    %v2855 = vunpack.c.l.s4 1983009808
    %v2856 = vunpack.c.0.s8 %v2855
    %v2857 = vlaneseq
    %v2858 = vshrl.u32 %v2857, 7
    %v2859 = vsub.s32 %v2856, %v2858
    %v2860 = vrot.slane %v2852, %v2859
    %v2862 = vunpack.c.l.s4 1983009808
    %v2863 = vunpack.c.0.s8 %v2862
    %v2864 = vlaneseq
    %v2865 = vshrl.u32 %v2864, 7
    %v2866 = vsub.s32 %v2863, %v2865
    %v2867 = vrot.slane %v2853, %v2866
    %v2868 = vcombine.low %v2860, %v2867
    %v2869 = vcombine.low %v1479, %v1486
    %v2870 = vcombine.low %v1493, %v1500
    %v2872 = vunpack.c.l.s4 1983009808
    %v2873 = vunpack.c.0.s8 %v2872
    %v2874 = vlaneseq
    %v2875 = vshrl.u32 %v2874, 7
    %v2876 = vsub.s32 %v2873, %v2875
    %v2877 = vrot.slane %v2869, %v2876
    %v2879 = vunpack.c.l.s4 1983009808
    %v2880 = vunpack.c.0.s8 %v2879
    %v2881 = vlaneseq
    %v2882 = vshrl.u32 %v2881, 7
    %v2883 = vsub.s32 %v2880, %v2882
    %v2884 = vrot.slane %v2870, %v2883
    %v2885 = vcombine.low %v2877, %v2884
    %v2886 = vcombine.low %v1507, %v1514
    %v2887 = vcombine.low %v1521, %v1528
    %v2889 = vunpack.c.l.s4 1983009808
    %v2890 = vunpack.c.0.s8 %v2889
    %v2891 = vlaneseq
    %v2892 = vshrl.u32 %v2891, 7
    %v2893 = vsub.s32 %v2890, %v2892
    %v2894 = vrot.slane %v2886, %v2893
    %v2896 = vunpack.c.l.s4 1983009808
    %v2897 = vunpack.c.0.s8 %v2896
    %v2898 = vlaneseq
    %v2899 = vshrl.u32 %v2898, 7
    %v2900 = vsub.s32 %v2897, %v2899
    %v2901 = vrot.slane %v2887, %v2900
    %v2902 = vcombine.low %v2894, %v2901
    %v2903 = vcombine.low %v1535, %v1542
    %v2904 = vcombine.low %v1549, %v1556
    %v2906 = vunpack.c.l.s4 1983009808
    %v2907 = vunpack.c.0.s8 %v2906
    %v2908 = vlaneseq
    %v2909 = vshrl.u32 %v2908, 7
    %v2910 = vsub.s32 %v2907, %v2909
    %v2911 = vrot.slane %v2903, %v2910
    %v2913 = vunpack.c.l.s4 1983009808
    %v2914 = vunpack.c.0.s8 %v2913
    %v2915 = vlaneseq
    %v2916 = vshrl.u32 %v2915, 7
    %v2917 = vsub.s32 %v2914, %v2916
    %v2918 = vrot.slane %v2904, %v2917
    %v2919 = vcombine.low %v2911, %v2918
    %v2920 = vcombine.low %v1563, %v1570
    %v2921 = vcombine.low %v1577, %v1584
    %v2923 = vunpack.c.l.s4 1983009808
    %v2924 = vunpack.c.0.s8 %v2923
    %v2925 = vlaneseq
    %v2926 = vshrl.u32 %v2925, 7
    %v2927 = vsub.s32 %v2924, %v2926
    %v2928 = vrot.slane %v2920, %v2927
    %v2930 = vunpack.c.l.s4 1983009808
    %v2931 = vunpack.c.0.s8 %v2930
    %v2932 = vlaneseq
    %v2933 = vshrl.u32 %v2932, 7
    %v2934 = vsub.s32 %v2931, %v2933
    %v2935 = vrot.slane %v2921, %v2934
    %v2936 = vcombine.low %v2928, %v2935
    %v2937 = vcombine.low %v1591, %v1598
    %v2938 = vcombine.low %v1605, %v1612
    %v2940 = vunpack.c.l.s4 1983009808
    %v2941 = vunpack.c.0.s8 %v2940
    %v2942 = vlaneseq
    %v2943 = vshrl.u32 %v2942, 7
    %v2944 = vsub.s32 %v2941, %v2943
    %v2945 = vrot.slane %v2937, %v2944
    %v2947 = vunpack.c.l.s4 1983009808
    %v2948 = vunpack.c.0.s8 %v2947
    %v2949 = vlaneseq
    %v2950 = vshrl.u32 %v2949, 7
    %v2951 = vsub.s32 %v2948, %v2950
    %v2952 = vrot.slane %v2938, %v2951
    %v2953 = vcombine.low %v2945, %v2952
    %v2954 = vcombine.low %v1619, %v1626
    %v2955 = vcombine.low %v1633, %v1640
    %v2957 = vunpack.c.l.s4 1983009808
    %v2958 = vunpack.c.0.s8 %v2957
    %v2959 = vlaneseq
    %v2960 = vshrl.u32 %v2959, 7
    %v2961 = vsub.s32 %v2958, %v2960
    %v2962 = vrot.slane %v2954, %v2961
    %v2964 = vunpack.c.l.s4 1983009808
    %v2965 = vunpack.c.0.s8 %v2964
    %v2966 = vlaneseq
    %v2967 = vshrl.u32 %v2966, 7
    %v2968 = vsub.s32 %v2965, %v2967
    %v2969 = vrot.slane %v2955, %v2968
    %v2970 = vcombine.low %v2962, %v2969
    %v2971 = vcombine.low %v1647, %v1654
    %v2972 = vcombine.low %v1661, %v1668
    %v2974 = vunpack.c.l.s4 1983009808
    %v2975 = vunpack.c.0.s8 %v2974
    %v2976 = vlaneseq
    %v2977 = vshrl.u32 %v2976, 7
    %v2978 = vsub.s32 %v2975, %v2977
    %v2979 = vrot.slane %v2971, %v2978
    %v2981 = vunpack.c.l.s4 1983009808
    %v2982 = vunpack.c.0.s8 %v2981
    %v2983 = vlaneseq
    %v2984 = vshrl.u32 %v2983, 7
    %v2985 = vsub.s32 %v2982, %v2984
    %v2986 = vrot.slane %v2972, %v2985
    %v2987 = vcombine.low %v2979, %v2986
    %v2988 = vcombine.low %v1675, %v1682
    %v2989 = vcombine.low %v1689, %v1696
    %v2991 = vunpack.c.l.s4 1983009808
    %v2992 = vunpack.c.0.s8 %v2991
    %v2993 = vlaneseq
    %v2994 = vshrl.u32 %v2993, 7
    %v2995 = vsub.s32 %v2992, %v2994
    %v2996 = vrot.slane %v2988, %v2995
    %v2998 = vunpack.c.l.s4 1983009808
    %v2999 = vunpack.c.0.s8 %v2998
    %v3000 = vlaneseq
    %v3001 = vshrl.u32 %v3000, 7
    %v3002 = vsub.s32 %v2999, %v3001
    %v3003 = vrot.slane %v2989, %v3002
    %v3004 = vcombine.low %v2996, %v3003
    %v3005 = vcombine.low %v1703, %v1710
    %v3006 = vcombine.low %v1717, %v1724
    %v3008 = vunpack.c.l.s4 1983009808
    %v3009 = vunpack.c.0.s8 %v3008
    %v3010 = vlaneseq
    %v3011 = vshrl.u32 %v3010, 7
    %v3012 = vsub.s32 %v3009, %v3011
    %v3013 = vrot.slane %v3005, %v3012
    %v3015 = vunpack.c.l.s4 1983009808
    %v3016 = vunpack.c.0.s8 %v3015
    %v3017 = vlaneseq
    %v3018 = vshrl.u32 %v3017, 7
    %v3019 = vsub.s32 %v3016, %v3018
    %v3020 = vrot.slane %v3006, %v3019
    %v3021 = vcombine.low %v3013, %v3020
    %v3022 = vcombine.low %v1731, %v1738
    %v3023 = vcombine.low %v1745, %v1752
    %v3025 = vunpack.c.l.s4 1983009808
    %v3026 = vunpack.c.0.s8 %v3025
    %v3027 = vlaneseq
    %v3028 = vshrl.u32 %v3027, 7
    %v3029 = vsub.s32 %v3026, %v3028
    %v3030 = vrot.slane %v3022, %v3029
    %v3032 = vunpack.c.l.s4 1983009808
    %v3033 = vunpack.c.0.s8 %v3032
    %v3034 = vlaneseq
    %v3035 = vshrl.u32 %v3034, 7
    %v3036 = vsub.s32 %v3033, %v3035
    %v3037 = vrot.slane %v3023, %v3036
    %v3038 = vcombine.low %v3030, %v3037
    %v3039 = vcombine.low %v1759, %v1766
    %v3040 = vcombine.low %v1773, %v1780
    %v3042 = vunpack.c.l.s4 1983009808
    %v3043 = vunpack.c.0.s8 %v3042
    %v3044 = vlaneseq
    %v3045 = vshrl.u32 %v3044, 7
    %v3046 = vsub.s32 %v3043, %v3045
    %v3047 = vrot.slane %v3039, %v3046
    %v3049 = vunpack.c.l.s4 1983009808
    %v3050 = vunpack.c.0.s8 %v3049
    %v3051 = vlaneseq
    %v3052 = vshrl.u32 %v3051, 7
    %v3053 = vsub.s32 %v3050, %v3052
    %v3054 = vrot.slane %v3040, %v3053
    %v3055 = vcombine.low %v3047, %v3054
    %v3056 = vcombine.low %v1787, %v1794
    %v3057 = vcombine.low %v1801, %v1808
    %v3059 = vunpack.c.l.s4 1983009808
    %v3060 = vunpack.c.0.s8 %v3059
    %v3061 = vlaneseq
    %v3062 = vshrl.u32 %v3061, 7
    %v3063 = vsub.s32 %v3060, %v3062
    %v3064 = vrot.slane %v3056, %v3063
    %v3066 = vunpack.c.l.s4 1983009808
    %v3067 = vunpack.c.0.s8 %v3066
    %v3068 = vlaneseq
    %v3069 = vshrl.u32 %v3068, 7
    %v3070 = vsub.s32 %v3067, %v3069
    %v3071 = vrot.slane %v3057, %v3070
    %v3072 = vcombine.low %v3064, %v3071
    %v3073 = vcombine.low %v1815, %v1822
    %v3074 = vcombine.low %v1829, %v1836
    %v3076 = vunpack.c.l.s4 1983009808
    %v3077 = vunpack.c.0.s8 %v3076
    %v3078 = vlaneseq
    %v3079 = vshrl.u32 %v3078, 7
    %v3080 = vsub.s32 %v3077, %v3079
    %v3081 = vrot.slane %v3073, %v3080
    %v3083 = vunpack.c.l.s4 1983009808
    %v3084 = vunpack.c.0.s8 %v3083
    %v3085 = vlaneseq
    %v3086 = vshrl.u32 %v3085, 7
    %v3087 = vsub.s32 %v3084, %v3086
    %v3088 = vrot.slane %v3074, %v3087
    %v3089 = vcombine.low %v3081, %v3088
    %v3090 = vcombine.low %v1843, %v1850
    %v3091 = vcombine.low %v1857, %v1864
    %v3093 = vunpack.c.l.s4 1983009808
    %v3094 = vunpack.c.0.s8 %v3093
    %v3095 = vlaneseq
    %v3096 = vshrl.u32 %v3095, 7
    %v3097 = vsub.s32 %v3094, %v3096
    %v3098 = vrot.slane %v3090, %v3097
    %v3100 = vunpack.c.l.s4 1983009808
    %v3101 = vunpack.c.0.s8 %v3100
    %v3102 = vlaneseq
    %v3103 = vshrl.u32 %v3102, 7
    %v3104 = vsub.s32 %v3101, %v3103
    %v3105 = vrot.slane %v3091, %v3104
    %v3106 = vcombine.low %v3098, %v3105
    %v3107 = vcombine.low %v1871, %v1878
    %v3108 = vcombine.low %v1885, %v1892
    %v3110 = vunpack.c.l.s4 1983009808
    %v3111 = vunpack.c.0.s8 %v3110
    %v3112 = vlaneseq
    %v3113 = vshrl.u32 %v3112, 7
    %v3114 = vsub.s32 %v3111, %v3113
    %v3115 = vrot.slane %v3107, %v3114
    %v3117 = vunpack.c.l.s4 1983009808
    %v3118 = vunpack.c.0.s8 %v3117
    %v3119 = vlaneseq
    %v3120 = vshrl.u32 %v3119, 7
    %v3121 = vsub.s32 %v3118, %v3120
    %v3122 = vrot.slane %v3108, %v3121
    %v3123 = vcombine.low %v3115, %v3122
    %v3124 = vcombine.low %v1899, %v1906
    %v3125 = vcombine.low %v1913, %v1920
    %v3127 = vunpack.c.l.s4 1983009808
    %v3128 = vunpack.c.0.s8 %v3127
    %v3129 = vlaneseq
    %v3130 = vshrl.u32 %v3129, 7
    %v3131 = vsub.s32 %v3128, %v3130
    %v3132 = vrot.slane %v3124, %v3131
    %v3134 = vunpack.c.l.s4 1983009808
    %v3135 = vunpack.c.0.s8 %v3134
    %v3136 = vlaneseq
    %v3137 = vshrl.u32 %v3136, 7
    %v3138 = vsub.s32 %v3135, %v3137
    %v3139 = vrot.slane %v3125, %v3138
    %v3140 = vcombine.low %v3132, %v3139
    %v3141 = vcombine.low %v1927, %v1934
    %v3142 = vcombine.low %v1941, %v1948
    %v3144 = vunpack.c.l.s4 1983009808
    %v3145 = vunpack.c.0.s8 %v3144
    %v3146 = vlaneseq
    %v3147 = vshrl.u32 %v3146, 7
    %v3148 = vsub.s32 %v3145, %v3147
    %v3149 = vrot.slane %v3141, %v3148
    %v3151 = vunpack.c.l.s4 1983009808
    %v3152 = vunpack.c.0.s8 %v3151
    %v3153 = vlaneseq
    %v3154 = vshrl.u32 %v3153, 7
    %v3155 = vsub.s32 %v3152, %v3154
    %v3156 = vrot.slane %v3142, %v3155
    %v3157 = vcombine.low %v3149, %v3156
    %v3158 = vcombine.low %v1955, %v1962
    %v3159 = vcombine.low %v1969, %v1976
    %v3161 = vunpack.c.l.s4 1983009808
    %v3162 = vunpack.c.0.s8 %v3161
    %v3163 = vlaneseq
    %v3164 = vshrl.u32 %v3163, 7
    %v3165 = vsub.s32 %v3162, %v3164
    %v3166 = vrot.slane %v3158, %v3165
    %v3168 = vunpack.c.l.s4 1983009808
    %v3169 = vunpack.c.0.s8 %v3168
    %v3170 = vlaneseq
    %v3171 = vshrl.u32 %v3170, 7
    %v3172 = vsub.s32 %v3169, %v3171
    %v3173 = vrot.slane %v3159, %v3172
    %v3174 = vcombine.low %v3166, %v3173
    %v3175 = vcombine.low %v1983, %v1990
    %v3176 = vcombine.low %v1997, %v2004
    %v3178 = vunpack.c.l.s4 1983009808
    %v3179 = vunpack.c.0.s8 %v3178
    %v3180 = vlaneseq
    %v3181 = vshrl.u32 %v3180, 7
    %v3182 = vsub.s32 %v3179, %v3181
    %v3183 = vrot.slane %v3175, %v3182
    %v3185 = vunpack.c.l.s4 1983009808
    %v3186 = vunpack.c.0.s8 %v3185
    %v3187 = vlaneseq
    %v3188 = vshrl.u32 %v3187, 7
    %v3189 = vsub.s32 %v3186, %v3188
    %v3190 = vrot.slane %v3176, %v3189
    %v3191 = vcombine.low %v3183, %v3190
    %v3192 = vcombine.low %v2011, %v2018
    %v3193 = vcombine.low %v2025, %v2032
    %v3195 = vunpack.c.l.s4 1983009808
    %v3196 = vunpack.c.0.s8 %v3195
    %v3197 = vlaneseq
    %v3198 = vshrl.u32 %v3197, 7
    %v3199 = vsub.s32 %v3196, %v3198
    %v3200 = vrot.slane %v3192, %v3199
    %v3202 = vunpack.c.l.s4 1983009808
    %v3203 = vunpack.c.0.s8 %v3202
    %v3204 = vlaneseq
    %v3205 = vshrl.u32 %v3204, 7
    %v3206 = vsub.s32 %v3203, %v3205
    %v3207 = vrot.slane %v3193, %v3206
    %v3208 = vcombine.low %v3200, %v3207
    %v3209 = vcombine.low %v2039, %v2046
    %v3210 = vcombine.low %v2053, %v2060
    %v3212 = vunpack.c.l.s4 1983009808
    %v3213 = vunpack.c.0.s8 %v3212
    %v3214 = vlaneseq
    %v3215 = vshrl.u32 %v3214, 7
    %v3216 = vsub.s32 %v3213, %v3215
    %v3217 = vrot.slane %v3209, %v3216
    %v3219 = vunpack.c.l.s4 1983009808
    %v3220 = vunpack.c.0.s8 %v3219
    %v3221 = vlaneseq
    %v3222 = vshrl.u32 %v3221, 7
    %v3223 = vsub.s32 %v3220, %v3222
    %v3224 = vrot.slane %v3210, %v3223
    %v3225 = vcombine.low %v3217, %v3224
    %v3226 = vcombine.low %v2067, %v2074
    %v3227 = vcombine.low %v2081, %v2088
    %v3229 = vunpack.c.l.s4 1983009808
    %v3230 = vunpack.c.0.s8 %v3229
    %v3231 = vlaneseq
    %v3232 = vshrl.u32 %v3231, 7
    %v3233 = vsub.s32 %v3230, %v3232
    %v3234 = vrot.slane %v3226, %v3233
    %v3236 = vunpack.c.l.s4 1983009808
    %v3237 = vunpack.c.0.s8 %v3236
    %v3238 = vlaneseq
    %v3239 = vshrl.u32 %v3238, 7
    %v3240 = vsub.s32 %v3237, %v3239
    %v3241 = vrot.slane %v3227, %v3240
    %v3242 = vcombine.low %v3234, %v3241
    %v3243 = vcombine.low %v2095, %v2102
    %v3244 = vcombine.low %v2109, %v2116
    %v3246 = vunpack.c.l.s4 1983009808
    %v3247 = vunpack.c.0.s8 %v3246
    %v3248 = vlaneseq
    %v3249 = vshrl.u32 %v3248, 7
    %v3250 = vsub.s32 %v3247, %v3249
    %v3251 = vrot.slane %v3243, %v3250
    %v3253 = vunpack.c.l.s4 1983009808
    %v3254 = vunpack.c.0.s8 %v3253
    %v3255 = vlaneseq
    %v3256 = vshrl.u32 %v3255, 7
    %v3257 = vsub.s32 %v3254, %v3256
    %v3258 = vrot.slane %v3244, %v3257
    %v3259 = vcombine.low %v3251, %v3258
    %v3260 = vcombine.low %v2123, %v2130
    %v3261 = vcombine.low %v2137, %v2144
    %v3263 = vunpack.c.l.s4 1983009808
    %v3264 = vunpack.c.0.s8 %v3263
    %v3265 = vlaneseq
    %v3266 = vshrl.u32 %v3265, 7
    %v3267 = vsub.s32 %v3264, %v3266
    %v3268 = vrot.slane %v3260, %v3267
    %v3270 = vunpack.c.l.s4 1983009808
    %v3271 = vunpack.c.0.s8 %v3270
    %v3272 = vlaneseq
    %v3273 = vshrl.u32 %v3272, 7
    %v3274 = vsub.s32 %v3271, %v3273
    %v3275 = vrot.slane %v3261, %v3274
    %v3276 = vcombine.low %v3268, %v3275
    %v3277 = vcombine.low %v2151, %v2158
    %v3278 = vcombine.low %v2165, %v2172
    %v3280 = vunpack.c.l.s4 1983009808
    %v3281 = vunpack.c.0.s8 %v3280
    %v3282 = vlaneseq
    %v3283 = vshrl.u32 %v3282, 7
    %v3284 = vsub.s32 %v3281, %v3283
    %v3285 = vrot.slane %v3277, %v3284
    %v3287 = vunpack.c.l.s4 1983009808
    %v3288 = vunpack.c.0.s8 %v3287
    %v3289 = vlaneseq
    %v3290 = vshrl.u32 %v3289, 7
    %v3291 = vsub.s32 %v3288, %v3290
    %v3292 = vrot.slane %v3278, %v3291
    %v3293 = vcombine.low %v3285, %v3292
    %v3294 = vcombine.low %v2179, %v2186
    %v3295 = vcombine.low %v2193, %v2200
    %v3297 = vunpack.c.l.s4 1983009808
    %v3298 = vunpack.c.0.s8 %v3297
    %v3299 = vlaneseq
    %v3300 = vshrl.u32 %v3299, 7
    %v3301 = vsub.s32 %v3298, %v3300
    %v3302 = vrot.slane %v3294, %v3301
    %v3304 = vunpack.c.l.s4 1983009808
    %v3305 = vunpack.c.0.s8 %v3304
    %v3306 = vlaneseq
    %v3307 = vshrl.u32 %v3306, 7
    %v3308 = vsub.s32 %v3305, %v3307
    %v3309 = vrot.slane %v3295, %v3308
    %v3310 = vcombine.low %v3302, %v3309
    %v3311 = vcombine.low %v2207, %v2214
    %v3312 = vcombine.low %v2221, %v2228
    %v3314 = vunpack.c.l.s4 1983009808
    %v3315 = vunpack.c.0.s8 %v3314
    %v3316 = vlaneseq
    %v3317 = vshrl.u32 %v3316, 7
    %v3318 = vsub.s32 %v3315, %v3317
    %v3319 = vrot.slane %v3311, %v3318
    %v3321 = vunpack.c.l.s4 1983009808
    %v3322 = vunpack.c.0.s8 %v3321
    %v3323 = vlaneseq
    %v3324 = vshrl.u32 %v3323, 7
    %v3325 = vsub.s32 %v3322, %v3324
    %v3326 = vrot.slane %v3312, %v3325
    %v3327 = vcombine.low %v3319, %v3326
    %v3328 = vcombine.low %v2235, %v2242
    %v3329 = vcombine.low %v2249, %v2256
    %v3331 = vunpack.c.l.s4 1983009808
    %v3332 = vunpack.c.0.s8 %v3331
    %v3333 = vlaneseq
    %v3334 = vshrl.u32 %v3333, 7
    %v3335 = vsub.s32 %v3332, %v3334
    %v3336 = vrot.slane %v3328, %v3335
    %v3338 = vunpack.c.l.s4 1983009808
    %v3339 = vunpack.c.0.s8 %v3338
    %v3340 = vlaneseq
    %v3341 = vshrl.u32 %v3340, 7
    %v3342 = vsub.s32 %v3339, %v3341
    %v3343 = vrot.slane %v3329, %v3342
    %v3344 = vcombine.low %v3336, %v3343
    %3345 = vset.pattern.permute.xlu0 0
    %3346 = vperm.xlu0 %3345, %v2273
    %v3347 = vpop.permute.xlu0 %3346
    %3348 = vset.pattern.permute.xlu0 0
    %3349 = vperm.xlu0 %3348, %v2290
    %v3350 = vpop.permute.xlu0 %3349
    %3351 = vset.pattern.permute.xlu0 0
    %3352 = vperm.xlu0 %3351, %v2307
    %v3353 = vpop.permute.xlu0 %3352
    %3354 = vset.pattern.permute.xlu0 0
    %3355 = vperm.xlu0 %3354, %v2324
    %v3356 = vpop.permute.xlu0 %3355
    %3357 = vset.pattern.permute.xlu0 0
    %3358 = vperm.xlu0 %3357, %v2341
    %v3359 = vpop.permute.xlu0 %3358
    %3360 = vset.pattern.permute.xlu0 0
    %3361 = vperm.xlu0 %3360, %v2358
    %v3362 = vpop.permute.xlu0 %3361
    %3363 = vset.pattern.permute.xlu0 0
    %3364 = vperm.xlu0 %3363, %v2375
    %v3365 = vpop.permute.xlu0 %3364
    %3366 = vset.pattern.permute.xlu0 0
    %3367 = vperm.xlu0 %3366, %v2392
    %v3368 = vpop.permute.xlu0 %3367
    %3369 = vset.pattern.permute.xlu0 0
    %3370 = vperm.xlu0 %3369, %v2409
    %v3371 = vpop.permute.xlu0 %3370
    %3372 = vset.pattern.permute.xlu0 0
    %3373 = vperm.xlu0 %3372, %v2426
    %v3374 = vpop.permute.xlu0 %3373
    %3375 = vset.pattern.permute.xlu0 0
    %3376 = vperm.xlu0 %3375, %v2443
    %v3377 = vpop.permute.xlu0 %3376
    %3378 = vset.pattern.permute.xlu0 0
    %3379 = vperm.xlu0 %3378, %v2460
    %v3380 = vpop.permute.xlu0 %3379
    %3381 = vset.pattern.permute.xlu0 0
    %3382 = vperm.xlu0 %3381, %v2477
    %v3383 = vpop.permute.xlu0 %3382
    %3384 = vset.pattern.permute.xlu0 0
    %3385 = vperm.xlu0 %3384, %v2494
    %v3386 = vpop.permute.xlu0 %3385
    %3387 = vset.pattern.permute.xlu0 0
    %3388 = vperm.xlu0 %3387, %v2511
    %v3389 = vpop.permute.xlu0 %3388
    %3390 = vset.pattern.permute.xlu0 0
    %3391 = vperm.xlu0 %3390, %v2528
    %v3392 = vpop.permute.xlu0 %3391
    %3393 = vset.pattern.permute.xlu0 0
    %3394 = vperm.xlu0 %3393, %v2545
    %v3395 = vpop.permute.xlu0 %3394
    %3396 = vset.pattern.permute.xlu0 0
    %3397 = vperm.xlu0 %3396, %v2562
    %v3398 = vpop.permute.xlu0 %3397
    %3399 = vset.pattern.permute.xlu0 0
    %3400 = vperm.xlu0 %3399, %v2579
    %v3401 = vpop.permute.xlu0 %3400
    %3402 = vset.pattern.permute.xlu0 0
    %3403 = vperm.xlu0 %3402, %v2596
    %v3404 = vpop.permute.xlu0 %3403
    %3405 = vset.pattern.permute.xlu0 0
    %3406 = vperm.xlu0 %3405, %v2613
    %v3407 = vpop.permute.xlu0 %3406
    %3408 = vset.pattern.permute.xlu0 0
    %3409 = vperm.xlu0 %3408, %v2630
    %v3410 = vpop.permute.xlu0 %3409
    %3411 = vset.pattern.permute.xlu0 0
    %3412 = vperm.xlu0 %3411, %v2647
    %v3413 = vpop.permute.xlu0 %3412
    %3414 = vset.pattern.permute.xlu0 0
    %3415 = vperm.xlu0 %3414, %v2664
    %v3416 = vpop.permute.xlu0 %3415
    %3417 = vset.pattern.permute.xlu0 0
    %3418 = vperm.xlu0 %3417, %v2681
    %v3419 = vpop.permute.xlu0 %3418
    %3420 = vset.pattern.permute.xlu0 0
    %3421 = vperm.xlu0 %3420, %v2698
    %v3422 = vpop.permute.xlu0 %3421
    %3423 = vset.pattern.permute.xlu0 0
    %3424 = vperm.xlu0 %3423, %v2715
    %v3425 = vpop.permute.xlu0 %3424
    %3426 = vset.pattern.permute.xlu0 0
    %3427 = vperm.xlu0 %3426, %v2732
    %v3428 = vpop.permute.xlu0 %3427
    %3429 = vset.pattern.permute.xlu0 0
    %3430 = vperm.xlu0 %3429, %v2749
    %v3431 = vpop.permute.xlu0 %3430
    %3432 = vset.pattern.permute.xlu0 0
    %3433 = vperm.xlu0 %3432, %v2766
    %v3434 = vpop.permute.xlu0 %3433
    %3435 = vset.pattern.permute.xlu0 0
    %3436 = vperm.xlu0 %3435, %v2783
    %v3437 = vpop.permute.xlu0 %3436
    %3438 = vset.pattern.permute.xlu0 0
    %3439 = vperm.xlu0 %3438, %v2800
    %v3440 = vpop.permute.xlu0 %3439
    %3441 = vset.pattern.permute.xlu0 0
    %3442 = vperm.xlu0 %3441, %v2817
    %v3443 = vpop.permute.xlu0 %3442
    %3444 = vset.pattern.permute.xlu0 0
    %3445 = vperm.xlu0 %3444, %v2834
    %v3446 = vpop.permute.xlu0 %3445
    %3447 = vset.pattern.permute.xlu0 0
    %3448 = vperm.xlu0 %3447, %v2851
    %v3449 = vpop.permute.xlu0 %3448
    %3450 = vset.pattern.permute.xlu0 0
    %3451 = vperm.xlu0 %3450, %v2868
    %v3452 = vpop.permute.xlu0 %3451
    %3453 = vset.pattern.permute.xlu0 0
    %3454 = vperm.xlu0 %3453, %v2885
    %v3455 = vpop.permute.xlu0 %3454
    %3456 = vset.pattern.permute.xlu0 0
    %3457 = vperm.xlu0 %3456, %v2902
    %v3458 = vpop.permute.xlu0 %3457
    %3459 = vset.pattern.permute.xlu0 0
    %3460 = vperm.xlu0 %3459, %v2919
    %v3461 = vpop.permute.xlu0 %3460
    %3462 = vset.pattern.permute.xlu0 0
    %3463 = vperm.xlu0 %3462, %v2936
    %v3464 = vpop.permute.xlu0 %3463
    %3465 = vset.pattern.permute.xlu0 0
    %3466 = vperm.xlu0 %3465, %v2953
    %v3467 = vpop.permute.xlu0 %3466
    %3468 = vset.pattern.permute.xlu0 0
    %3469 = vperm.xlu0 %3468, %v2970
    %v3470 = vpop.permute.xlu0 %3469
    %3471 = vset.pattern.permute.xlu0 0
    %3472 = vperm.xlu0 %3471, %v2987
    %v3473 = vpop.permute.xlu0 %3472
    %3474 = vset.pattern.permute.xlu0 0
    %3475 = vperm.xlu0 %3474, %v3004
    %v3476 = vpop.permute.xlu0 %3475
    %3477 = vset.pattern.permute.xlu0 0
    %3478 = vperm.xlu0 %3477, %v3021
    %v3479 = vpop.permute.xlu0 %3478
    %3480 = vset.pattern.permute.xlu0 0
    %3481 = vperm.xlu0 %3480, %v3038
    %v3482 = vpop.permute.xlu0 %3481
    %3483 = vset.pattern.permute.xlu0 0
    %3484 = vperm.xlu0 %3483, %v3055
    %v3485 = vpop.permute.xlu0 %3484
    %3486 = vset.pattern.permute.xlu0 0
    %3487 = vperm.xlu0 %3486, %v3072
    %v3488 = vpop.permute.xlu0 %3487
    %3489 = vset.pattern.permute.xlu0 0
    %3490 = vperm.xlu0 %3489, %v3089
    %v3491 = vpop.permute.xlu0 %3490
    %3492 = vset.pattern.permute.xlu0 0
    %3493 = vperm.xlu0 %3492, %v3106
    %v3494 = vpop.permute.xlu0 %3493
    %3495 = vset.pattern.permute.xlu0 0
    %3496 = vperm.xlu0 %3495, %v3123
    %v3497 = vpop.permute.xlu0 %3496
    %3498 = vset.pattern.permute.xlu0 0
    %3499 = vperm.xlu0 %3498, %v3140
    %v3500 = vpop.permute.xlu0 %3499
    %3501 = vset.pattern.permute.xlu0 0
    %3502 = vperm.xlu0 %3501, %v3157
    %v3503 = vpop.permute.xlu0 %3502
    %3504 = vset.pattern.permute.xlu0 0
    %3505 = vperm.xlu0 %3504, %v3174
    %v3506 = vpop.permute.xlu0 %3505
    %3507 = vset.pattern.permute.xlu0 0
    %3508 = vperm.xlu0 %3507, %v3191
    %v3509 = vpop.permute.xlu0 %3508
    %3510 = vset.pattern.permute.xlu0 0
    %3511 = vperm.xlu0 %3510, %v3208
    %v3512 = vpop.permute.xlu0 %3511
    %3513 = vset.pattern.permute.xlu0 0
    %3514 = vperm.xlu0 %3513, %v3225
    %v3515 = vpop.permute.xlu0 %3514
    %3516 = vset.pattern.permute.xlu0 0
    %3517 = vperm.xlu0 %3516, %v3242
    %v3518 = vpop.permute.xlu0 %3517
    %3519 = vset.pattern.permute.xlu0 0
    %3520 = vperm.xlu0 %3519, %v3259
    %v3521 = vpop.permute.xlu0 %3520
    %3522 = vset.pattern.permute.xlu0 0
    %3523 = vperm.xlu0 %3522, %v3276
    %v3524 = vpop.permute.xlu0 %3523
    %3525 = vset.pattern.permute.xlu0 0
    %3526 = vperm.xlu0 %3525, %v3293
    %v3527 = vpop.permute.xlu0 %3526
    %3528 = vset.pattern.permute.xlu0 0
    %3529 = vperm.xlu0 %3528, %v3310
    %v3530 = vpop.permute.xlu0 %3529
    %3531 = vset.pattern.permute.xlu0 0
    %3532 = vperm.xlu0 %3531, %v3327
    %v3533 = vpop.permute.xlu0 %3532
    %3534 = vset.pattern.permute.xlu0 0
    %3535 = vperm.xlu0 %3534, %v3344
    %v3536 = vpop.permute.xlu0 %3535
    %v3537 = vlaneseq
    %v3538 = vand.u32 %v3537, 127
    %v3539 = vlaneseq
    %v3540 = vshrl.u32 %v3539, 7
    %v3541 = vsub.s32 %v3538, %v3540
    %v3542 = vrot.slane %v3347, %v3541
    %v3543 = vadd.s32 %v3538, 4294967288
    %v3544 = vlaneseq
    %v3545 = vshrl.u32 %v3544, 7
    %v3546 = vsub.s32 %v3543, %v3545
    %v3547 = vrot.slane %v3350, %v3546
    %vm3548 = vcmask 130112
    %v3549 = vsel %vm3548, %v3547, %v3542
    %v3550 = vadd.s32 %v3538, 4294967280
    %v3551 = vlaneseq
    %v3552 = vshrl.u32 %v3551, 7
    %v3553 = vsub.s32 %v3550, %v3552
    %v3554 = vrot.slane %v3353, %v3553
    %vm3555 = vcmask 195712
    %v3556 = vsel %vm3555, %v3554, %v3549
    %v3557 = vadd.s32 %v3538, 4294967272
    %v3558 = vlaneseq
    %v3559 = vshrl.u32 %v3558, 7
    %v3560 = vsub.s32 %v3557, %v3559
    %v3561 = vrot.slane %v3356, %v3560
    %vm3562 = vcmask 261312
    %v3563 = vsel %vm3562, %v3561, %v3556
    %v3564 = vadd.s32 %v3538, 4294967264
    %v3565 = vlaneseq
    %v3566 = vshrl.u32 %v3565, 7
    %v3567 = vsub.s32 %v3564, %v3566
    %v3568 = vrot.slane %v3359, %v3567
    %vm3569 = vcmask 326912
    %v3570 = vsel %vm3569, %v3568, %v3563
    %v3571 = vadd.s32 %v3538, 4294967256
    %v3572 = vlaneseq
    %v3573 = vshrl.u32 %v3572, 7
    %v3574 = vsub.s32 %v3571, %v3573
    %v3575 = vrot.slane %v3362, %v3574
    %vm3576 = vcmask 392512
    %v3577 = vsel %vm3576, %v3575, %v3570
    %v3578 = vadd.s32 %v3538, 4294967248
    %v3579 = vlaneseq
    %v3580 = vshrl.u32 %v3579, 7
    %v3581 = vsub.s32 %v3578, %v3580
    %v3582 = vrot.slane %v3365, %v3581
    %vm3583 = vcmask 458112
    %v3584 = vsel %vm3583, %v3582, %v3577
    %v3585 = vadd.s32 %v3538, 4294967240
    %v3586 = vlaneseq
    %v3587 = vshrl.u32 %v3586, 7
    %v3588 = vsub.s32 %v3585, %v3587
    %v3589 = vrot.slane %v3368, %v3588
    %vm3590 = vcmask 523712
    %v3591 = vsel %vm3590, %v3589, %v3584
    %v3592 = vadd.s32 %v3538, 4294967232
    %v3593 = vlaneseq
    %v3594 = vshrl.u32 %v3593, 7
    %v3595 = vsub.s32 %v3592, %v3594
    %v3596 = vrot.slane %v3371, %v3595
    %vm3597 = vcmask 589312
    %v3598 = vsel %vm3597, %v3596, %v3591
    %v3599 = vadd.s32 %v3538, 4294967224
    %v3600 = vlaneseq
    %v3601 = vshrl.u32 %v3600, 7
    %v3602 = vsub.s32 %v3599, %v3601
    %v3603 = vrot.slane %v3374, %v3602
    %vm3604 = vcmask 654912
    %v3605 = vsel %vm3604, %v3603, %v3598
    %v3606 = vadd.s32 %v3538, 4294967216
    %v3607 = vlaneseq
    %v3608 = vshrl.u32 %v3607, 7
    %v3609 = vsub.s32 %v3606, %v3608
    %v3610 = vrot.slane %v3377, %v3609
    %vm3611 = vcmask 720512
    %v3612 = vsel %vm3611, %v3610, %v3605
    %v3613 = vadd.s32 %v3538, 4294967208
    %v3614 = vlaneseq
    %v3615 = vshrl.u32 %v3614, 7
    %v3616 = vsub.s32 %v3613, %v3615
    %v3617 = vrot.slane %v3380, %v3616
    %vm3618 = vcmask 786112
    %v3619 = vsel %vm3618, %v3617, %v3612
    %v3620 = vadd.s32 %v3538, 4294967200
    %v3621 = vlaneseq
    %v3622 = vshrl.u32 %v3621, 7
    %v3623 = vsub.s32 %v3620, %v3622
    %v3624 = vrot.slane %v3383, %v3623
    %vm3625 = vcmask 851712
    %v3626 = vsel %vm3625, %v3624, %v3619
    %v3627 = vadd.s32 %v3538, 4294967192
    %v3628 = vlaneseq
    %v3629 = vshrl.u32 %v3628, 7
    %v3630 = vsub.s32 %v3627, %v3629
    %v3631 = vrot.slane %v3386, %v3630
    %vm3632 = vcmask 917312
    %v3633 = vsel %vm3632, %v3631, %v3626
    %v3634 = vadd.s32 %v3538, 4294967184
    %v3635 = vlaneseq
    %v3636 = vshrl.u32 %v3635, 7
    %v3637 = vsub.s32 %v3634, %v3636
    %v3638 = vrot.slane %v3389, %v3637
    %vm3639 = vcmask 982912
    %v3640 = vsel %vm3639, %v3638, %v3633
    %v3641 = vadd.s32 %v3538, 4294967176
    %v3642 = vlaneseq
    %v3643 = vshrl.u32 %v3642, 7
    %v3644 = vsub.s32 %v3641, %v3643
    %v3645 = vrot.slane %v3392, %v3644
    %vm3646 = vcmask 1048512
    %v3647 = vsel %vm3646, %v3645, %v3640
    %v3648 = vlaneseq
    %v3649 = vshrl.u32 %v3648, 7
    %v3650 = vsub.s32 %v3538, %v3649
    %v3651 = vrot.slane %v3395, %v3650
    %v3652 = vlaneseq
    %v3653 = vshrl.u32 %v3652, 7
    %v3654 = vsub.s32 %v3543, %v3653
    %v3655 = vrot.slane %v3398, %v3654
    %v3656 = vsel %vm3548, %v3655, %v3651
    %v3657 = vlaneseq
    %v3658 = vshrl.u32 %v3657, 7
    %v3659 = vsub.s32 %v3550, %v3658
    %v3660 = vrot.slane %v3401, %v3659
    %v3661 = vsel %vm3555, %v3660, %v3656
    %v3662 = vlaneseq
    %v3663 = vshrl.u32 %v3662, 7
    %v3664 = vsub.s32 %v3557, %v3663
    %v3665 = vrot.slane %v3404, %v3664
    %v3666 = vsel %vm3562, %v3665, %v3661
    %v3667 = vlaneseq
    %v3668 = vshrl.u32 %v3667, 7
    %v3669 = vsub.s32 %v3564, %v3668
    %v3670 = vrot.slane %v3407, %v3669
    %v3671 = vsel %vm3569, %v3670, %v3666
    %v3672 = vlaneseq
    %v3673 = vshrl.u32 %v3672, 7
    %v3674 = vsub.s32 %v3571, %v3673
    %v3675 = vrot.slane %v3410, %v3674
    %v3676 = vsel %vm3576, %v3675, %v3671
    %v3677 = vlaneseq
    %v3678 = vshrl.u32 %v3677, 7
    %v3679 = vsub.s32 %v3578, %v3678
    %v3680 = vrot.slane %v3413, %v3679
    %v3681 = vsel %vm3583, %v3680, %v3676
    %v3682 = vlaneseq
    %v3683 = vshrl.u32 %v3682, 7
    %v3684 = vsub.s32 %v3585, %v3683
    %v3685 = vrot.slane %v3416, %v3684
    %v3686 = vsel %vm3590, %v3685, %v3681
    %v3687 = vlaneseq
    %v3688 = vshrl.u32 %v3687, 7
    %v3689 = vsub.s32 %v3592, %v3688
    %v3690 = vrot.slane %v3419, %v3689
    %v3691 = vsel %vm3597, %v3690, %v3686
    %v3692 = vlaneseq
    %v3693 = vshrl.u32 %v3692, 7
    %v3694 = vsub.s32 %v3599, %v3693
    %v3695 = vrot.slane %v3422, %v3694
    %v3696 = vsel %vm3604, %v3695, %v3691
    %v3697 = vlaneseq
    %v3698 = vshrl.u32 %v3697, 7
    %v3699 = vsub.s32 %v3606, %v3698
    %v3700 = vrot.slane %v3425, %v3699
    %v3701 = vsel %vm3611, %v3700, %v3696
    %v3702 = vlaneseq
    %v3703 = vshrl.u32 %v3702, 7
    %v3704 = vsub.s32 %v3613, %v3703
    %v3705 = vrot.slane %v3428, %v3704
    %v3706 = vsel %vm3618, %v3705, %v3701
    %v3707 = vlaneseq
    %v3708 = vshrl.u32 %v3707, 7
    %v3709 = vsub.s32 %v3620, %v3708
    %v3710 = vrot.slane %v3431, %v3709
    %v3711 = vsel %vm3625, %v3710, %v3706
    %v3712 = vlaneseq
    %v3713 = vshrl.u32 %v3712, 7
    %v3714 = vsub.s32 %v3627, %v3713
    %v3715 = vrot.slane %v3434, %v3714
    %v3716 = vsel %vm3632, %v3715, %v3711
    %v3717 = vlaneseq
    %v3718 = vshrl.u32 %v3717, 7
    %v3719 = vsub.s32 %v3634, %v3718
    %v3720 = vrot.slane %v3437, %v3719
    %v3721 = vsel %vm3639, %v3720, %v3716
    %v3722 = vlaneseq
    %v3723 = vshrl.u32 %v3722, 7
    %v3724 = vsub.s32 %v3641, %v3723
    %v3725 = vrot.slane %v3440, %v3724
    %v3726 = vsel %vm3646, %v3725, %v3721
    %v3727 = vlaneseq
    %v3728 = vshrl.u32 %v3727, 7
    %v3729 = vsub.s32 %v3538, %v3728
    %v3730 = vrot.slane %v3443, %v3729
    %v3731 = vlaneseq
    %v3732 = vshrl.u32 %v3731, 7
    %v3733 = vsub.s32 %v3543, %v3732
    %v3734 = vrot.slane %v3446, %v3733
    %v3735 = vsel %vm3548, %v3734, %v3730
    %v3736 = vlaneseq
    %v3737 = vshrl.u32 %v3736, 7
    %v3738 = vsub.s32 %v3550, %v3737
    %v3739 = vrot.slane %v3449, %v3738
    %v3740 = vsel %vm3555, %v3739, %v3735
    %v3741 = vlaneseq
    %v3742 = vshrl.u32 %v3741, 7
    %v3743 = vsub.s32 %v3557, %v3742
    %v3744 = vrot.slane %v3452, %v3743
    %v3745 = vsel %vm3562, %v3744, %v3740
    %v3746 = vlaneseq
    %v3747 = vshrl.u32 %v3746, 7
    %v3748 = vsub.s32 %v3564, %v3747
    %v3749 = vrot.slane %v3455, %v3748
    %v3750 = vsel %vm3569, %v3749, %v3745
    %v3751 = vlaneseq
    %v3752 = vshrl.u32 %v3751, 7
    %v3753 = vsub.s32 %v3571, %v3752
    %v3754 = vrot.slane %v3458, %v3753
    %v3755 = vsel %vm3576, %v3754, %v3750
    %v3756 = vlaneseq
    %v3757 = vshrl.u32 %v3756, 7
    %v3758 = vsub.s32 %v3578, %v3757
    %v3759 = vrot.slane %v3461, %v3758
    %v3760 = vsel %vm3583, %v3759, %v3755
    %v3761 = vlaneseq
    %v3762 = vshrl.u32 %v3761, 7
    %v3763 = vsub.s32 %v3585, %v3762
    %v3764 = vrot.slane %v3464, %v3763
    %v3765 = vsel %vm3590, %v3764, %v3760
    %v3766 = vlaneseq
    %v3767 = vshrl.u32 %v3766, 7
    %v3768 = vsub.s32 %v3592, %v3767
    %v3769 = vrot.slane %v3467, %v3768
    %v3770 = vsel %vm3597, %v3769, %v3765
    %v3771 = vlaneseq
    %v3772 = vshrl.u32 %v3771, 7
    %v3773 = vsub.s32 %v3599, %v3772
    %v3774 = vrot.slane %v3470, %v3773
    %v3775 = vsel %vm3604, %v3774, %v3770
    %v3776 = vlaneseq
    %v3777 = vshrl.u32 %v3776, 7
    %v3778 = vsub.s32 %v3606, %v3777
    %v3779 = vrot.slane %v3473, %v3778
    %v3780 = vsel %vm3611, %v3779, %v3775
    %v3781 = vlaneseq
    %v3782 = vshrl.u32 %v3781, 7
    %v3783 = vsub.s32 %v3613, %v3782
    %v3784 = vrot.slane %v3476, %v3783
    %v3785 = vsel %vm3618, %v3784, %v3780
    %v3786 = vlaneseq
    %v3787 = vshrl.u32 %v3786, 7
    %v3788 = vsub.s32 %v3620, %v3787
    %v3789 = vrot.slane %v3479, %v3788
    %v3790 = vsel %vm3625, %v3789, %v3785
    %v3791 = vlaneseq
    %v3792 = vshrl.u32 %v3791, 7
    %v3793 = vsub.s32 %v3627, %v3792
    %v3794 = vrot.slane %v3482, %v3793
    %v3795 = vsel %vm3632, %v3794, %v3790
    %v3796 = vlaneseq
    %v3797 = vshrl.u32 %v3796, 7
    %v3798 = vsub.s32 %v3634, %v3797
    %v3799 = vrot.slane %v3485, %v3798
    %v3800 = vsel %vm3639, %v3799, %v3795
    %v3801 = vlaneseq
    %v3802 = vshrl.u32 %v3801, 7
    %v3803 = vsub.s32 %v3641, %v3802
    %v3804 = vrot.slane %v3488, %v3803
    %v3805 = vsel %vm3646, %v3804, %v3800
    %v3806 = vlaneseq
    %v3807 = vshrl.u32 %v3806, 7
    %v3808 = vsub.s32 %v3538, %v3807
    %v3809 = vrot.slane %v3491, %v3808
    %v3810 = vlaneseq
    %v3811 = vshrl.u32 %v3810, 7
    %v3812 = vsub.s32 %v3543, %v3811
    %v3813 = vrot.slane %v3494, %v3812
    %v3814 = vsel %vm3548, %v3813, %v3809
    %v3815 = vlaneseq
    %v3816 = vshrl.u32 %v3815, 7
    %v3817 = vsub.s32 %v3550, %v3816
    %v3818 = vrot.slane %v3497, %v3817
    %v3819 = vsel %vm3555, %v3818, %v3814
    %v3820 = vlaneseq
    %v3821 = vshrl.u32 %v3820, 7
    %v3822 = vsub.s32 %v3557, %v3821
    %v3823 = vrot.slane %v3500, %v3822
    %v3824 = vsel %vm3562, %v3823, %v3819
    %v3825 = vlaneseq
    %v3826 = vshrl.u32 %v3825, 7
    %v3827 = vsub.s32 %v3564, %v3826
    %v3828 = vrot.slane %v3503, %v3827
    %v3829 = vsel %vm3569, %v3828, %v3824
    %v3830 = vlaneseq
    %v3831 = vshrl.u32 %v3830, 7
    %v3832 = vsub.s32 %v3571, %v3831
    %v3833 = vrot.slane %v3506, %v3832
    %v3834 = vsel %vm3576, %v3833, %v3829
    %v3835 = vlaneseq
    %v3836 = vshrl.u32 %v3835, 7
    %v3837 = vsub.s32 %v3578, %v3836
    %v3838 = vrot.slane %v3509, %v3837
    %v3839 = vsel %vm3583, %v3838, %v3834
    %v3840 = vlaneseq
    %v3841 = vshrl.u32 %v3840, 7
    %v3842 = vsub.s32 %v3585, %v3841
    %v3843 = vrot.slane %v3512, %v3842
    %v3844 = vsel %vm3590, %v3843, %v3839
    %v3845 = vlaneseq
    %v3846 = vshrl.u32 %v3845, 7
    %v3847 = vsub.s32 %v3592, %v3846
    %v3848 = vrot.slane %v3515, %v3847
    %v3849 = vsel %vm3597, %v3848, %v3844
    %v3850 = vlaneseq
    %v3851 = vshrl.u32 %v3850, 7
    %v3852 = vsub.s32 %v3599, %v3851
    %v3853 = vrot.slane %v3518, %v3852
    %v3854 = vsel %vm3604, %v3853, %v3849
    %v3855 = vlaneseq
    %v3856 = vshrl.u32 %v3855, 7
    %v3857 = vsub.s32 %v3606, %v3856
    %v3858 = vrot.slane %v3521, %v3857
    %v3859 = vsel %vm3611, %v3858, %v3854
    %v3860 = vlaneseq
    %v3861 = vshrl.u32 %v3860, 7
    %v3862 = vsub.s32 %v3613, %v3861
    %v3863 = vrot.slane %v3524, %v3862
    %v3864 = vsel %vm3618, %v3863, %v3859
    %v3865 = vlaneseq
    %v3866 = vshrl.u32 %v3865, 7
    %v3867 = vsub.s32 %v3620, %v3866
    %v3868 = vrot.slane %v3527, %v3867
    %v3869 = vsel %vm3625, %v3868, %v3864
    %v3870 = vlaneseq
    %v3871 = vshrl.u32 %v3870, 7
    %v3872 = vsub.s32 %v3627, %v3871
    %v3873 = vrot.slane %v3530, %v3872
    %v3874 = vsel %vm3632, %v3873, %v3869
    %v3875 = vlaneseq
    %v3876 = vshrl.u32 %v3875, 7
    %v3877 = vsub.s32 %v3634, %v3876
    %v3878 = vrot.slane %v3533, %v3877
    %v3879 = vsel %vm3639, %v3878, %v3874
    %v3880 = vlaneseq
    %v3881 = vshrl.u32 %v3880, 7
    %v3882 = vsub.s32 %v3641, %v3881
    %v3883 = vrot.slane %v3536, %v3882
    %v3884 = vsel %vm3646, %v3883, %v3879
    %vm3885 = vcmask 1041409
    %v3886 = vsel %vm3885, %v3805, %v3647
    %v3887 = vsel %vm3885, %v3884, %v3726
    %v3888 = vcombine.low %v3886, %v3887
    %v3890 = vunpack.c.l.s4 1983009808
    %v3891 = vunpack.c.0.s8 %v3890
    %v3892 = vlaneseq
    %v3893 = vshrl.u32 %v3892, 7
    %v3894 = vsub.s32 %v3891, %v3893
    %v3895 = vrot.slane %v3888, %v3894
    %v3897 = vadd.f32 %v80, %v3895
    %3898 = vst [vmem:[#allocation2] sm:$0xf] %v3897
    // Predicated region
    $region42: #{tpu_custom_call.1} parent=1 // pred_check
      %p3899 = pneg %p75
    $region43: #{tpu_custom_call.1} parent=1 // pred_check_branch
      %3901 = sbr.rel (%p3899) target = $region45
    $region44: #{tpu_custom_call.1} parent=1 // pred_region
      %v3902 = vld [vmem:[#allocation2] sm:$0xf]
      %v3905 = vunpack.c.l.s4 1983009808
      %v3906 = vunpack.c.0.s8 %v3905
      %v3907 = vlaneseq
      %v3908 = vshrl.u32 %v3907, 7
      %v3909 = vsub.s32 %v3906, %v3908
      %v3910 = vrot.slane %v3902, %v3909
      %v3911 = vcombine.high %v3910, %v3910
      %v3914 = vpack.c.bf16 %v3910, %v3910
      %v3915 = vpack.c.bf16 %v3911, %v3911
      %v3916 = vld [vmem:[#allocation6] sm:$0xff]
      %v3917 = vld [vmem:[#allocation6 + $0x8] sm:$0xff]
      %v3918 = vld [vmem:[#allocation6 + $0x10] sm:$0xff]
      %v3919 = vld [vmem:[#allocation6 + $0x18] sm:$0xff]
      %v3920 = vld [vmem:[#allocation6 + $0x20] sm:$0xff]
      %v3921 = vld [vmem:[#allocation6 + $0x28] sm:$0xff]
      %v3922 = vld [vmem:[#allocation6 + $0x30] sm:$0xff]
      %v3923 = vld [vmem:[#allocation6 + $0x38] sm:$0xff]
      %v3924 = vld [vmem:[#allocation6 + $0x40] sm:$0xff]
      %v3925 = vld [vmem:[#allocation6 + $0x48] sm:$0xff]
      %v3926 = vld [vmem:[#allocation6 + $0x50] sm:$0xff]
      %v3927 = vld [vmem:[#allocation6 + $0x58] sm:$0xff]
      %v3928 = vld [vmem:[#allocation6 + $0x60] sm:$0xff]
      %v3929 = vld [vmem:[#allocation6 + $0x68] sm:$0xff]
      %v3930 = vld [vmem:[#allocation6 + $0x70] sm:$0xff]
      %v3931 = vld [vmem:[#allocation6 + $0x78] sm:$0xff]
      %v3932 = vld [vmem:[#allocation6 + $0x80] sm:$0xff]
      %v3933 = vld [vmem:[#allocation6 + $0x88] sm:$0xff]
      %v3934 = vld [vmem:[#allocation6 + $0x90] sm:$0xff]
      %v3935 = vld [vmem:[#allocation6 + $0x98] sm:$0xff]
      %v3936 = vld [vmem:[#allocation6 + $0xa0] sm:$0xff]
      %v3937 = vld [vmem:[#allocation6 + $0xa8] sm:$0xff]
      %v3938 = vld [vmem:[#allocation6 + $0xb0] sm:$0xff]
      %v3939 = vld [vmem:[#allocation6 + $0xb8] sm:$0xff]
      %v3940 = vld [vmem:[#allocation6 + $0xc0] sm:$0xff]
      %v3941 = vld [vmem:[#allocation6 + $0xc8] sm:$0xff]
      %v3942 = vld [vmem:[#allocation6 + $0xd0] sm:$0xff]
      %v3943 = vld [vmem:[#allocation6 + $0xd8] sm:$0xff]
      %v3944 = vld [vmem:[#allocation6 + $0xe0] sm:$0xff]
      %v3945 = vld [vmem:[#allocation6 + $0xe8] sm:$0xff]
      %v3946 = vld [vmem:[#allocation6 + $0xf0] sm:$0xff]
      %v3947 = vld [vmem:[#allocation6 + $0xf8] sm:$0xff]
      %v3948 = vld [vmem:[#allocation6 + $0x100] sm:$0xff]
      %v3949 = vld [vmem:[#allocation6 + $0x108] sm:$0xff]
      %v3950 = vld [vmem:[#allocation6 + $0x110] sm:$0xff]
      %v3951 = vld [vmem:[#allocation6 + $0x118] sm:$0xff]
      %v3952 = vld [vmem:[#allocation6 + $0x120] sm:$0xff]
      %v3953 = vld [vmem:[#allocation6 + $0x128] sm:$0xff]
      %v3954 = vld [vmem:[#allocation6 + $0x130] sm:$0xff]
      %v3955 = vld [vmem:[#allocation6 + $0x138] sm:$0xff]
      %v3956 = vld [vmem:[#allocation6 + $0x140] sm:$0xff]
      %v3957 = vld [vmem:[#allocation6 + $0x148] sm:$0xff]
      %v3958 = vld [vmem:[#allocation6 + $0x150] sm:$0xff]
      %v3959 = vld [vmem:[#allocation6 + $0x158] sm:$0xff]
      %v3960 = vld [vmem:[#allocation6 + $0x160] sm:$0xff]
      %v3961 = vld [vmem:[#allocation6 + $0x168] sm:$0xff]
      %v3962 = vld [vmem:[#allocation6 + $0x170] sm:$0xff]
      %v3963 = vld [vmem:[#allocation6 + $0x178] sm:$0xff]
      %v3964 = vld [vmem:[#allocation6 + $0x180] sm:$0xff]
      %v3965 = vld [vmem:[#allocation6 + $0x188] sm:$0xff]
      %v3966 = vld [vmem:[#allocation6 + $0x190] sm:$0xff]
      %v3967 = vld [vmem:[#allocation6 + $0x198] sm:$0xff]
      %v3968 = vld [vmem:[#allocation6 + $0x1a0] sm:$0xff]
      %v3969 = vld [vmem:[#allocation6 + $0x1a8] sm:$0xff]
      %v3970 = vld [vmem:[#allocation6 + $0x1b0] sm:$0xff]
      %v3971 = vld [vmem:[#allocation6 + $0x1b8] sm:$0xff]
      %v3972 = vld [vmem:[#allocation6 + $0x1c0] sm:$0xff]
      %v3973 = vld [vmem:[#allocation6 + $0x1c8] sm:$0xff]
      %v3974 = vld [vmem:[#allocation6 + $0x1d0] sm:$0xff]
      %v3975 = vld [vmem:[#allocation6 + $0x1d8] sm:$0xff]
      %v3976 = vld [vmem:[#allocation6 + $0x1e0] sm:$0xff]
      %v3977 = vld [vmem:[#allocation6 + $0x1e8] sm:$0xff]
      %v3978 = vld [vmem:[#allocation6 + $0x1f0] sm:$0xff]
      %v3979 = vld [vmem:[#allocation6 + $0x1f8] sm:$0xff]
      %v3980 = vld [vmem:[#allocation6 + $0x200] sm:$0xff]
      %v3981 = vld [vmem:[#allocation6 + $0x208] sm:$0xff]
      %v3982 = vld [vmem:[#allocation6 + $0x210] sm:$0xff]
      %v3983 = vld [vmem:[#allocation6 + $0x218] sm:$0xff]
      %v3984 = vld [vmem:[#allocation6 + $0x220] sm:$0xff]
      %v3985 = vld [vmem:[#allocation6 + $0x228] sm:$0xff]
      %v3986 = vld [vmem:[#allocation6 + $0x230] sm:$0xff]
      %v3987 = vld [vmem:[#allocation6 + $0x238] sm:$0xff]
      %v3988 = vld [vmem:[#allocation6 + $0x240] sm:$0xff]
      %v3989 = vld [vmem:[#allocation6 + $0x248] sm:$0xff]
      %v3990 = vld [vmem:[#allocation6 + $0x250] sm:$0xff]
      %v3991 = vld [vmem:[#allocation6 + $0x258] sm:$0xff]
      %v3992 = vld [vmem:[#allocation6 + $0x260] sm:$0xff]
      %v3993 = vld [vmem:[#allocation6 + $0x268] sm:$0xff]
      %v3994 = vld [vmem:[#allocation6 + $0x270] sm:$0xff]
      %v3995 = vld [vmem:[#allocation6 + $0x278] sm:$0xff]
      %v3996 = vld [vmem:[#allocation6 + $0x280] sm:$0xff]
      %v3997 = vld [vmem:[#allocation6 + $0x288] sm:$0xff]
      %v3998 = vld [vmem:[#allocation6 + $0x290] sm:$0xff]
      %v3999 = vld [vmem:[#allocation6 + $0x298] sm:$0xff]
      %v4000 = vld [vmem:[#allocation6 + $0x2a0] sm:$0xff]
      %v4001 = vld [vmem:[#allocation6 + $0x2a8] sm:$0xff]
      %v4002 = vld [vmem:[#allocation6 + $0x2b0] sm:$0xff]
      %v4003 = vld [vmem:[#allocation6 + $0x2b8] sm:$0xff]
      %v4004 = vld [vmem:[#allocation6 + $0x2c0] sm:$0xff]
      %v4005 = vld [vmem:[#allocation6 + $0x2c8] sm:$0xff]
      %v4006 = vld [vmem:[#allocation6 + $0x2d0] sm:$0xff]
      %v4007 = vld [vmem:[#allocation6 + $0x2d8] sm:$0xff]
      %v4008 = vld [vmem:[#allocation6 + $0x2e0] sm:$0xff]
      %v4009 = vld [vmem:[#allocation6 + $0x2e8] sm:$0xff]
      %v4010 = vld [vmem:[#allocation6 + $0x2f0] sm:$0xff]
      %v4011 = vld [vmem:[#allocation6 + $0x2f8] sm:$0xff]
      %v4012 = vld [vmem:[#allocation6 + $0x300] sm:$0xff]
      %v4013 = vld [vmem:[#allocation6 + $0x308] sm:$0xff]
      %v4014 = vld [vmem:[#allocation6 + $0x310] sm:$0xff]
      %v4015 = vld [vmem:[#allocation6 + $0x318] sm:$0xff]
      %v4016 = vld [vmem:[#allocation6 + $0x320] sm:$0xff]
      %v4017 = vld [vmem:[#allocation6 + $0x328] sm:$0xff]
      %v4018 = vld [vmem:[#allocation6 + $0x330] sm:$0xff]
      %v4019 = vld [vmem:[#allocation6 + $0x338] sm:$0xff]
      %v4020 = vld [vmem:[#allocation6 + $0x340] sm:$0xff]
      %v4021 = vld [vmem:[#allocation6 + $0x348] sm:$0xff]
      %v4022 = vld [vmem:[#allocation6 + $0x350] sm:$0xff]
      %v4023 = vld [vmem:[#allocation6 + $0x358] sm:$0xff]
      %v4024 = vld [vmem:[#allocation6 + $0x360] sm:$0xff]
      %v4025 = vld [vmem:[#allocation6 + $0x368] sm:$0xff]
      %v4026 = vld [vmem:[#allocation6 + $0x370] sm:$0xff]
      %v4027 = vld [vmem:[#allocation6 + $0x378] sm:$0xff]
      %v4028 = vld [vmem:[#allocation6 + $0x380] sm:$0xff]
      %v4029 = vld [vmem:[#allocation6 + $0x388] sm:$0xff]
      %v4030 = vld [vmem:[#allocation6 + $0x390] sm:$0xff]
      %v4031 = vld [vmem:[#allocation6 + $0x398] sm:$0xff]
      %v4032 = vld [vmem:[#allocation6 + $0x3a0] sm:$0xff]
      %v4033 = vld [vmem:[#allocation6 + $0x3a8] sm:$0xff]
      %v4034 = vld [vmem:[#allocation6 + $0x3b0] sm:$0xff]
      %v4035 = vld [vmem:[#allocation6 + $0x3b8] sm:$0xff]
      %v4036 = vld [vmem:[#allocation6 + $0x3c0] sm:$0xff]
      %v4037 = vld [vmem:[#allocation6 + $0x3c8] sm:$0xff]
      %v4038 = vld [vmem:[#allocation6 + $0x3d0] sm:$0xff]
      %v4039 = vld [vmem:[#allocation6 + $0x3d8] sm:$0xff]
      %v4040 = vld [vmem:[#allocation6 + $0x3e0] sm:$0xff]
      %v4041 = vld [vmem:[#allocation6 + $0x3e8] sm:$0xff]
      %v4042 = vld [vmem:[#allocation6 + $0x3f0] sm:$0xff]
      %v4043 = vld [vmem:[#allocation6 + $0x3f8] sm:$0xff]
      %v4044 = vld [vmem:[#allocation6 + $0x400] sm:$0xff]
      %v4045 = vld [vmem:[#allocation6 + $0x408] sm:$0xff]
      %v4046 = vld [vmem:[#allocation6 + $0x410] sm:$0xff]
      %v4047 = vld [vmem:[#allocation6 + $0x418] sm:$0xff]
      %v4048 = vld [vmem:[#allocation6 + $0x420] sm:$0xff]
      %v4049 = vld [vmem:[#allocation6 + $0x428] sm:$0xff]
      %v4050 = vld [vmem:[#allocation6 + $0x430] sm:$0xff]
      %v4051 = vld [vmem:[#allocation6 + $0x438] sm:$0xff]
      %v4052 = vld [vmem:[#allocation6 + $0x440] sm:$0xff]
      %v4053 = vld [vmem:[#allocation6 + $0x448] sm:$0xff]
      %v4054 = vld [vmem:[#allocation6 + $0x450] sm:$0xff]
      %v4055 = vld [vmem:[#allocation6 + $0x458] sm:$0xff]
      %v4056 = vld [vmem:[#allocation6 + $0x460] sm:$0xff]
      %v4057 = vld [vmem:[#allocation6 + $0x468] sm:$0xff]
      %v4058 = vld [vmem:[#allocation6 + $0x470] sm:$0xff]
      %v4059 = vld [vmem:[#allocation6 + $0x478] sm:$0xff]
      %v4060 = vld [vmem:[#allocation6 + $0x480] sm:$0xff]
      %v4061 = vld [vmem:[#allocation6 + $0x488] sm:$0xff]
      %v4062 = vld [vmem:[#allocation6 + $0x490] sm:$0xff]
      %v4063 = vld [vmem:[#allocation6 + $0x498] sm:$0xff]
      %v4064 = vld [vmem:[#allocation6 + $0x4a0] sm:$0xff]
      %v4065 = vld [vmem:[#allocation6 + $0x4a8] sm:$0xff]
      %v4066 = vld [vmem:[#allocation6 + $0x4b0] sm:$0xff]
      %v4067 = vld [vmem:[#allocation6 + $0x4b8] sm:$0xff]
      %v4068 = vld [vmem:[#allocation6 + $0x4c0] sm:$0xff]
      %v4069 = vld [vmem:[#allocation6 + $0x4c8] sm:$0xff]
      %v4070 = vld [vmem:[#allocation6 + $0x4d0] sm:$0xff]
      %v4071 = vld [vmem:[#allocation6 + $0x4d8] sm:$0xff]
      %v4072 = vld [vmem:[#allocation6 + $0x4e0] sm:$0xff]
      %v4073 = vld [vmem:[#allocation6 + $0x4e8] sm:$0xff]
      %v4074 = vld [vmem:[#allocation6 + $0x4f0] sm:$0xff]
      %v4075 = vld [vmem:[#allocation6 + $0x4f8] sm:$0xff]
      %v4076 = vld [vmem:[#allocation8] sm:$0xff]
      %v4077 = vld [vmem:[#allocation8 + $0x8] sm:$0x3]
      %v4080 = vlaneseq
      %v4081 = vshrl.u32 %v4080, 7
      %v4082 = vsub.s32 0, %v4081
      %v4083 = vrot.slane %v4076, %v4082
      %v4084 = vlaneseq
      %v4085 = vshrl.u32 %v4084, 7
      %v4086 = vsub.s32 1, %v4085
      %v4087 = vrot.slane %v4076, %v4086
      %v4088 = vlaneseq
      %v4089 = vshrl.u32 %v4088, 7
      %v4090 = vsub.s32 2, %v4089
      %v4091 = vrot.slane %v4076, %v4090
      %v4092 = vlaneseq
      %v4093 = vshrl.u32 %v4092, 7
      %v4094 = vsub.s32 3, %v4093
      %v4095 = vrot.slane %v4076, %v4094
      %v4096 = vlaneseq
      %v4097 = vshrl.u32 %v4096, 7
      %v4098 = vsub.s32 4, %v4097
      %v4099 = vrot.slane %v4076, %v4098
      %v4100 = vlaneseq
      %v4101 = vshrl.u32 %v4100, 7
      %v4102 = vsub.s32 5, %v4101
      %v4103 = vrot.slane %v4076, %v4102
      %v4104 = vlaneseq
      %v4105 = vshrl.u32 %v4104, 7
      %v4106 = vsub.s32 6, %v4105
      %v4107 = vrot.slane %v4076, %v4106
      %v4108 = vlaneseq
      %v4109 = vshrl.u32 %v4108, 7
      %v4110 = vsub.s32 7, %v4109
      %v4111 = vrot.slane %v4076, %v4110
      %v4112 = vlaneseq
      %v4113 = vshrl.u32 %v4112, 7
      %v4114 = vsub.s32 0, %v4113
      %v4115 = vrot.slane %v4077, %v4114
      %v4116 = vlaneseq
      %v4117 = vshrl.u32 %v4116, 7
      %v4118 = vsub.s32 1, %v4117
      %v4119 = vrot.slane %v4077, %v4118
      %v4290 = vunpack.c.l.b16 %v3916
      %v4291 = vunpack.c.h.b16 %v3916
      %v4292 = vunpack.c.l.b16 %v3917
      %v4293 = vunpack.c.h.b16 %v3917
      %v4294 = vunpack.c.l.b16 %v3918
      %v4295 = vunpack.c.h.b16 %v3918
      %v4296 = vunpack.c.l.b16 %v3919
      %v4297 = vunpack.c.h.b16 %v3919
      %v4298 = vunpack.c.l.b16 %v3920
      %v4299 = vunpack.c.h.b16 %v3920
      %v4300 = vunpack.c.l.b16 %v3921
      %v4301 = vunpack.c.h.b16 %v3921
      %v4302 = vunpack.c.l.b16 %v3922
      %v4303 = vunpack.c.h.b16 %v3922
      %v4304 = vunpack.c.l.b16 %v3923
      %v4305 = vunpack.c.h.b16 %v3923
      %v4306 = vunpack.c.l.b16 %v3924
      %v4307 = vunpack.c.h.b16 %v3924
      %v4308 = vunpack.c.l.b16 %v3925
      %v4309 = vunpack.c.h.b16 %v3925
      %v4310 = vunpack.c.l.b16 %v3926
      %v4311 = vunpack.c.h.b16 %v3926
      %v4312 = vunpack.c.l.b16 %v3927
      %v4313 = vunpack.c.h.b16 %v3927
      %v4314 = vunpack.c.l.b16 %v3928
      %v4315 = vunpack.c.h.b16 %v3928
      %v4316 = vunpack.c.l.b16 %v3929
      %v4317 = vunpack.c.h.b16 %v3929
      %v4318 = vunpack.c.l.b16 %v3930
      %v4319 = vunpack.c.h.b16 %v3930
      %v4320 = vunpack.c.l.b16 %v3931
      %v4321 = vunpack.c.h.b16 %v3931
      %v4322 = vunpack.c.l.b16 %v3932
      %v4323 = vunpack.c.h.b16 %v3932
      %v4324 = vunpack.c.l.b16 %v3933
      %v4325 = vunpack.c.h.b16 %v3933
      %v4326 = vunpack.c.l.b16 %v3934
      %v4327 = vunpack.c.h.b16 %v3934
      %v4328 = vunpack.c.l.b16 %v3935
      %v4329 = vunpack.c.h.b16 %v3935
      %v4330 = vunpack.c.l.b16 %v3936
      %v4331 = vunpack.c.h.b16 %v3936
      %v4332 = vunpack.c.l.b16 %v3937
      %v4333 = vunpack.c.h.b16 %v3937
      %v4334 = vunpack.c.l.b16 %v3938
      %v4335 = vunpack.c.h.b16 %v3938
      %v4336 = vunpack.c.l.b16 %v3939
      %v4337 = vunpack.c.h.b16 %v3939
      %v4338 = vunpack.c.l.b16 %v3940
      %v4339 = vunpack.c.h.b16 %v3940
      %v4340 = vunpack.c.l.b16 %v3941
      %v4341 = vunpack.c.h.b16 %v3941
      %v4342 = vunpack.c.l.b16 %v3942
      %v4343 = vunpack.c.h.b16 %v3942
      %v4344 = vunpack.c.l.b16 %v3943
      %v4345 = vunpack.c.h.b16 %v3943
      %v4346 = vunpack.c.l.b16 %v3944
      %v4347 = vunpack.c.h.b16 %v3944
      %v4348 = vunpack.c.l.b16 %v3945
      %v4349 = vunpack.c.h.b16 %v3945
      %v4350 = vunpack.c.l.b16 %v3946
      %v4351 = vunpack.c.h.b16 %v3946
      %v4352 = vunpack.c.l.b16 %v3947
      %v4353 = vunpack.c.h.b16 %v3947
      %v4354 = vunpack.c.l.b16 %v3948
      %v4355 = vunpack.c.h.b16 %v3948
      %v4356 = vunpack.c.l.b16 %v3949
      %v4357 = vunpack.c.h.b16 %v3949
      %v4358 = vunpack.c.l.b16 %v3950
      %v4359 = vunpack.c.h.b16 %v3950
      %v4360 = vunpack.c.l.b16 %v3951
      %v4361 = vunpack.c.h.b16 %v3951
      %v4362 = vunpack.c.l.b16 %v3952
      %v4363 = vunpack.c.h.b16 %v3952
      %v4364 = vunpack.c.l.b16 %v3953
      %v4365 = vunpack.c.h.b16 %v3953
      %v4366 = vunpack.c.l.b16 %v3954
      %v4367 = vunpack.c.h.b16 %v3954
      %v4368 = vunpack.c.l.b16 %v3955
      %v4369 = vunpack.c.h.b16 %v3955
      %v4370 = vunpack.c.l.b16 %v3956
      %v4371 = vunpack.c.h.b16 %v3956
      %v4372 = vunpack.c.l.b16 %v3957
      %v4373 = vunpack.c.h.b16 %v3957
      %v4374 = vunpack.c.l.b16 %v3958
      %v4375 = vunpack.c.h.b16 %v3958
      %v4376 = vunpack.c.l.b16 %v3959
      %v4377 = vunpack.c.h.b16 %v3959
      %v4378 = vunpack.c.l.b16 %v3960
      %v4379 = vunpack.c.h.b16 %v3960
      %v4380 = vunpack.c.l.b16 %v3961
      %v4381 = vunpack.c.h.b16 %v3961
      %v4382 = vunpack.c.l.b16 %v3962
      %v4383 = vunpack.c.h.b16 %v3962
      %v4384 = vunpack.c.l.b16 %v3963
      %v4385 = vunpack.c.h.b16 %v3963
      %v4386 = vunpack.c.l.b16 %v3964
      %v4387 = vunpack.c.h.b16 %v3964
      %v4388 = vunpack.c.l.b16 %v3965
      %v4389 = vunpack.c.h.b16 %v3965
      %v4390 = vunpack.c.l.b16 %v3966
      %v4391 = vunpack.c.h.b16 %v3966
      %v4392 = vunpack.c.l.b16 %v3967
      %v4393 = vunpack.c.h.b16 %v3967
      %v4394 = vunpack.c.l.b16 %v3968
      %v4395 = vunpack.c.h.b16 %v3968
      %v4396 = vunpack.c.l.b16 %v3969
      %v4397 = vunpack.c.h.b16 %v3969
      %v4398 = vunpack.c.l.b16 %v3970
      %v4399 = vunpack.c.h.b16 %v3970
      %v4400 = vunpack.c.l.b16 %v3971
      %v4401 = vunpack.c.h.b16 %v3971
      %v4402 = vunpack.c.l.b16 %v3972
      %v4403 = vunpack.c.h.b16 %v3972
      %v4404 = vunpack.c.l.b16 %v3973
      %v4405 = vunpack.c.h.b16 %v3973
      %v4406 = vunpack.c.l.b16 %v3974
      %v4407 = vunpack.c.h.b16 %v3974
      %v4408 = vunpack.c.l.b16 %v3975
      %v4409 = vunpack.c.h.b16 %v3975
      %v4410 = vunpack.c.l.b16 %v3976
      %v4411 = vunpack.c.h.b16 %v3976
      %v4412 = vunpack.c.l.b16 %v3977
      %v4413 = vunpack.c.h.b16 %v3977
      %v4414 = vunpack.c.l.b16 %v3978
      %v4415 = vunpack.c.h.b16 %v3978
      %v4416 = vunpack.c.l.b16 %v3979
      %v4417 = vunpack.c.h.b16 %v3979
      %v4418 = vunpack.c.l.b16 %v3980
      %v4419 = vunpack.c.h.b16 %v3980
      %v4420 = vunpack.c.l.b16 %v3981
      %v4421 = vunpack.c.h.b16 %v3981
      %v4422 = vunpack.c.l.b16 %v3982
      %v4423 = vunpack.c.h.b16 %v3982
      %v4424 = vunpack.c.l.b16 %v3983
      %v4425 = vunpack.c.h.b16 %v3983
      %v4426 = vunpack.c.l.b16 %v3984
      %v4427 = vunpack.c.h.b16 %v3984
      %v4428 = vunpack.c.l.b16 %v3985
      %v4429 = vunpack.c.h.b16 %v3985
      %v4430 = vunpack.c.l.b16 %v3986
      %v4431 = vunpack.c.h.b16 %v3986
      %v4432 = vunpack.c.l.b16 %v3987
      %v4433 = vunpack.c.h.b16 %v3987
      %v4434 = vunpack.c.l.b16 %v3988
      %v4435 = vunpack.c.h.b16 %v3988
      %v4436 = vunpack.c.l.b16 %v3989
      %v4437 = vunpack.c.h.b16 %v3989
      %v4438 = vunpack.c.l.b16 %v3990
      %v4439 = vunpack.c.h.b16 %v3990
      %v4440 = vunpack.c.l.b16 %v3991
      %v4441 = vunpack.c.h.b16 %v3991
      %v4442 = vunpack.c.l.b16 %v3992
      %v4443 = vunpack.c.h.b16 %v3992
      %v4444 = vunpack.c.l.b16 %v3993
      %v4445 = vunpack.c.h.b16 %v3993
      %v4446 = vunpack.c.l.b16 %v3994
      %v4447 = vunpack.c.h.b16 %v3994
      %v4448 = vunpack.c.l.b16 %v3995
      %v4449 = vunpack.c.h.b16 %v3995
      %v4450 = vunpack.c.l.b16 %v3996
      %v4451 = vunpack.c.h.b16 %v3996
      %v4452 = vunpack.c.l.b16 %v3997
      %v4453 = vunpack.c.h.b16 %v3997
      %v4454 = vunpack.c.l.b16 %v3998
      %v4455 = vunpack.c.h.b16 %v3998
      %v4456 = vunpack.c.l.b16 %v3999
      %v4457 = vunpack.c.h.b16 %v3999
      %v4458 = vunpack.c.l.b16 %v4000
      %v4459 = vunpack.c.h.b16 %v4000
      %v4460 = vunpack.c.l.b16 %v4001
      %v4461 = vunpack.c.h.b16 %v4001
      %v4462 = vunpack.c.l.b16 %v4002
      %v4463 = vunpack.c.h.b16 %v4002
      %v4464 = vunpack.c.l.b16 %v4003
      %v4465 = vunpack.c.h.b16 %v4003
      %v4466 = vunpack.c.l.b16 %v4004
      %v4467 = vunpack.c.h.b16 %v4004
      %v4468 = vunpack.c.l.b16 %v4005
      %v4469 = vunpack.c.h.b16 %v4005
      %v4470 = vunpack.c.l.b16 %v4006
      %v4471 = vunpack.c.h.b16 %v4006
      %v4472 = vunpack.c.l.b16 %v4007
      %v4473 = vunpack.c.h.b16 %v4007
      %v4474 = vunpack.c.l.b16 %v4008
      %v4475 = vunpack.c.h.b16 %v4008
      %v4476 = vunpack.c.l.b16 %v4009
      %v4477 = vunpack.c.h.b16 %v4009
      %v4478 = vunpack.c.l.b16 %v4010
      %v4479 = vunpack.c.h.b16 %v4010
      %v4480 = vunpack.c.l.b16 %v4011
      %v4481 = vunpack.c.h.b16 %v4011
      %v4482 = vunpack.c.l.b16 %v4012
      %v4483 = vunpack.c.h.b16 %v4012
      %v4484 = vunpack.c.l.b16 %v4013
      %v4485 = vunpack.c.h.b16 %v4013
      %v4486 = vunpack.c.l.b16 %v4014
      %v4487 = vunpack.c.h.b16 %v4014
      %v4488 = vunpack.c.l.b16 %v4015
      %v4489 = vunpack.c.h.b16 %v4015
      %v4490 = vunpack.c.l.b16 %v4016
      %v4491 = vunpack.c.h.b16 %v4016
      %v4492 = vunpack.c.l.b16 %v4017
      %v4493 = vunpack.c.h.b16 %v4017
      %v4494 = vunpack.c.l.b16 %v4018
      %v4495 = vunpack.c.h.b16 %v4018
      %v4496 = vunpack.c.l.b16 %v4019
      %v4497 = vunpack.c.h.b16 %v4019
      %v4498 = vunpack.c.l.b16 %v4020
      %v4499 = vunpack.c.h.b16 %v4020
      %v4500 = vunpack.c.l.b16 %v4021
      %v4501 = vunpack.c.h.b16 %v4021
      %v4502 = vunpack.c.l.b16 %v4022
      %v4503 = vunpack.c.h.b16 %v4022
      %v4504 = vunpack.c.l.b16 %v4023
      %v4505 = vunpack.c.h.b16 %v4023
      %v4506 = vunpack.c.l.b16 %v4024
      %v4507 = vunpack.c.h.b16 %v4024
      %v4508 = vunpack.c.l.b16 %v4025
      %v4509 = vunpack.c.h.b16 %v4025
      %v4510 = vunpack.c.l.b16 %v4026
      %v4511 = vunpack.c.h.b16 %v4026
      %v4512 = vunpack.c.l.b16 %v4027
      %v4513 = vunpack.c.h.b16 %v4027
      %v4514 = vunpack.c.l.b16 %v4028
      %v4515 = vunpack.c.h.b16 %v4028
      %v4516 = vunpack.c.l.b16 %v4029
      %v4517 = vunpack.c.h.b16 %v4029
      %v4518 = vunpack.c.l.b16 %v4030
      %v4519 = vunpack.c.h.b16 %v4030
      %v4520 = vunpack.c.l.b16 %v4031
      %v4521 = vunpack.c.h.b16 %v4031
      %v4522 = vunpack.c.l.b16 %v4032
      %v4523 = vunpack.c.h.b16 %v4032
      %v4524 = vunpack.c.l.b16 %v4033
      %v4525 = vunpack.c.h.b16 %v4033
      %v4526 = vunpack.c.l.b16 %v4034
      %v4527 = vunpack.c.h.b16 %v4034
      %v4528 = vunpack.c.l.b16 %v4035
      %v4529 = vunpack.c.h.b16 %v4035
      %v4530 = vunpack.c.l.b16 %v4036
      %v4531 = vunpack.c.h.b16 %v4036
      %v4532 = vunpack.c.l.b16 %v4037
      %v4533 = vunpack.c.h.b16 %v4037
      %v4534 = vunpack.c.l.b16 %v4038
      %v4535 = vunpack.c.h.b16 %v4038
      %v4536 = vunpack.c.l.b16 %v4039
      %v4537 = vunpack.c.h.b16 %v4039
      %v4538 = vunpack.c.l.b16 %v4040
      %v4539 = vunpack.c.h.b16 %v4040
      %v4540 = vunpack.c.l.b16 %v4041
      %v4541 = vunpack.c.h.b16 %v4041
      %v4542 = vunpack.c.l.b16 %v4042
      %v4543 = vunpack.c.h.b16 %v4042
      %v4544 = vunpack.c.l.b16 %v4043
      %v4545 = vunpack.c.h.b16 %v4043
      %v4546 = vunpack.c.l.b16 %v4044
      %v4547 = vunpack.c.h.b16 %v4044
      %v4548 = vunpack.c.l.b16 %v4045
      %v4549 = vunpack.c.h.b16 %v4045
      %v4550 = vunpack.c.l.b16 %v4046
      %v4551 = vunpack.c.h.b16 %v4046
      %v4552 = vunpack.c.l.b16 %v4047
      %v4553 = vunpack.c.h.b16 %v4047
      %v4554 = vunpack.c.l.b16 %v4048
      %v4555 = vunpack.c.h.b16 %v4048
      %v4556 = vunpack.c.l.b16 %v4049
      %v4557 = vunpack.c.h.b16 %v4049
      %v4558 = vunpack.c.l.b16 %v4050
      %v4559 = vunpack.c.h.b16 %v4050
      %v4560 = vunpack.c.l.b16 %v4051
      %v4561 = vunpack.c.h.b16 %v4051
      %v4562 = vunpack.c.l.b16 %v4052
      %v4563 = vunpack.c.h.b16 %v4052
      %v4564 = vunpack.c.l.b16 %v4053
      %v4565 = vunpack.c.h.b16 %v4053
      %v4566 = vunpack.c.l.b16 %v4054
      %v4567 = vunpack.c.h.b16 %v4054
      %v4568 = vunpack.c.l.b16 %v4055
      %v4569 = vunpack.c.h.b16 %v4055
      %v4570 = vunpack.c.l.b16 %v4056
      %v4571 = vunpack.c.h.b16 %v4056
      %v4572 = vunpack.c.l.b16 %v4057
      %v4573 = vunpack.c.h.b16 %v4057
      %v4574 = vunpack.c.l.b16 %v4058
      %v4575 = vunpack.c.h.b16 %v4058
      %v4576 = vunpack.c.l.b16 %v4059
      %v4577 = vunpack.c.h.b16 %v4059
      %v4578 = vunpack.c.l.b16 %v4060
      %v4579 = vunpack.c.h.b16 %v4060
      %v4580 = vunpack.c.l.b16 %v4061
      %v4581 = vunpack.c.h.b16 %v4061
      %v4582 = vunpack.c.l.b16 %v4062
      %v4583 = vunpack.c.h.b16 %v4062
      %v4584 = vunpack.c.l.b16 %v4063
      %v4585 = vunpack.c.h.b16 %v4063
      %v4586 = vunpack.c.l.b16 %v4064
      %v4587 = vunpack.c.h.b16 %v4064
      %v4588 = vunpack.c.l.b16 %v4065
      %v4589 = vunpack.c.h.b16 %v4065
      %v4590 = vunpack.c.l.b16 %v4066
      %v4591 = vunpack.c.h.b16 %v4066
      %v4592 = vunpack.c.l.b16 %v4067
      %v4593 = vunpack.c.h.b16 %v4067
      %v4594 = vunpack.c.l.b16 %v4068
      %v4595 = vunpack.c.h.b16 %v4068
      %v4596 = vunpack.c.l.b16 %v4069
      %v4597 = vunpack.c.h.b16 %v4069
      %v4598 = vunpack.c.l.b16 %v4070
      %v4599 = vunpack.c.h.b16 %v4070
      %v4600 = vunpack.c.l.b16 %v4071
      %v4601 = vunpack.c.h.b16 %v4071
      %v4602 = vunpack.c.l.b16 %v4072
      %v4603 = vunpack.c.h.b16 %v4072
      %v4604 = vunpack.c.l.b16 %v4073
      %v4605 = vunpack.c.h.b16 %v4073
      %v4606 = vunpack.c.l.b16 %v4074
      %v4607 = vunpack.c.h.b16 %v4074
      %v4608 = vunpack.c.l.b16 %v4075
      %v4609 = vunpack.c.h.b16 %v4075
      %v4610 = vpack.c.b16 %v4300, %v4290
      %v4611 = vpack.c.b16 %v4301, %v4291
      %v4612 = vpack.c.b16 %v4302, %v4292
      %v4613 = vpack.c.b16 %v4303, %v4293
      %v4614 = vpack.c.b16 %v4304, %v4294
      %v4615 = vpack.c.b16 %v4305, %v4295
      %v4616 = vpack.c.b16 %v4306, %v4296
      %v4617 = vpack.c.b16 %v4307, %v4297
      %v4618 = vpack.c.b16 %v4308, %v4298
      %v4619 = vpack.c.b16 %v4309, %v4299
      %v4620 = vpack.c.b16 %v4320, %v4310
      %v4621 = vpack.c.b16 %v4321, %v4311
      %v4622 = vpack.c.b16 %v4322, %v4312
      %v4623 = vpack.c.b16 %v4323, %v4313
      %v4624 = vpack.c.b16 %v4324, %v4314
      %v4625 = vpack.c.b16 %v4325, %v4315
      %v4626 = vpack.c.b16 %v4326, %v4316
      %v4627 = vpack.c.b16 %v4327, %v4317
      %v4628 = vpack.c.b16 %v4328, %v4318
      %v4629 = vpack.c.b16 %v4329, %v4319
      %v4630 = vpack.c.b16 %v4340, %v4330
      %v4631 = vpack.c.b16 %v4341, %v4331
      %v4632 = vpack.c.b16 %v4342, %v4332
      %v4633 = vpack.c.b16 %v4343, %v4333
      %v4634 = vpack.c.b16 %v4344, %v4334
      %v4635 = vpack.c.b16 %v4345, %v4335
      %v4636 = vpack.c.b16 %v4346, %v4336
      %v4637 = vpack.c.b16 %v4347, %v4337
      %v4638 = vpack.c.b16 %v4348, %v4338
      %v4639 = vpack.c.b16 %v4349, %v4339
      %v4640 = vpack.c.b16 %v4360, %v4350
      %v4641 = vpack.c.b16 %v4361, %v4351
      %v4642 = vpack.c.b16 %v4362, %v4352
      %v4643 = vpack.c.b16 %v4363, %v4353
      %v4644 = vpack.c.b16 %v4364, %v4354
      %v4645 = vpack.c.b16 %v4365, %v4355
      %v4646 = vpack.c.b16 %v4366, %v4356
      %v4647 = vpack.c.b16 %v4367, %v4357
      %v4648 = vpack.c.b16 %v4368, %v4358
      %v4649 = vpack.c.b16 %v4369, %v4359
      %v4650 = vpack.c.b16 %v4380, %v4370
      %v4651 = vpack.c.b16 %v4381, %v4371
      %v4652 = vpack.c.b16 %v4382, %v4372
      %v4653 = vpack.c.b16 %v4383, %v4373
      %v4654 = vpack.c.b16 %v4384, %v4374
      %v4655 = vpack.c.b16 %v4385, %v4375
      %v4656 = vpack.c.b16 %v4386, %v4376
      %v4657 = vpack.c.b16 %v4387, %v4377
      %v4658 = vpack.c.b16 %v4388, %v4378
      %v4659 = vpack.c.b16 %v4389, %v4379
      %v4660 = vpack.c.b16 %v4400, %v4390
      %v4661 = vpack.c.b16 %v4401, %v4391
      %v4662 = vpack.c.b16 %v4402, %v4392
      %v4663 = vpack.c.b16 %v4403, %v4393
      %v4664 = vpack.c.b16 %v4404, %v4394
      %v4665 = vpack.c.b16 %v4405, %v4395
      %v4666 = vpack.c.b16 %v4406, %v4396
      %v4667 = vpack.c.b16 %v4407, %v4397
      %v4668 = vpack.c.b16 %v4408, %v4398
      %v4669 = vpack.c.b16 %v4409, %v4399
      %v4670 = vpack.c.b16 %v4420, %v4410
      %v4671 = vpack.c.b16 %v4421, %v4411
      %v4672 = vpack.c.b16 %v4422, %v4412
      %v4673 = vpack.c.b16 %v4423, %v4413
      %v4674 = vpack.c.b16 %v4424, %v4414
      %v4675 = vpack.c.b16 %v4425, %v4415
      %v4676 = vpack.c.b16 %v4426, %v4416
      %v4677 = vpack.c.b16 %v4427, %v4417
      %v4678 = vpack.c.b16 %v4428, %v4418
      %v4679 = vpack.c.b16 %v4429, %v4419
      %v4680 = vpack.c.b16 %v4440, %v4430
      %v4681 = vpack.c.b16 %v4441, %v4431
      %v4682 = vpack.c.b16 %v4442, %v4432
      %v4683 = vpack.c.b16 %v4443, %v4433
      %v4684 = vpack.c.b16 %v4444, %v4434
      %v4685 = vpack.c.b16 %v4445, %v4435
      %v4686 = vpack.c.b16 %v4446, %v4436
      %v4687 = vpack.c.b16 %v4447, %v4437
      %v4688 = vpack.c.b16 %v4448, %v4438
      %v4689 = vpack.c.b16 %v4449, %v4439
      %v4690 = vpack.c.b16 %v4460, %v4450
      %v4691 = vpack.c.b16 %v4461, %v4451
      %v4692 = vpack.c.b16 %v4462, %v4452
      %v4693 = vpack.c.b16 %v4463, %v4453
      %v4694 = vpack.c.b16 %v4464, %v4454
      %v4695 = vpack.c.b16 %v4465, %v4455
      %v4696 = vpack.c.b16 %v4466, %v4456
      %v4697 = vpack.c.b16 %v4467, %v4457
      %v4698 = vpack.c.b16 %v4468, %v4458
      %v4699 = vpack.c.b16 %v4469, %v4459
      %v4700 = vpack.c.b16 %v4480, %v4470
      %v4701 = vpack.c.b16 %v4481, %v4471
      %v4702 = vpack.c.b16 %v4482, %v4472
      %v4703 = vpack.c.b16 %v4483, %v4473
      %v4704 = vpack.c.b16 %v4484, %v4474
      %v4705 = vpack.c.b16 %v4485, %v4475
      %v4706 = vpack.c.b16 %v4486, %v4476
      %v4707 = vpack.c.b16 %v4487, %v4477
      %v4708 = vpack.c.b16 %v4488, %v4478
      %v4709 = vpack.c.b16 %v4489, %v4479
      %v4710 = vpack.c.b16 %v4500, %v4490
      %v4711 = vpack.c.b16 %v4501, %v4491
      %v4712 = vpack.c.b16 %v4502, %v4492
      %v4713 = vpack.c.b16 %v4503, %v4493
      %v4714 = vpack.c.b16 %v4504, %v4494
      %v4715 = vpack.c.b16 %v4505, %v4495
      %v4716 = vpack.c.b16 %v4506, %v4496
      %v4717 = vpack.c.b16 %v4507, %v4497
      %v4718 = vpack.c.b16 %v4508, %v4498
      %v4719 = vpack.c.b16 %v4509, %v4499
      %v4720 = vpack.c.b16 %v4520, %v4510
      %v4721 = vpack.c.b16 %v4521, %v4511
      %v4722 = vpack.c.b16 %v4522, %v4512
      %v4723 = vpack.c.b16 %v4523, %v4513
      %v4724 = vpack.c.b16 %v4524, %v4514
      %v4725 = vpack.c.b16 %v4525, %v4515
      %v4726 = vpack.c.b16 %v4526, %v4516
      %v4727 = vpack.c.b16 %v4527, %v4517
      %v4728 = vpack.c.b16 %v4528, %v4518
      %v4729 = vpack.c.b16 %v4529, %v4519
      %v4730 = vpack.c.b16 %v4540, %v4530
      %v4731 = vpack.c.b16 %v4541, %v4531
      %v4732 = vpack.c.b16 %v4542, %v4532
      %v4733 = vpack.c.b16 %v4543, %v4533
      %v4734 = vpack.c.b16 %v4544, %v4534
      %v4735 = vpack.c.b16 %v4545, %v4535
      %v4736 = vpack.c.b16 %v4546, %v4536
      %v4737 = vpack.c.b16 %v4547, %v4537
      %v4738 = vpack.c.b16 %v4548, %v4538
      %v4739 = vpack.c.b16 %v4549, %v4539
      %v4740 = vpack.c.b16 %v4560, %v4550
      %v4741 = vpack.c.b16 %v4561, %v4551
      %v4742 = vpack.c.b16 %v4562, %v4552
      %v4743 = vpack.c.b16 %v4563, %v4553
      %v4744 = vpack.c.b16 %v4564, %v4554
      %v4745 = vpack.c.b16 %v4565, %v4555
      %v4746 = vpack.c.b16 %v4566, %v4556
      %v4747 = vpack.c.b16 %v4567, %v4557
      %v4748 = vpack.c.b16 %v4568, %v4558
      %v4749 = vpack.c.b16 %v4569, %v4559
      %v4750 = vpack.c.b16 %v4580, %v4570
      %v4751 = vpack.c.b16 %v4581, %v4571
      %v4752 = vpack.c.b16 %v4582, %v4572
      %v4753 = vpack.c.b16 %v4583, %v4573
      %v4754 = vpack.c.b16 %v4584, %v4574
      %v4755 = vpack.c.b16 %v4585, %v4575
      %v4756 = vpack.c.b16 %v4586, %v4576
      %v4757 = vpack.c.b16 %v4587, %v4577
      %v4758 = vpack.c.b16 %v4588, %v4578
      %v4759 = vpack.c.b16 %v4589, %v4579
      %v4760 = vpack.c.b16 %v4600, %v4590
      %v4761 = vpack.c.b16 %v4601, %v4591
      %v4762 = vpack.c.b16 %v4602, %v4592
      %v4763 = vpack.c.b16 %v4603, %v4593
      %v4764 = vpack.c.b16 %v4604, %v4594
      %v4765 = vpack.c.b16 %v4605, %v4595
      %v4766 = vpack.c.b16 %v4606, %v4596
      %v4767 = vpack.c.b16 %v4607, %v4597
      %v4768 = vpack.c.b16 %v4608, %v4598
      %v4769 = vpack.c.b16 %v4609, %v4599
      %4930 = vmatprep.subr.bf16.mxu0 %v4681
      %4931 = vmatpush1.bf16.msra.mxu0 %v4680
      %4932 = vmatprep.subr.bf16.mxu0 %v4671
      %4933 = vmatpush1.bf16.msra.mxu0 %v4670
      %4934 = vmatprep.subr.bf16.mxu0 %v4661
      %4935 = vmatpush1.bf16.msra.mxu0 %v4660
      %4936 = vmatprep.subr.bf16.mxu0 %v4651
      %4937 = vmatpush1.bf16.msra.mxu0 %v4650
      %4938 = vmatprep.subr.bf16.mxu0 %v4641
      %4939 = vmatpush1.bf16.msra.mxu0 %v4640
      %4940 = vmatprep.subr.bf16.mxu0 %v4631
      %4941 = vmatpush1.bf16.msra.mxu0 %v4630
      %4942 = vmatprep.subr.bf16.mxu0 %v4621
      %4943 = vmatpush1.bf16.msra.mxu0 %v4620
      %4944 = vmatprep.subr.bf16.mxu0 %v4611
      %4945 = vmatpush1.bf16.msra.mxu0 %v4610
      %4946 = vmatprep.subr.bf16.mxu0 %v4761
      %4947 = vmatpush2.bf16.msra.mxu0 %v4760
      %4948 = vmatprep.subr.bf16.mxu0 %v4751
      %4949 = vmatpush2.bf16.msra.mxu0 %v4750
      %4950 = vmatprep.subr.bf16.mxu0 %v4741
      %4951 = vmatpush2.bf16.msra.mxu0 %v4740
      %4952 = vmatprep.subr.bf16.mxu0 %v4731
      %4953 = vmatpush2.bf16.msra.mxu0 %v4730
      %4954 = vmatprep.subr.bf16.mxu0 %v4721
      %4955 = vmatpush2.bf16.msra.mxu0 %v4720
      %4956 = vmatprep.subr.bf16.mxu0 %v4711
      %4957 = vmatpush2.bf16.msra.mxu0 %v4710
      %4958 = vmatprep.subr.bf16.mxu0 %v4701
      %4959 = vmatpush2.bf16.msra.mxu0 %v4700
      %4960 = vmatprep.subr.bf16.mxu0 %v4691
      %4961 = vmatpush2.bf16.msra.mxu0 %v4690
      %4962 = vmatprep.mubr.bf16.mxu0 %v3915
      %4963 = vmatmul.mubr.bf16.gmra.mxu0 %v3914
      %v4964 = vpop.f32.mrf.mxu0
      %v4965 = vadd.f32 %v4083, %v4964
      %v4966 = vpop.f32.mrf.mxu0
      %v4967 = vadd.f32 %v4087, %v4966
      %v4968 = vpop.f32.mrf.mxu0
      %v4969 = vpop.f32.mrf.mxu0
      %4970 = vdwg.mxu0
      %4971 = vmatprep.subr.bf16.mxu0 %v4683
      %4972 = vmatpush1.bf16.msra.mxu0 %v4682
      %4973 = vmatprep.subr.bf16.mxu0 %v4673
      %4974 = vmatpush1.bf16.msra.mxu0 %v4672
      %4975 = vmatprep.subr.bf16.mxu0 %v4663
      %4976 = vmatpush1.bf16.msra.mxu0 %v4662
      %4977 = vmatprep.subr.bf16.mxu0 %v4653
      %4978 = vmatpush1.bf16.msra.mxu0 %v4652
      %4979 = vmatprep.subr.bf16.mxu0 %v4643
      %4980 = vmatpush1.bf16.msra.mxu0 %v4642
      %4981 = vmatprep.subr.bf16.mxu0 %v4633
      %4982 = vmatpush1.bf16.msra.mxu0 %v4632
      %4983 = vmatprep.subr.bf16.mxu0 %v4623
      %4984 = vmatpush1.bf16.msra.mxu0 %v4622
      %4985 = vmatprep.subr.bf16.mxu0 %v4613
      %4986 = vmatpush1.bf16.msra.mxu0 %v4612
      %4987 = vmatprep.subr.bf16.mxu0 %v4763
      %4988 = vmatpush2.bf16.msra.mxu0 %v4762
      %4989 = vmatprep.subr.bf16.mxu0 %v4753
      %4990 = vmatpush2.bf16.msra.mxu0 %v4752
      %4991 = vmatprep.subr.bf16.mxu0 %v4743
      %4992 = vmatpush2.bf16.msra.mxu0 %v4742
      %4993 = vmatprep.subr.bf16.mxu0 %v4733
      %4994 = vmatpush2.bf16.msra.mxu0 %v4732
      %4995 = vmatprep.subr.bf16.mxu0 %v4723
      %4996 = vmatpush2.bf16.msra.mxu0 %v4722
      %4997 = vmatprep.subr.bf16.mxu0 %v4713
      %4998 = vmatpush2.bf16.msra.mxu0 %v4712
      %4999 = vmatprep.subr.bf16.mxu0 %v4703
      %5000 = vmatpush2.bf16.msra.mxu0 %v4702
      %5001 = vmatprep.subr.bf16.mxu0 %v4693
      %5002 = vmatpush2.bf16.msra.mxu0 %v4692
      %5003 = vmatprep.mubr.bf16.mxu0 %v3915
      %5004 = vmatmul.mubr.bf16.gmra.mxu0 %v3914
      %v5005 = vpop.f32.mrf.mxu0
      %v5006 = vadd.f32 %v4091, %v5005
      %v5007 = vpop.f32.mrf.mxu0
      %v5008 = vadd.f32 %v4095, %v5007
      %v5009 = vpop.f32.mrf.mxu0
      %v5010 = vpop.f32.mrf.mxu0
      %5011 = vdwg.mxu0
      %5012 = vmatprep.subr.bf16.mxu0 %v4685
      %5013 = vmatpush1.bf16.msra.mxu0 %v4684
      %5014 = vmatprep.subr.bf16.mxu0 %v4675
      %5015 = vmatpush1.bf16.msra.mxu0 %v4674
      %5016 = vmatprep.subr.bf16.mxu0 %v4665
      %5017 = vmatpush1.bf16.msra.mxu0 %v4664
      %5018 = vmatprep.subr.bf16.mxu0 %v4655
      %5019 = vmatpush1.bf16.msra.mxu0 %v4654
      %5020 = vmatprep.subr.bf16.mxu0 %v4645
      %5021 = vmatpush1.bf16.msra.mxu0 %v4644
      %5022 = vmatprep.subr.bf16.mxu0 %v4635
      %5023 = vmatpush1.bf16.msra.mxu0 %v4634
      %5024 = vmatprep.subr.bf16.mxu0 %v4625
      %5025 = vmatpush1.bf16.msra.mxu0 %v4624
      %5026 = vmatprep.subr.bf16.mxu0 %v4615
      %5027 = vmatpush1.bf16.msra.mxu0 %v4614
      %5028 = vmatprep.subr.bf16.mxu0 %v4765
      %5029 = vmatpush2.bf16.msra.mxu0 %v4764
      %5030 = vmatprep.subr.bf16.mxu0 %v4755
      %5031 = vmatpush2.bf16.msra.mxu0 %v4754
      %5032 = vmatprep.subr.bf16.mxu0 %v4745
      %5033 = vmatpush2.bf16.msra.mxu0 %v4744
      %5034 = vmatprep.subr.bf16.mxu0 %v4735
      %5035 = vmatpush2.bf16.msra.mxu0 %v4734
      %5036 = vmatprep.subr.bf16.mxu0 %v4725
      %5037 = vmatpush2.bf16.msra.mxu0 %v4724
      %5038 = vmatprep.subr.bf16.mxu0 %v4715
      %5039 = vmatpush2.bf16.msra.mxu0 %v4714
      %5040 = vmatprep.subr.bf16.mxu0 %v4705
      %5041 = vmatpush2.bf16.msra.mxu0 %v4704
      %5042 = vmatprep.subr.bf16.mxu0 %v4695
      %5043 = vmatpush2.bf16.msra.mxu0 %v4694
      %5044 = vmatprep.mubr.bf16.mxu0 %v3915
      %5045 = vmatmul.mubr.bf16.gmra.mxu0 %v3914
      %v5046 = vpop.f32.mrf.mxu0
      %v5047 = vadd.f32 %v4099, %v5046
      %v5048 = vpop.f32.mrf.mxu0
      %v5049 = vadd.f32 %v4103, %v5048
      %v5050 = vpop.f32.mrf.mxu0
      %v5051 = vpop.f32.mrf.mxu0
      %5052 = vdwg.mxu0
      %5053 = vmatprep.subr.bf16.mxu0 %v4687
      %5054 = vmatpush1.bf16.msra.mxu0 %v4686
      %5055 = vmatprep.subr.bf16.mxu0 %v4677
      %5056 = vmatpush1.bf16.msra.mxu0 %v4676
      %5057 = vmatprep.subr.bf16.mxu0 %v4667
      %5058 = vmatpush1.bf16.msra.mxu0 %v4666
      %5059 = vmatprep.subr.bf16.mxu0 %v4657
      %5060 = vmatpush1.bf16.msra.mxu0 %v4656
      %5061 = vmatprep.subr.bf16.mxu0 %v4647
      %5062 = vmatpush1.bf16.msra.mxu0 %v4646
      %5063 = vmatprep.subr.bf16.mxu0 %v4637
      %5064 = vmatpush1.bf16.msra.mxu0 %v4636
      %5065 = vmatprep.subr.bf16.mxu0 %v4627
      %5066 = vmatpush1.bf16.msra.mxu0 %v4626
      %5067 = vmatprep.subr.bf16.mxu0 %v4617
      %5068 = vmatpush1.bf16.msra.mxu0 %v4616
      %5069 = vmatprep.subr.bf16.mxu0 %v4767
      %5070 = vmatpush2.bf16.msra.mxu0 %v4766
      %5071 = vmatprep.subr.bf16.mxu0 %v4757
      %5072 = vmatpush2.bf16.msra.mxu0 %v4756
      %5073 = vmatprep.subr.bf16.mxu0 %v4747
      %5074 = vmatpush2.bf16.msra.mxu0 %v4746
      %5075 = vmatprep.subr.bf16.mxu0 %v4737
      %5076 = vmatpush2.bf16.msra.mxu0 %v4736
      %5077 = vmatprep.subr.bf16.mxu0 %v4727
      %5078 = vmatpush2.bf16.msra.mxu0 %v4726
      %5079 = vmatprep.subr.bf16.mxu0 %v4717
      %5080 = vmatpush2.bf16.msra.mxu0 %v4716
      %5081 = vmatprep.subr.bf16.mxu0 %v4707
      %5082 = vmatpush2.bf16.msra.mxu0 %v4706
      %5083 = vmatprep.subr.bf16.mxu0 %v4697
      %5084 = vmatpush2.bf16.msra.mxu0 %v4696
      %5085 = vmatprep.mubr.bf16.mxu0 %v3915
      %5086 = vmatmul.mubr.bf16.gmra.mxu0 %v3914
      %v5087 = vpop.f32.mrf.mxu0
      %v5088 = vadd.f32 %v4107, %v5087
      %v5089 = vpop.f32.mrf.mxu0
      %v5090 = vadd.f32 %v4111, %v5089
      %v5091 = vpop.f32.mrf.mxu0
      %v5092 = vpop.f32.mrf.mxu0
      %5093 = vdwg.mxu0
      %5094 = vmatprep.subr.bf16.mxu0 %v4689
      %5095 = vmatpush1.bf16.msra.mxu0 %v4688
      %5096 = vmatprep.subr.bf16.mxu0 %v4679
      %5097 = vmatpush1.bf16.msra.mxu0 %v4678
      %5098 = vmatprep.subr.bf16.mxu0 %v4669
      %5099 = vmatpush1.bf16.msra.mxu0 %v4668
      %5100 = vmatprep.subr.bf16.mxu0 %v4659
      %5101 = vmatpush1.bf16.msra.mxu0 %v4658
      %5102 = vmatprep.subr.bf16.mxu0 %v4649
      %5103 = vmatpush1.bf16.msra.mxu0 %v4648
      %5104 = vmatprep.subr.bf16.mxu0 %v4639
      %5105 = vmatpush1.bf16.msra.mxu0 %v4638
      %5106 = vmatprep.subr.bf16.mxu0 %v4629
      %5107 = vmatpush1.bf16.msra.mxu0 %v4628
      %5108 = vmatprep.subr.bf16.mxu0 %v4619
      %5109 = vmatpush1.bf16.msra.mxu0 %v4618
      %5110 = vmatprep.subr.bf16.mxu0 %v4769
      %5111 = vmatpush2.bf16.msra.mxu0 %v4768
      %5112 = vmatprep.subr.bf16.mxu0 %v4759
      %5113 = vmatpush2.bf16.msra.mxu0 %v4758
      %5114 = vmatprep.subr.bf16.mxu0 %v4749
      %5115 = vmatpush2.bf16.msra.mxu0 %v4748
      %5116 = vmatprep.subr.bf16.mxu0 %v4739
      %5117 = vmatpush2.bf16.msra.mxu0 %v4738
      %5118 = vmatprep.subr.bf16.mxu0 %v4729
      %5119 = vmatpush2.bf16.msra.mxu0 %v4728
      %5120 = vmatprep.subr.bf16.mxu0 %v4719
      %5121 = vmatpush2.bf16.msra.mxu0 %v4718
      %5122 = vmatprep.subr.bf16.mxu0 %v4709
      %5123 = vmatpush2.bf16.msra.mxu0 %v4708
      %5124 = vmatprep.subr.bf16.mxu0 %v4699
      %5125 = vmatpush2.bf16.msra.mxu0 %v4698
      %5126 = vmatprep.mubr.bf16.mxu0 %v3915
      %5127 = vmatmul.mubr.bf16.gmra.mxu0 %v3914
      %v5128 = vpop.f32.mrf.mxu0
      %v5129 = vadd.f32 %v4115, %v5128
      %v5130 = vpop.f32.mrf.mxu0
      %v5131 = vadd.f32 %v4119, %v5130
      %v5132 = vpop.f32.mrf.mxu0
      %v5133 = vpop.f32.mrf.mxu0
      %5134 = vdwg.mxu0
      %v5135 = vmax.f32 %v4965, 0.0
      %v5136 = vmax.f32 %v4967, 0.0
      %v5137 = vmax.f32 %v5006, 0.0
      %v5138 = vmax.f32 %v5008, 0.0
      %v5139 = vmax.f32 %v5047, 0.0
      %v5140 = vmax.f32 %v5049, 0.0
      %v5141 = vmax.f32 %v5088, 0.0
      %v5142 = vmax.f32 %v5090, 0.0
      %v5143 = vmax.f32 %v5129, 0.0
      %v5144 = vmax.f32 %v5131, 0.0
      %v5145 = vpack.c.bf16 %v5135, %v5135
      %v5146 = vpack.c.bf16 %v5136, %v5136
      %v5147 = vpack.c.bf16 %v5137, %v5137
      %v5148 = vpack.c.bf16 %v5138, %v5138
      %v5149 = vpack.c.bf16 %v5139, %v5139
      %v5150 = vpack.c.bf16 %v5140, %v5140
      %v5151 = vpack.c.bf16 %v5141, %v5141
      %v5152 = vpack.c.bf16 %v5142, %v5142
      %v5153 = vpack.c.bf16 %v5143, %v5143
      %v5154 = vpack.c.bf16 %v5144, %v5144
      %v5155 = vld [vmem:[#allocation9] sm:$0xf]
      %v5156 = vld [vmem:[#allocation9 + $0x4] sm:$0xf]
      %v5157 = vld [vmem:[#allocation9 + $0x8] sm:$0xf]
      %v5158 = vld [vmem:[#allocation9 + $0xc] sm:$0xf]
      %v5159 = vld [vmem:[#allocation9 + $0x10] sm:$0xf]
      %v5160 = vld [vmem:[#allocation9 + $0x14] sm:$0xf]
      %v5161 = vld [vmem:[#allocation9 + $0x18] sm:$0xf]
      %v5162 = vld [vmem:[#allocation9 + $0x1c] sm:$0xf]
      %v5163 = vld [vmem:[#allocation9 + $0x20] sm:$0xf]
      %v5164 = vld [vmem:[#allocation9 + $0x24] sm:$0xf]
      %v5165 = vld [vmem:[#allocation9 + $0x28] sm:$0xf]
      %v5166 = vld [vmem:[#allocation9 + $0x2c] sm:$0xf]
      %v5167 = vld [vmem:[#allocation9 + $0x30] sm:$0xf]
      %v5168 = vld [vmem:[#allocation9 + $0x34] sm:$0xf]
      %v5169 = vld [vmem:[#allocation9 + $0x38] sm:$0xf]
      %v5170 = vld [vmem:[#allocation9 + $0x3c] sm:$0xf]
      %v5171 = vld [vmem:[#allocation9 + $0x40] sm:$0xf]
      %v5172 = vld [vmem:[#allocation9 + $0x44] sm:$0xf]
      %v5173 = vld [vmem:[#allocation9 + $0x48] sm:$0xf]
      %v5174 = vld [vmem:[#allocation9 + $0x4c] sm:$0xf]
      %v5175 = vld [vmem:[#allocation9 + $0x50] sm:$0xf]
      %v5176 = vld [vmem:[#allocation9 + $0x54] sm:$0xf]
      %v5177 = vld [vmem:[#allocation9 + $0x58] sm:$0xf]
      %v5178 = vld [vmem:[#allocation9 + $0x5c] sm:$0xf]
      %v5179 = vld [vmem:[#allocation9 + $0x60] sm:$0xf]
      %v5180 = vld [vmem:[#allocation9 + $0x64] sm:$0xf]
      %v5181 = vld [vmem:[#allocation9 + $0x68] sm:$0xf]
      %v5182 = vld [vmem:[#allocation9 + $0x6c] sm:$0xf]
      %v5183 = vld [vmem:[#allocation9 + $0x70] sm:$0xf]
      %v5184 = vld [vmem:[#allocation9 + $0x74] sm:$0xf]
      %v5185 = vld [vmem:[#allocation9 + $0x78] sm:$0xf]
      %v5186 = vld [vmem:[#allocation9 + $0x7c] sm:$0xf]
      %v5187 = vld [vmem:[#allocation9 + $0x80] sm:$0xf]
      %v5188 = vld [vmem:[#allocation9 + $0x84] sm:$0xf]
      %v5189 = vld [vmem:[#allocation9 + $0x88] sm:$0xf]
      %v5190 = vld [vmem:[#allocation9 + $0x8c] sm:$0xf]
      %v5191 = vld [vmem:[#allocation9 + $0x90] sm:$0xf]
      %v5192 = vld [vmem:[#allocation9 + $0x94] sm:$0xf]
      %v5193 = vld [vmem:[#allocation9 + $0x98] sm:$0xf]
      %v5194 = vld [vmem:[#allocation9 + $0x9c] sm:$0xf]
      %v5195 = vld [vmem:[#allocation9 + $0xa0] sm:$0xf]
      %v5196 = vld [vmem:[#allocation9 + $0xa4] sm:$0xf]
      %v5197 = vld [vmem:[#allocation9 + $0xa8] sm:$0xf]
      %v5198 = vld [vmem:[#allocation9 + $0xac] sm:$0xf]
      %v5199 = vld [vmem:[#allocation9 + $0xb0] sm:$0xf]
      %v5200 = vld [vmem:[#allocation9 + $0xb4] sm:$0xf]
      %v5201 = vld [vmem:[#allocation9 + $0xb8] sm:$0xf]
      %v5202 = vld [vmem:[#allocation9 + $0xbc] sm:$0xf]
      %v5203 = vld [vmem:[#allocation9 + $0xc0] sm:$0xf]
      %v5204 = vld [vmem:[#allocation9 + $0xc4] sm:$0xf]
      %v5205 = vld [vmem:[#allocation9 + $0xc8] sm:$0xf]
      %v5206 = vld [vmem:[#allocation9 + $0xcc] sm:$0xf]
      %v5207 = vld [vmem:[#allocation9 + $0xd0] sm:$0xf]
      %v5208 = vld [vmem:[#allocation9 + $0xd4] sm:$0xf]
      %v5209 = vld [vmem:[#allocation9 + $0xd8] sm:$0xf]
      %v5210 = vld [vmem:[#allocation9 + $0xdc] sm:$0xf]
      %v5211 = vld [vmem:[#allocation9 + $0xe0] sm:$0xf]
      %v5212 = vld [vmem:[#allocation9 + $0xe4] sm:$0xf]
      %v5213 = vld [vmem:[#allocation9 + $0xe8] sm:$0xf]
      %v5214 = vld [vmem:[#allocation9 + $0xec] sm:$0xf]
      %v5215 = vld [vmem:[#allocation9 + $0xf0] sm:$0xf]
      %v5216 = vld [vmem:[#allocation9 + $0xf4] sm:$0xf]
      %v5217 = vld [vmem:[#allocation9 + $0xf8] sm:$0xf]
      %v5218 = vld [vmem:[#allocation9 + $0xfc] sm:$0xf]
      %v5219 = vld [vmem:[#allocation9 + $0x100] sm:$0xf]
      %v5220 = vld [vmem:[#allocation9 + $0x104] sm:$0xf]
      %v5221 = vld [vmem:[#allocation9 + $0x108] sm:$0xf]
      %v5222 = vld [vmem:[#allocation9 + $0x10c] sm:$0xf]
      %v5223 = vld [vmem:[#allocation9 + $0x110] sm:$0xf]
      %v5224 = vld [vmem:[#allocation9 + $0x114] sm:$0xf]
      %v5225 = vld [vmem:[#allocation9 + $0x118] sm:$0xf]
      %v5226 = vld [vmem:[#allocation9 + $0x11c] sm:$0xf]
      %v5227 = vld [vmem:[#allocation9 + $0x120] sm:$0xf]
      %v5228 = vld [vmem:[#allocation9 + $0x124] sm:$0xf]
      %v5229 = vld [vmem:[#allocation9 + $0x128] sm:$0xf]
      %v5230 = vld [vmem:[#allocation9 + $0x12c] sm:$0xf]
      %v5231 = vld [vmem:[#allocation9 + $0x130] sm:$0xf]
      %v5232 = vld [vmem:[#allocation9 + $0x134] sm:$0xf]
      %v5233 = vld [vmem:[#allocation9 + $0x138] sm:$0xf]
      %v5234 = vld [vmem:[#allocation9 + $0x13c] sm:$0xf]
      %v5235 = vld [vmem:[#allocation9 + $0x140] sm:$0xf]
      %v5236 = vld [vmem:[#allocation9 + $0x144] sm:$0xf]
      %v5237 = vld [vmem:[#allocation9 + $0x148] sm:$0xf]
      %v5238 = vld [vmem:[#allocation9 + $0x14c] sm:$0xf]
      %v5239 = vld [vmem:[#allocation9 + $0x150] sm:$0xf]
      %v5240 = vld [vmem:[#allocation9 + $0x154] sm:$0xf]
      %v5241 = vld [vmem:[#allocation9 + $0x158] sm:$0xf]
      %v5242 = vld [vmem:[#allocation9 + $0x15c] sm:$0xf]
      %v5243 = vld [vmem:[#allocation9 + $0x160] sm:$0xf]
      %v5244 = vld [vmem:[#allocation9 + $0x164] sm:$0xf]
      %v5245 = vld [vmem:[#allocation9 + $0x168] sm:$0xf]
      %v5246 = vld [vmem:[#allocation9 + $0x16c] sm:$0xf]
      %v5247 = vld [vmem:[#allocation9 + $0x170] sm:$0xf]
      %v5248 = vld [vmem:[#allocation9 + $0x174] sm:$0xf]
      %v5249 = vld [vmem:[#allocation9 + $0x178] sm:$0xf]
      %v5250 = vld [vmem:[#allocation9 + $0x17c] sm:$0xf]
      %v5251 = vld [vmem:[#allocation9 + $0x180] sm:$0xf]
      %v5252 = vld [vmem:[#allocation9 + $0x184] sm:$0xf]
      %v5253 = vld [vmem:[#allocation9 + $0x188] sm:$0xf]
      %v5254 = vld [vmem:[#allocation9 + $0x18c] sm:$0xf]
      %v5255 = vld [vmem:[#allocation9 + $0x190] sm:$0xf]
      %v5256 = vld [vmem:[#allocation9 + $0x194] sm:$0xf]
      %v5257 = vld [vmem:[#allocation9 + $0x198] sm:$0xf]
      %v5258 = vld [vmem:[#allocation9 + $0x19c] sm:$0xf]
      %v5259 = vld [vmem:[#allocation9 + $0x1a0] sm:$0xf]
      %v5260 = vld [vmem:[#allocation9 + $0x1a4] sm:$0xf]
      %v5261 = vld [vmem:[#allocation9 + $0x1a8] sm:$0xf]
      %v5262 = vld [vmem:[#allocation9 + $0x1ac] sm:$0xf]
      %v5263 = vld [vmem:[#allocation9 + $0x1b0] sm:$0xf]
      %v5264 = vld [vmem:[#allocation9 + $0x1b4] sm:$0xf]
      %v5265 = vld [vmem:[#allocation9 + $0x1b8] sm:$0xf]
      %v5266 = vld [vmem:[#allocation9 + $0x1bc] sm:$0xf]
      %v5267 = vld [vmem:[#allocation9 + $0x1c0] sm:$0xf]
      %v5268 = vld [vmem:[#allocation9 + $0x1c4] sm:$0xf]
      %v5269 = vld [vmem:[#allocation9 + $0x1c8] sm:$0xf]
      %v5270 = vld [vmem:[#allocation9 + $0x1cc] sm:$0xf]
      %v5271 = vld [vmem:[#allocation9 + $0x1d0] sm:$0xf]
      %v5272 = vld [vmem:[#allocation9 + $0x1d4] sm:$0xf]
      %v5273 = vld [vmem:[#allocation9 + $0x1d8] sm:$0xf]
      %v5274 = vld [vmem:[#allocation9 + $0x1dc] sm:$0xf]
      %v5275 = vld [vmem:[#allocation9 + $0x1e0] sm:$0xf]
      %v5276 = vld [vmem:[#allocation9 + $0x1e4] sm:$0xf]
      %v5277 = vld [vmem:[#allocation9 + $0x1e8] sm:$0xf]
      %v5278 = vld [vmem:[#allocation9 + $0x1ec] sm:$0xf]
      %v5279 = vld [vmem:[#allocation9 + $0x1f0] sm:$0xf]
      %v5280 = vld [vmem:[#allocation9 + $0x1f4] sm:$0xf]
      %v5281 = vld [vmem:[#allocation9 + $0x1f8] sm:$0xf]
      %v5282 = vld [vmem:[#allocation9 + $0x1fc] sm:$0xf]
      %v5283 = vld [vmem:[#allocation9 + $0x200] sm:$0xf]
      %v5284 = vld [vmem:[#allocation9 + $0x204] sm:$0xf]
      %v5285 = vld [vmem:[#allocation9 + $0x208] sm:$0xf]
      %v5286 = vld [vmem:[#allocation9 + $0x20c] sm:$0xf]
      %v5287 = vld [vmem:[#allocation9 + $0x210] sm:$0xf]
      %v5288 = vld [vmem:[#allocation9 + $0x214] sm:$0xf]
      %v5289 = vld [vmem:[#allocation9 + $0x218] sm:$0xf]
      %v5290 = vld [vmem:[#allocation9 + $0x21c] sm:$0xf]
      %v5291 = vld [vmem:[#allocation9 + $0x220] sm:$0xf]
      %v5292 = vld [vmem:[#allocation9 + $0x224] sm:$0xf]
      %v5293 = vld [vmem:[#allocation9 + $0x228] sm:$0xf]
      %v5294 = vld [vmem:[#allocation9 + $0x22c] sm:$0xf]
      %v5295 = vld [vmem:[#allocation9 + $0x230] sm:$0xf]
      %v5296 = vld [vmem:[#allocation9 + $0x234] sm:$0xf]
      %v5297 = vld [vmem:[#allocation9 + $0x238] sm:$0xf]
      %v5298 = vld [vmem:[#allocation9 + $0x23c] sm:$0xf]
      %v5299 = vld [vmem:[#allocation9 + $0x240] sm:$0xf]
      %v5300 = vld [vmem:[#allocation9 + $0x244] sm:$0xf]
      %v5301 = vld [vmem:[#allocation9 + $0x248] sm:$0xf]
      %v5302 = vld [vmem:[#allocation9 + $0x24c] sm:$0xf]
      %v5303 = vld [vmem:[#allocation9 + $0x250] sm:$0xf]
      %v5304 = vld [vmem:[#allocation9 + $0x254] sm:$0xf]
      %v5305 = vld [vmem:[#allocation9 + $0x258] sm:$0xf]
      %v5306 = vld [vmem:[#allocation9 + $0x25c] sm:$0xf]
      %v5307 = vld [vmem:[#allocation9 + $0x260] sm:$0xf]
      %v5308 = vld [vmem:[#allocation9 + $0x264] sm:$0xf]
      %v5309 = vld [vmem:[#allocation9 + $0x268] sm:$0xf]
      %v5310 = vld [vmem:[#allocation9 + $0x26c] sm:$0xf]
      %v5311 = vld [vmem:[#allocation9 + $0x270] sm:$0xf]
      %v5312 = vld [vmem:[#allocation9 + $0x274] sm:$0xf]
      %v5313 = vld [vmem:[#allocation9 + $0x278] sm:$0xf]
      %v5314 = vld [vmem:[#allocation9 + $0x27c] sm:$0xf]
      %v5315 = vld [vmem:[%s4] sm:$0x1]
      %v5317 = vlaneseq
      %v5318 = vshrl.u32 %v5317, 7
      %v5319 = vsub.s32 0, %v5318
      %v5320 = vrot.slane %v5315, %v5319
      %v5482 = vunpack.c.l.b16 %v5155
      %v5483 = vunpack.c.l.b16 %v5156
      %v5484 = vunpack.c.l.b16 %v5157
      %v5485 = vunpack.c.l.b16 %v5158
      %v5486 = vunpack.c.l.b16 %v5159
      %v5487 = vunpack.c.l.b16 %v5160
      %v5488 = vunpack.c.l.b16 %v5161
      %v5489 = vunpack.c.l.b16 %v5162
      %v5490 = vunpack.c.l.b16 %v5163
      %v5491 = vunpack.c.l.b16 %v5164
      %v5492 = vunpack.c.l.b16 %v5165
      %v5493 = vunpack.c.l.b16 %v5166
      %v5494 = vunpack.c.l.b16 %v5167
      %v5495 = vunpack.c.l.b16 %v5168
      %v5496 = vunpack.c.l.b16 %v5169
      %v5497 = vunpack.c.l.b16 %v5170
      %v5498 = vunpack.c.l.b16 %v5171
      %v5499 = vunpack.c.l.b16 %v5172
      %v5500 = vunpack.c.l.b16 %v5173
      %v5501 = vunpack.c.l.b16 %v5174
      %v5502 = vunpack.c.l.b16 %v5175
      %v5503 = vunpack.c.l.b16 %v5176
      %v5504 = vunpack.c.l.b16 %v5177
      %v5505 = vunpack.c.l.b16 %v5178
      %v5506 = vunpack.c.l.b16 %v5179
      %v5507 = vunpack.c.l.b16 %v5180
      %v5508 = vunpack.c.l.b16 %v5181
      %v5509 = vunpack.c.l.b16 %v5182
      %v5510 = vunpack.c.l.b16 %v5183
      %v5511 = vunpack.c.l.b16 %v5184
      %v5512 = vunpack.c.l.b16 %v5185
      %v5513 = vunpack.c.l.b16 %v5186
      %v5514 = vunpack.c.l.b16 %v5187
      %v5515 = vunpack.c.l.b16 %v5188
      %v5516 = vunpack.c.l.b16 %v5189
      %v5517 = vunpack.c.l.b16 %v5190
      %v5518 = vunpack.c.l.b16 %v5191
      %v5519 = vunpack.c.l.b16 %v5192
      %v5520 = vunpack.c.l.b16 %v5193
      %v5521 = vunpack.c.l.b16 %v5194
      %v5522 = vunpack.c.l.b16 %v5195
      %v5523 = vunpack.c.l.b16 %v5196
      %v5524 = vunpack.c.l.b16 %v5197
      %v5525 = vunpack.c.l.b16 %v5198
      %v5526 = vunpack.c.l.b16 %v5199
      %v5527 = vunpack.c.l.b16 %v5200
      %v5528 = vunpack.c.l.b16 %v5201
      %v5529 = vunpack.c.l.b16 %v5202
      %v5530 = vunpack.c.l.b16 %v5203
      %v5531 = vunpack.c.l.b16 %v5204
      %v5532 = vunpack.c.l.b16 %v5205
      %v5533 = vunpack.c.l.b16 %v5206
      %v5534 = vunpack.c.l.b16 %v5207
      %v5535 = vunpack.c.l.b16 %v5208
      %v5536 = vunpack.c.l.b16 %v5209
      %v5537 = vunpack.c.l.b16 %v5210
      %v5538 = vunpack.c.l.b16 %v5211
      %v5539 = vunpack.c.l.b16 %v5212
      %v5540 = vunpack.c.l.b16 %v5213
      %v5541 = vunpack.c.l.b16 %v5214
      %v5542 = vunpack.c.l.b16 %v5215
      %v5543 = vunpack.c.l.b16 %v5216
      %v5544 = vunpack.c.l.b16 %v5217
      %v5545 = vunpack.c.l.b16 %v5218
      %v5546 = vunpack.c.l.b16 %v5219
      %v5547 = vunpack.c.l.b16 %v5220
      %v5548 = vunpack.c.l.b16 %v5221
      %v5549 = vunpack.c.l.b16 %v5222
      %v5550 = vunpack.c.l.b16 %v5223
      %v5551 = vunpack.c.l.b16 %v5224
      %v5552 = vunpack.c.l.b16 %v5225
      %v5553 = vunpack.c.l.b16 %v5226
      %v5554 = vunpack.c.l.b16 %v5227
      %v5555 = vunpack.c.l.b16 %v5228
      %v5556 = vunpack.c.l.b16 %v5229
      %v5557 = vunpack.c.l.b16 %v5230
      %v5558 = vunpack.c.l.b16 %v5231
      %v5559 = vunpack.c.l.b16 %v5232
      %v5560 = vunpack.c.l.b16 %v5233
      %v5561 = vunpack.c.l.b16 %v5234
      %v5562 = vunpack.c.l.b16 %v5235
      %v5563 = vunpack.c.l.b16 %v5236
      %v5564 = vunpack.c.l.b16 %v5237
      %v5565 = vunpack.c.l.b16 %v5238
      %v5566 = vunpack.c.l.b16 %v5239
      %v5567 = vunpack.c.l.b16 %v5240
      %v5568 = vunpack.c.l.b16 %v5241
      %v5569 = vunpack.c.l.b16 %v5242
      %v5570 = vunpack.c.l.b16 %v5243
      %v5571 = vunpack.c.l.b16 %v5244
      %v5572 = vunpack.c.l.b16 %v5245
      %v5573 = vunpack.c.l.b16 %v5246
      %v5574 = vunpack.c.l.b16 %v5247
      %v5575 = vunpack.c.l.b16 %v5248
      %v5576 = vunpack.c.l.b16 %v5249
      %v5577 = vunpack.c.l.b16 %v5250
      %v5578 = vunpack.c.l.b16 %v5251
      %v5579 = vunpack.c.l.b16 %v5252
      %v5580 = vunpack.c.l.b16 %v5253
      %v5581 = vunpack.c.l.b16 %v5254
      %v5582 = vunpack.c.l.b16 %v5255
      %v5583 = vunpack.c.l.b16 %v5256
      %v5584 = vunpack.c.l.b16 %v5257
      %v5585 = vunpack.c.l.b16 %v5258
      %v5586 = vunpack.c.l.b16 %v5259
      %v5587 = vunpack.c.l.b16 %v5260
      %v5588 = vunpack.c.l.b16 %v5261
      %v5589 = vunpack.c.l.b16 %v5262
      %v5590 = vunpack.c.l.b16 %v5263
      %v5591 = vunpack.c.l.b16 %v5264
      %v5592 = vunpack.c.l.b16 %v5265
      %v5593 = vunpack.c.l.b16 %v5266
      %v5594 = vunpack.c.l.b16 %v5267
      %v5595 = vunpack.c.l.b16 %v5268
      %v5596 = vunpack.c.l.b16 %v5269
      %v5597 = vunpack.c.l.b16 %v5270
      %v5598 = vunpack.c.l.b16 %v5271
      %v5599 = vunpack.c.l.b16 %v5272
      %v5600 = vunpack.c.l.b16 %v5273
      %v5601 = vunpack.c.l.b16 %v5274
      %v5602 = vunpack.c.l.b16 %v5275
      %v5603 = vunpack.c.l.b16 %v5276
      %v5604 = vunpack.c.l.b16 %v5277
      %v5605 = vunpack.c.l.b16 %v5278
      %v5606 = vunpack.c.l.b16 %v5279
      %v5607 = vunpack.c.l.b16 %v5280
      %v5608 = vunpack.c.l.b16 %v5281
      %v5609 = vunpack.c.l.b16 %v5282
      %v5610 = vunpack.c.l.b16 %v5283
      %v5611 = vunpack.c.l.b16 %v5284
      %v5612 = vunpack.c.l.b16 %v5285
      %v5613 = vunpack.c.l.b16 %v5286
      %v5614 = vunpack.c.l.b16 %v5287
      %v5615 = vunpack.c.l.b16 %v5288
      %v5616 = vunpack.c.l.b16 %v5289
      %v5617 = vunpack.c.l.b16 %v5290
      %v5618 = vunpack.c.l.b16 %v5291
      %v5619 = vunpack.c.l.b16 %v5292
      %v5620 = vunpack.c.l.b16 %v5293
      %v5621 = vunpack.c.l.b16 %v5294
      %v5622 = vunpack.c.l.b16 %v5295
      %v5623 = vunpack.c.l.b16 %v5296
      %v5624 = vunpack.c.l.b16 %v5297
      %v5625 = vunpack.c.l.b16 %v5298
      %v5626 = vunpack.c.l.b16 %v5299
      %v5627 = vunpack.c.l.b16 %v5300
      %v5628 = vunpack.c.l.b16 %v5301
      %v5629 = vunpack.c.l.b16 %v5302
      %v5630 = vunpack.c.l.b16 %v5303
      %v5631 = vunpack.c.l.b16 %v5304
      %v5632 = vunpack.c.l.b16 %v5305
      %v5633 = vunpack.c.l.b16 %v5306
      %v5634 = vunpack.c.l.b16 %v5307
      %v5635 = vunpack.c.l.b16 %v5308
      %v5636 = vunpack.c.l.b16 %v5309
      %v5637 = vunpack.c.l.b16 %v5310
      %v5638 = vunpack.c.l.b16 %v5311
      %v5639 = vunpack.c.l.b16 %v5312
      %v5640 = vunpack.c.l.b16 %v5313
      %v5641 = vunpack.c.l.b16 %v5314
      %v5642 = vpack.c.b16 %v5483, %v5482
      %v5643 = vpack.c.b16 %v5485, %v5484
      %v5644 = vpack.c.b16 %v5487, %v5486
      %v5645 = vpack.c.b16 %v5489, %v5488
      %v5646 = vpack.c.b16 %v5491, %v5490
      %v5647 = vpack.c.b16 %v5493, %v5492
      %v5648 = vpack.c.b16 %v5495, %v5494
      %v5649 = vpack.c.b16 %v5497, %v5496
      %v5650 = vpack.c.b16 %v5499, %v5498
      %v5651 = vpack.c.b16 %v5501, %v5500
      %v5652 = vpack.c.b16 %v5503, %v5502
      %v5653 = vpack.c.b16 %v5505, %v5504
      %v5654 = vpack.c.b16 %v5507, %v5506
      %v5655 = vpack.c.b16 %v5509, %v5508
      %v5656 = vpack.c.b16 %v5511, %v5510
      %v5657 = vpack.c.b16 %v5513, %v5512
      %v5658 = vpack.c.b16 %v5515, %v5514
      %v5659 = vpack.c.b16 %v5517, %v5516
      %v5660 = vpack.c.b16 %v5519, %v5518
      %v5661 = vpack.c.b16 %v5521, %v5520
      %v5662 = vpack.c.b16 %v5523, %v5522
      %v5663 = vpack.c.b16 %v5525, %v5524
      %v5664 = vpack.c.b16 %v5527, %v5526
      %v5665 = vpack.c.b16 %v5529, %v5528
      %v5666 = vpack.c.b16 %v5531, %v5530
      %v5667 = vpack.c.b16 %v5533, %v5532
      %v5668 = vpack.c.b16 %v5535, %v5534
      %v5669 = vpack.c.b16 %v5537, %v5536
      %v5670 = vpack.c.b16 %v5539, %v5538
      %v5671 = vpack.c.b16 %v5541, %v5540
      %v5672 = vpack.c.b16 %v5543, %v5542
      %v5673 = vpack.c.b16 %v5545, %v5544
      %v5674 = vpack.c.b16 %v5547, %v5546
      %v5675 = vpack.c.b16 %v5549, %v5548
      %v5676 = vpack.c.b16 %v5551, %v5550
      %v5677 = vpack.c.b16 %v5553, %v5552
      %v5678 = vpack.c.b16 %v5555, %v5554
      %v5679 = vpack.c.b16 %v5557, %v5556
      %v5680 = vpack.c.b16 %v5559, %v5558
      %v5681 = vpack.c.b16 %v5561, %v5560
      %v5682 = vpack.c.b16 %v5563, %v5562
      %v5683 = vpack.c.b16 %v5565, %v5564
      %v5684 = vpack.c.b16 %v5567, %v5566
      %v5685 = vpack.c.b16 %v5569, %v5568
      %v5686 = vpack.c.b16 %v5571, %v5570
      %v5687 = vpack.c.b16 %v5573, %v5572
      %v5688 = vpack.c.b16 %v5575, %v5574
      %v5689 = vpack.c.b16 %v5577, %v5576
      %v5690 = vpack.c.b16 %v5579, %v5578
      %v5691 = vpack.c.b16 %v5581, %v5580
      %v5692 = vpack.c.b16 %v5583, %v5582
      %v5693 = vpack.c.b16 %v5585, %v5584
      %v5694 = vpack.c.b16 %v5587, %v5586
      %v5695 = vpack.c.b16 %v5589, %v5588
      %v5696 = vpack.c.b16 %v5591, %v5590
      %v5697 = vpack.c.b16 %v5593, %v5592
      %v5698 = vpack.c.b16 %v5595, %v5594
      %v5699 = vpack.c.b16 %v5597, %v5596
      %v5700 = vpack.c.b16 %v5599, %v5598
      %v5701 = vpack.c.b16 %v5601, %v5600
      %v5702 = vpack.c.b16 %v5603, %v5602
      %v5703 = vpack.c.b16 %v5605, %v5604
      %v5704 = vpack.c.b16 %v5607, %v5606
      %v5705 = vpack.c.b16 %v5609, %v5608
      %v5706 = vpack.c.b16 %v5611, %v5610
      %v5707 = vpack.c.b16 %v5613, %v5612
      %v5708 = vpack.c.b16 %v5615, %v5614
      %v5709 = vpack.c.b16 %v5617, %v5616
      %v5710 = vpack.c.b16 %v5619, %v5618
      %v5711 = vpack.c.b16 %v5621, %v5620
      %v5712 = vpack.c.b16 %v5623, %v5622
      %v5713 = vpack.c.b16 %v5625, %v5624
      %v5714 = vpack.c.b16 %v5627, %v5626
      %v5715 = vpack.c.b16 %v5629, %v5628
      %v5716 = vpack.c.b16 %v5631, %v5630
      %v5717 = vpack.c.b16 %v5633, %v5632
      %v5718 = vpack.c.b16 %v5635, %v5634
      %v5719 = vpack.c.b16 %v5637, %v5636
      %v5720 = vpack.c.b16 %v5639, %v5638
      %v5721 = vpack.c.b16 %v5641, %v5640
      %5802 = vmatprep.subr.bf16.mxu0 0
      %5803 = vmatpush1.bf16.msra.mxu0 %v5649
      %5804 = vmatprep.subr.bf16.mxu0 0
      %5805 = vmatpush1.bf16.msra.mxu0 %v5648
      %5806 = vmatprep.subr.bf16.mxu0 0
      %5807 = vmatpush1.bf16.msra.mxu0 %v5647
      %5808 = vmatprep.subr.bf16.mxu0 0
      %5809 = vmatpush1.bf16.msra.mxu0 %v5646
      %5810 = vmatprep.subr.bf16.mxu0 0
      %5811 = vmatpush1.bf16.msra.mxu0 %v5645
      %5812 = vmatprep.subr.bf16.mxu0 0
      %5813 = vmatpush1.bf16.msra.mxu0 %v5644
      %5814 = vmatprep.subr.bf16.mxu0 0
      %5815 = vmatpush1.bf16.msra.mxu0 %v5643
      %5816 = vmatprep.subr.bf16.mxu0 0
      %5817 = vmatpush1.bf16.msra.mxu0 %v5642
      %5818 = vmatprep.subr.bf16.mxu0 0
      %5819 = vmatpush2.bf16.msra.mxu0 %v5657
      %5820 = vmatprep.subr.bf16.mxu0 0
      %5821 = vmatpush2.bf16.msra.mxu0 %v5656
      %5822 = vmatprep.subr.bf16.mxu0 0
      %5823 = vmatpush2.bf16.msra.mxu0 %v5655
      %5824 = vmatprep.subr.bf16.mxu0 0
      %5825 = vmatpush2.bf16.msra.mxu0 %v5654
      %5826 = vmatprep.subr.bf16.mxu0 0
      %5827 = vmatpush2.bf16.msra.mxu0 %v5653
      %5828 = vmatprep.subr.bf16.mxu0 0
      %5829 = vmatpush2.bf16.msra.mxu0 %v5652
      %5830 = vmatprep.subr.bf16.mxu0 0
      %5831 = vmatpush2.bf16.msra.mxu0 %v5651
      %5832 = vmatprep.subr.bf16.mxu0 0
      %5833 = vmatpush2.bf16.msra.mxu0 %v5650
      %5834 = vmatprep.mubr.bf16.mxu0 %v5146
      %5835 = vmatmul.mubr.bf16.gmra.mxu0 %v5145
      %v5836 = vpop.f32.mrf.mxu0
      %v5837 = vadd.f32 %v5320, %v5836
      %v5838 = vpop.f32.mrf.mxu0
      %v5839 = vpop.f32.mrf.mxu0
      %v5840 = vpop.f32.mrf.mxu0
      %5841 = vdwg.mxu0
      %5842 = vmatprep.subr.bf16.mxu0 0
      %5843 = vmatpush1.bf16.msra.mxu0 %v5665
      %5844 = vmatprep.subr.bf16.mxu0 0
      %5845 = vmatpush1.bf16.msra.mxu0 %v5664
      %5846 = vmatprep.subr.bf16.mxu0 0
      %5847 = vmatpush1.bf16.msra.mxu0 %v5663
      %5848 = vmatprep.subr.bf16.mxu0 0
      %5849 = vmatpush1.bf16.msra.mxu0 %v5662
      %5850 = vmatprep.subr.bf16.mxu0 0
      %5851 = vmatpush1.bf16.msra.mxu0 %v5661
      %5852 = vmatprep.subr.bf16.mxu0 0
      %5853 = vmatpush1.bf16.msra.mxu0 %v5660
      %5854 = vmatprep.subr.bf16.mxu0 0
      %5855 = vmatpush1.bf16.msra.mxu0 %v5659
      %5856 = vmatprep.subr.bf16.mxu0 0
      %5857 = vmatpush1.bf16.msra.mxu0 %v5658
      %5858 = vmatprep.subr.bf16.mxu0 0
      %5859 = vmatpush2.bf16.msra.mxu0 %v5673
      %5860 = vmatprep.subr.bf16.mxu0 0
      %5861 = vmatpush2.bf16.msra.mxu0 %v5672
      %5862 = vmatprep.subr.bf16.mxu0 0
      %5863 = vmatpush2.bf16.msra.mxu0 %v5671
      %5864 = vmatprep.subr.bf16.mxu0 0
      %5865 = vmatpush2.bf16.msra.mxu0 %v5670
      %5866 = vmatprep.subr.bf16.mxu0 0
      %5867 = vmatpush2.bf16.msra.mxu0 %v5669
      %5868 = vmatprep.subr.bf16.mxu0 0
      %5869 = vmatpush2.bf16.msra.mxu0 %v5668
      %5870 = vmatprep.subr.bf16.mxu0 0
      %5871 = vmatpush2.bf16.msra.mxu0 %v5667
      %5872 = vmatprep.subr.bf16.mxu0 0
      %5873 = vmatpush2.bf16.msra.mxu0 %v5666
      %5874 = vmatprep.mubr.bf16.mxu0 %v5148
      %5875 = vmatmul.mubr.bf16.gmra.mxu0 %v5147
      %v5876 = vpop.f32.mrf.mxu0
      %v5877 = vadd.f32 %v5837, %v5876
      %v5878 = vpop.f32.mrf.mxu0
      %v5879 = vpop.f32.mrf.mxu0
      %v5880 = vpop.f32.mrf.mxu0
      %5881 = vdwg.mxu0
      %5882 = vmatprep.subr.bf16.mxu0 0
      %5883 = vmatpush1.bf16.msra.mxu0 %v5681
      %5884 = vmatprep.subr.bf16.mxu0 0
      %5885 = vmatpush1.bf16.msra.mxu0 %v5680
      %5886 = vmatprep.subr.bf16.mxu0 0
      %5887 = vmatpush1.bf16.msra.mxu0 %v5679
      %5888 = vmatprep.subr.bf16.mxu0 0
      %5889 = vmatpush1.bf16.msra.mxu0 %v5678
      %5890 = vmatprep.subr.bf16.mxu0 0
      %5891 = vmatpush1.bf16.msra.mxu0 %v5677
      %5892 = vmatprep.subr.bf16.mxu0 0
      %5893 = vmatpush1.bf16.msra.mxu0 %v5676
      %5894 = vmatprep.subr.bf16.mxu0 0
      %5895 = vmatpush1.bf16.msra.mxu0 %v5675
      %5896 = vmatprep.subr.bf16.mxu0 0
      %5897 = vmatpush1.bf16.msra.mxu0 %v5674
      %5898 = vmatprep.subr.bf16.mxu0 0
      %5899 = vmatpush2.bf16.msra.mxu0 %v5689
      %5900 = vmatprep.subr.bf16.mxu0 0
      %5901 = vmatpush2.bf16.msra.mxu0 %v5688
      %5902 = vmatprep.subr.bf16.mxu0 0
      %5903 = vmatpush2.bf16.msra.mxu0 %v5687
      %5904 = vmatprep.subr.bf16.mxu0 0
      %5905 = vmatpush2.bf16.msra.mxu0 %v5686
      %5906 = vmatprep.subr.bf16.mxu0 0
      %5907 = vmatpush2.bf16.msra.mxu0 %v5685
      %5908 = vmatprep.subr.bf16.mxu0 0
      %5909 = vmatpush2.bf16.msra.mxu0 %v5684
      %5910 = vmatprep.subr.bf16.mxu0 0
      %5911 = vmatpush2.bf16.msra.mxu0 %v5683
      %5912 = vmatprep.subr.bf16.mxu0 0
      %5913 = vmatpush2.bf16.msra.mxu0 %v5682
      %5914 = vmatprep.mubr.bf16.mxu0 %v5150
      %5915 = vmatmul.mubr.bf16.gmra.mxu0 %v5149
      %v5916 = vpop.f32.mrf.mxu0
      %v5917 = vadd.f32 %v5877, %v5916
      %v5918 = vpop.f32.mrf.mxu0
      %v5919 = vpop.f32.mrf.mxu0
      %v5920 = vpop.f32.mrf.mxu0
      %5921 = vdwg.mxu0
      %5922 = vmatprep.subr.bf16.mxu0 0
      %5923 = vmatpush1.bf16.msra.mxu0 %v5697
      %5924 = vmatprep.subr.bf16.mxu0 0
      %5925 = vmatpush1.bf16.msra.mxu0 %v5696
      %5926 = vmatprep.subr.bf16.mxu0 0
      %5927 = vmatpush1.bf16.msra.mxu0 %v5695
      %5928 = vmatprep.subr.bf16.mxu0 0
      %5929 = vmatpush1.bf16.msra.mxu0 %v5694
      %5930 = vmatprep.subr.bf16.mxu0 0
      %5931 = vmatpush1.bf16.msra.mxu0 %v5693
      %5932 = vmatprep.subr.bf16.mxu0 0
      %5933 = vmatpush1.bf16.msra.mxu0 %v5692
      %5934 = vmatprep.subr.bf16.mxu0 0
      %5935 = vmatpush1.bf16.msra.mxu0 %v5691
      %5936 = vmatprep.subr.bf16.mxu0 0
      %5937 = vmatpush1.bf16.msra.mxu0 %v5690
      %5938 = vmatprep.subr.bf16.mxu0 0
      %5939 = vmatpush2.bf16.msra.mxu0 %v5705
      %5940 = vmatprep.subr.bf16.mxu0 0
      %5941 = vmatpush2.bf16.msra.mxu0 %v5704
      %5942 = vmatprep.subr.bf16.mxu0 0
      %5943 = vmatpush2.bf16.msra.mxu0 %v5703
      %5944 = vmatprep.subr.bf16.mxu0 0
      %5945 = vmatpush2.bf16.msra.mxu0 %v5702
      %5946 = vmatprep.subr.bf16.mxu0 0
      %5947 = vmatpush2.bf16.msra.mxu0 %v5701
      %5948 = vmatprep.subr.bf16.mxu0 0
      %5949 = vmatpush2.bf16.msra.mxu0 %v5700
      %5950 = vmatprep.subr.bf16.mxu0 0
      %5951 = vmatpush2.bf16.msra.mxu0 %v5699
      %5952 = vmatprep.subr.bf16.mxu0 0
      %5953 = vmatpush2.bf16.msra.mxu0 %v5698
      %5954 = vmatprep.mubr.bf16.mxu0 %v5152
      %5955 = vmatmul.mubr.bf16.gmra.mxu0 %v5151
      %v5956 = vpop.f32.mrf.mxu0
      %v5957 = vadd.f32 %v5917, %v5956
      %v5958 = vpop.f32.mrf.mxu0
      %v5959 = vpop.f32.mrf.mxu0
      %v5960 = vpop.f32.mrf.mxu0
      %5961 = vdwg.mxu0
      %5962 = vmatprep.subr.bf16.mxu0 0
      %5963 = vmatpush1.bf16.msra.mxu0 %v5713
      %5964 = vmatprep.subr.bf16.mxu0 0
      %5965 = vmatpush1.bf16.msra.mxu0 %v5712
      %5966 = vmatprep.subr.bf16.mxu0 0
      %5967 = vmatpush1.bf16.msra.mxu0 %v5711
      %5968 = vmatprep.subr.bf16.mxu0 0
      %5969 = vmatpush1.bf16.msra.mxu0 %v5710
      %5970 = vmatprep.subr.bf16.mxu0 0
      %5971 = vmatpush1.bf16.msra.mxu0 %v5709
      %5972 = vmatprep.subr.bf16.mxu0 0
      %5973 = vmatpush1.bf16.msra.mxu0 %v5708
      %5974 = vmatprep.subr.bf16.mxu0 0
      %5975 = vmatpush1.bf16.msra.mxu0 %v5707
      %5976 = vmatprep.subr.bf16.mxu0 0
      %5977 = vmatpush1.bf16.msra.mxu0 %v5706
      %5978 = vmatprep.subr.bf16.mxu0 0
      %5979 = vmatpush2.bf16.msra.mxu0 %v5721
      %5980 = vmatprep.subr.bf16.mxu0 0
      %5981 = vmatpush2.bf16.msra.mxu0 %v5720
      %5982 = vmatprep.subr.bf16.mxu0 0
      %5983 = vmatpush2.bf16.msra.mxu0 %v5719
      %5984 = vmatprep.subr.bf16.mxu0 0
      %5985 = vmatpush2.bf16.msra.mxu0 %v5718
      %5986 = vmatprep.subr.bf16.mxu0 0
      %5987 = vmatpush2.bf16.msra.mxu0 %v5717
      %5988 = vmatprep.subr.bf16.mxu0 0
      %5989 = vmatpush2.bf16.msra.mxu0 %v5716
      %5990 = vmatprep.subr.bf16.mxu0 0
      %5991 = vmatpush2.bf16.msra.mxu0 %v5715
      %5992 = vmatprep.subr.bf16.mxu0 0
      %5993 = vmatpush2.bf16.msra.mxu0 %v5714
      %5994 = vmatprep.mubr.bf16.mxu0 %v5154
      %5995 = vmatmul.mubr.bf16.gmra.mxu0 %v5153
      %v5996 = vpop.f32.mrf.mxu0
      %v5997 = vadd.f32 %v5957, %v5996
      %v5998 = vpop.f32.mrf.mxu0
      %v5999 = vpop.f32.mrf.mxu0
      %v6000 = vpop.f32.mrf.mxu0
      %6001 = vdwg.mxu0
      %6002 = vst [vmem:[#allocation11] sm:$0x3] %v5997
    $region45: #{tpu_custom_call.1} parent=1 // pred_fallthru
      _
    // Predicated region
    $region46: #{tpu_custom_call.1} parent=1 // pred_check
      _
    $region47: #{tpu_custom_call.1} parent=1 // pred_check_branch
      %6004 = sbr.rel (0) target = $region49
    $region48: #{tpu_custom_call.1} parent=1 // pred_region
      %s6006 = ssub.s32 32, 32
      %6007 = vsyncadd [#allocation5], %s6006
      %s6009 = sshll.u32 [#allocation11], 4
      %s6010 = int_to_ptr.vmem [resolvable:$true] %s6009
      %6012 = dma.vmem_to_hbm [thread:$0]  %s6010, 32, %s5, [#allocation5]
    $region49: #{tpu_custom_call.1} parent=1 // pred_fallthru
      _
    // Predicated region
    $region50: #{tpu_custom_call.1} parent=1 // pred_check
      _
    $region51: #{tpu_custom_call.1} parent=1 // pred_check_branch
      %6014 = sbr.rel (0) target = $region53
    $region52: #{tpu_custom_call.1} parent=1 // pred_region
      %6015 = dma.done [#allocation5], 32
    $region53: #{tpu_custom_call.1} parent=1 // pred_fallthru
      _
    %6016 = vsyncpa [#allocation4], 1
    %6017 = vsyncpa [#allocation7], 1
    %6018 = vsyncpa [#allocation10], 1
    %6019 = vsyncpa [#allocation5], 1

</llo_original>
